<compile_context>
chip_gen: v7x
topology: tpu7x:2x2x1
jax: 0.10.0
libtpu: 0.0.40
codegen_flags: <defaults>
</compile_context>

<pallas_src>
import jax
import jax.numpy as jnp
import numpy as np
from jax.experimental import pallas as pl
from jax.experimental.pallas import tpu as pltpu

LN_EPS = 1e-5


# ----------------------------------------------------------------------------
# Small helpers
# ----------------------------------------------------------------------------
def _round_up(x, m):
    return ((x + m - 1) // m) * m


def _elementwise_dtype():
    """bf16 elementwise (SiLU / residual adds) on v6e/v7x; f32 on v5e and older."""
    try:
        kind = jax.devices()[0].device_kind.lower()
    except Exception:
        return jnp.float32
    if "tpu" not in kind:
        return jnp.float32
    for old in ("v2", "v3", "v4", "v5"):
        if old in kind:
            return jnp.float32        # no bf16 VPU/EUP on these chips
    return jnp.bfloat16


def _ln_normalize(x):
    """LayerNorm without affine (affine folded into the following Linear), f32 stats."""
    x = x.astype(jnp.float32)
    mu = jnp.mean(x, axis=-1, keepdims=True)
    var = jnp.mean((x - mu) * (x - mu), axis=-1, keepdims=True)
    return (x - mu) * jax.lax.rsqrt(var + LN_EPS)


def _silu(x, dtype):
    x = x.astype(dtype)
    return x * jax.nn.sigmoid(x)


def _mm(a, w):
    """MXU matmul: bf16 operands, f32 accumulation."""
    return jnp.dot(a.astype(jnp.bfloat16), w.astype(jnp.bfloat16),
                   preferred_element_type=jnp.float32)


# ----------------------------------------------------------------------------
# Fused kernel: V encoders + reparameterize + KL + online attentive aggregation
# ----------------------------------------------------------------------------
def _make_fused_kernel(n_views, depth, hidden_dim, b_actual, tb, act_dtype):
    per_view = 6 + (2 if depth > 0 else 0)

    def kernel(*refs):
        vrefs = [refs[v * per_view:(v + 1) * per_view] for v in range(n_views)]
        pw_ref, pb_ref, aw_ref, ab_ref = refs[n_views * per_view:n_views * per_view + 4]
        out_ref, aux_ref = refs[n_views * per_view + 4:]

        H = hidden_dim
        # Valid-row mask so batch-padding rows do not contribute to the KL loss.
        row = (pl.program_id(0) * tb
               + jax.lax.broadcasted_iota(jnp.int32, (tb, 1), 0))
        valid = row < b_actual

        aw = aw_ref[...]          # (1, L) f32 attention weight (Conv1d(L,1,1))
        ab = ab_ref[...]          # (1, 1) f32 attention bias

        kl_rows = jnp.zeros((tb, 1), jnp.float32)
        logits = []
        m = denom = acc = None

        for v in range(n_views):                       # static unroll over views
            if depth > 0:
                x_ref, eps_ref, w1, b1, rw, rb, w2, b2 = vrefs[v]
            else:
                x_ref, eps_ref, w1, b1, w2, b2 = vrefs[v]

            # input2hidden: LN (affine folded into w1/b1) -> Linear -> SiLU -> Dropout(id)
            h = _ln_normalize(x_ref[...])
            h = _mm(h, w1[...]) + b1[...]
            h = _silu(h, act_dtype)

            # residual hidden blocks (static unroll); LN affine folded into rw/rb
            for d in range(depth):
                r = _ln_normalize(h)
                r = _mm(r, rw[d]) + rb[d]
                r = _silu(r, act_dtype)
                h = h + r

            # hidden2output: single lane-dense (H, 2H) matmul; realign logvar half with
            # an XLU rotate (offset-0 slices only).
            mo = _mm(h, w2[...]) + b2[...]              # (tb, 2H) f32
            mean = mo[:, :H]
            logvar = pltpu.roll(mo, shift=H, axis=1)[:, :H]

            e = jnp.exp(logvar)                         # KL term only
            std = jnp.exp(0.5 * logvar)                 # overflow-safe std
            z = mean + eps_ref[...] * std               # reparameterization (f32)

            # per-row KL partial, accumulated across views (masked once at the end)
            kl_rows = kl_rows + jnp.sum(1.0 + logvar - mean * mean - e,
                                        axis=-1, keepdims=True)

            # per-view projection to latent space + Conv1d(L,1,1) logit
            # (VPU multiply + lane reduce instead of a 1-column MXU matmul)
            xp = _mm(z, pw_ref[v]) + pb_ref[v]          # (tb, L) f32
            lg = jnp.sum(xp * aw, axis=-1, keepdims=True) + ab   # (tb, 1)
            logits.append(lg)

            # online (flash-style) softmax-weighted aggregation across views
            if v == 0:
                m = lg
                denom = jnp.ones((tb, 1), jnp.float32)
                acc = xp
            else:
                m_new = jnp.maximum(m, lg)
                alpha = jnp.exp(m - m_new)
                p = jnp.exp(lg - m_new)
                denom = alpha * denom + p
                acc = alpha * acc + p * xp
                m = m_new

        inv = pl.reciprocal(denom, approx=True)          # EUP slot, ~free
        out_ref[...] = (acc * inv).astype(out_ref.dtype)

        # merged aux output: [coeff_0 .. coeff_{V-1}, kl_row]
        coeff_cols = [jnp.exp(lg - m) * inv for lg in logits]
        kl_col = jnp.where(valid, (-0.5 / (H * n_views)) * kl_rows, 0.0)
        aux_ref[...] = jnp.concatenate(coeff_cols + [kl_col], axis=-1)

    return kernel


# ----------------------------------------------------------------------------
# Wrapper: one pallas_call for the whole VariationalBranch forward
# ----------------------------------------------------------------------------
def variational_branch_forward(x_list, params, eps_list, depth):
    V = len(x_list)
    B = x_list[0].shape[0]
    blocks = params["blocks"]
    agg = params["agg"]
    H = blocks[0]["w1"].shape[1]
    L = agg["proj_w"].shape[-1]
    act_dtype = _elementwise_dtype()

    # Batch tile: as large as reasonable (amortize ~0.35us/step overhead, fill MXU M dim)
    # but split so the grid has >=2 "parallel" tiles whenever B allows (2 TCs on v7x).
    tb = min(512, _round_up(max((B + 1) // 2, 8), 8))
    b_pad = _round_up(B, tb)
    nbt = b_pad // tb

    def pad_b(a):
        return a if b_pad == B else jnp.pad(a, ((0, b_pad - B), (0, 0)))

    def fold_ln(ln_w, ln_b, w, b):
        # (norm(x) * ln_w + ln_b) @ W + b == norm(x) @ (ln_w^T * W) + (ln_b @ W + b)
        return (ln_w.reshape(-1, 1) * w).astype(jnp.bfloat16), ln_b @ w + b

    inputs, tiled_cols = [], []          # tiled_cols[i]: ncols if batch-tiled else None

    def add_const(a):
        inputs.append(a)
        tiled_cols.append(None)

    def add_tiled(a):
        inputs.append(pad_b(a))
        tiled_cols.append(a.shape[1])

    # NOTE: in a real pipeline the folded / merged bf16 weights would be materialized once
    # at parameter-creation time; here they are tiny one-off XLA ops.
    for v in range(V):
        p = blocks[v]
        add_tiled(x_list[v])
        add_tiled(eps_list[v])
        w1, b1 = fold_ln(p["ln1_w"], p["ln1_b"], p["w1"], p["b1"])
        add_const(w1); add_const(b1)
        if depth > 0:
            rw, rb = zip(*[fold_ln(p["res_ln_w"][d], p["res_ln_b"][d],
                                   p["res_w"][d], p["res_b"][d])
                           for d in range(depth)])
            add_const(jnp.stack(rw)); add_const(jnp.stack(rb))
        # hidden2output: merged (H, 2H) weight -> one lane-dense matmul in-kernel
        add_const(jnp.concatenate([p["w2_mean"], p["w2_logvar"]],
                                  axis=1).astype(jnp.bfloat16))
        add_const(jnp.concatenate([p["b2_mean"], p["b2_logvar"]], axis=1))

    add_const(agg["proj_w"].astype(jnp.bfloat16)); add_const(agg["proj_b"])
    add_const(agg["attn_w"]); add_const(agg["attn_b"])

    def make_in_specs(single_buffer_weights):
        specs = []
        for a, cols in zip(inputs, tiled_cols):
            if cols is not None:
                specs.append(pl.BlockSpec((tb, cols), lambda b: (b, 0)))
            else:
                idx = lambda b, n=a.ndim: (0,) * n
                if single_buffer_weights:
                    # constant index_map -> double-buffering buys nothing; halve weight VMEM
                    specs.append(pl.BlockSpec(a.shape, idx,
                                              pipeline_mode=pl.Buffered(1)))
                else:
                    specs.append(pl.BlockSpec(a.shape, idx))
        return specs

    out_shapes = (jax.ShapeDtypeStruct((b_pad, L), jnp.float32),
                  jax.ShapeDtypeStruct((b_pad, V + 1), jnp.float32))
    out_specs = (pl.BlockSpec((tb, L), lambda b: (b, 0)),
                 pl.BlockSpec((tb, V + 1), lambda b: (b, 0)))

    kernel = _make_fused_kernel(V, depth, H, B, tb, act_dtype)

    def run(single_buffer_weights):
        return pl.pallas_call(
            kernel,
            out_shape=out_shapes,
            grid=(nbt,),
            in_specs=make_in_specs(single_buffer_weights),
            out_specs=out_specs,
            compiler_params=pltpu.CompilerParams(
                dimension_semantics=("parallel",),      # batch tiles -> both TCs on v7x
                # plenty for tb<=512 at these H/L (above v5e's 16 MiB scoped default);
                # recompute if H / L / depth / V grow.
                vmem_limit_bytes=32 * 1024 * 1024),
        )(*inputs)

    try:
        out, aux = run(True)
    except Exception:          # jax build without BlockSpec pipeline_mode / Buffered(1)
        out, aux = run(False)

    coeffs = aux[:B, :V]
    loss_kl = jnp.sum(aux[:, V])        # padded rows are masked to 0 in-kernel
    return out[:B], loss_kl, coeffs


# ----------------------------------------------------------------------------
# Deterministic parameter init (shapes match the PyTorch module; w2 stored pre-split,
# the wrapper folds LN affines and merges w2 before launching the kernel)
# ----------------------------------------------------------------------------
def _uniform(key, shape, bound):
    return jax.random.uniform(key, shape, jnp.float32, minval=-bound, maxval=bound)


def init_params(key, input_dim_list, hidden_dim, latent_dim, depth):
    V = len(input_dim_list)
    params = {"blocks": [], "agg": {}}
    keys = jax.random.split(key, V + 1)

    for i, d_in in enumerate(input_dim_list):
        ks = jax.random.split(keys[i], 10)
        bnd_in = 1.0 / np.sqrt(d_in)
        bnd_h = 1.0 / np.sqrt(hidden_dim)
        p = {
            "ln1_w": jnp.ones((1, d_in), jnp.float32),
            "ln1_b": jnp.zeros((1, d_in), jnp.float32),
            "w1": _uniform(ks[0], (d_in, hidden_dim), bnd_in),
            "b1": _uniform(ks[1], (1, hidden_dim), bnd_in),
            # hidden2output = Linear(H, 2H), stored as mean / logvar halves
            "w2_mean": _uniform(ks[2], (hidden_dim, hidden_dim), bnd_h),
            "b2_mean": _uniform(ks[3], (1, hidden_dim), bnd_h),
            "w2_logvar": _uniform(ks[4], (hidden_dim, hidden_dim), bnd_h),
            "b2_logvar": _uniform(ks[5], (1, hidden_dim), bnd_h),
        }
        if depth > 0:
            p["res_ln_w"] = jnp.ones((depth, 1, hidden_dim), jnp.float32)
            p["res_ln_b"] = jnp.zeros((depth, 1, hidden_dim), jnp.float32)
            p["res_w"] = _uniform(ks[6], (depth, hidden_dim, hidden_dim), bnd_h)
            p["res_b"] = _uniform(ks[7], (depth, 1, hidden_dim), bnd_h)
        params["blocks"].append(p)

    ka = jax.random.split(keys[-1], 4)
    params["agg"] = {
        # nn.Linear(hidden_dim, latent_dim) per view
        "proj_w": _uniform(ka[0], (V, hidden_dim, latent_dim), 1.0 / np.sqrt(hidden_dim)),
        "proj_b": _uniform(ka[1], (V, 1, latent_dim), 1.0 / np.sqrt(hidden_dim)),
        # nn.Conv1d(latent_dim, 1, 1): weight (1, latent_dim), bias (1, 1)
        "attn_w": _uniform(ka[2], (1, latent_dim), 1.0 / np.sqrt(latent_dim)),
        "attn_b": _uniform(ka[3], (1, 1), 1.0 / np.sqrt(latent_dim)),
    }
    return params


# ----------------------------------------------------------------------------
# Pure-JAX f32 reference (original un-folded parameterization) for correctness check
# ----------------------------------------------------------------------------
def _ref_forward(x_list, params, eps_list, depth):
    def ln(x, w, b):
        mu = jnp.mean(x, -1, keepdims=True)
        var = jnp.mean((x - mu) ** 2, -1, keepdims=True)
        return (x - mu) / jnp.sqrt(var + LN_EPS) * w + b

    z_list, kls = [], []
    for x, p, eps in zip(x_list, params["blocks"], eps_list):
        h = ln(x, p["ln1_w"], p["ln1_b"]) @ p["w1"] + p["b1"]
        h = h * jax.nn.sigmoid(h)
        for d in range(depth):
            r = ln(h, p["res_ln_w"][d], p["res_ln_b"][d]) @ p["res_w"][d] + p["res_b"][d]
            h = h + r * jax.nn.sigmoid(r)
        mean = h @ p["w2_mean"] + p["b2_mean"]
        logvar = h @ p["w2_logvar"] + p["b2_logvar"]
        H = p["w1"].shape[1]
        z_list.append(mean + eps * jnp.exp(0.5 * logvar))
        kls.append(-0.5 * jnp.sum(1 + logvar - mean ** 2 - jnp.exp(logvar)) / H)

    a = params["agg"]
    xp = jnp.stack([z @ a["proj_w"][v] + a["proj_b"][v] for v, z in enumerate(z_list)], -1)
    logits = jnp.einsum("blv,l->bv", xp, a["attn_w"][0]) + a["attn_b"][0, 0]
    attn = jax.nn.softmax(logits, axis=-1)
    out = jnp.sum(xp * attn[:, None, :], axis=-1)
    return out, sum(kls) / len(x_list), attn


# ----------------------------------------------------------------------------
if __name__ == "__main__":
    B = 8
    input_dim_list = [32, 48]
    hidden_dim = 64
    latent_dim = 128
    depth = 1

    key = jax.random.PRNGKey(0)
    k_param, k_x, k_eps = jax.random.split(key, 3)

    params = init_params(k_param, input_dim_list, hidden_dim, latent_dim, depth)

    x_keys = jax.random.split(k_x, len(input_dim_list))
    x_list = [jax.random.normal(x_keys[i], (B, d), jnp.float32)
              for i, d in enumerate(input_dim_list)]

    eps_keys = jax.random.split(k_eps, len(input_dim_list))
    eps_list = [jax.random.normal(eps_keys[i], (B, hidden_dim), jnp.float32)
                for i in range(len(input_dim_list))]

    out, loss_kl, coeffs = variational_branch_forward(x_list, params, eps_list, depth)
    out, loss_kl, coeffs = jax.block_until_ready((out, loss_kl, coeffs))

    # sanity check vs pure-f32 JAX reference (looser tolerance: kernel uses bf16 MXU
    # operands (+ bf16 SiLU on v6e/v7x) with f32 accumulation + approx reciprocal)
    r_out, r_kl, r_coeffs = _ref_forward(x_list, params, eps_list, depth)
    np.testing.assert_allclose(np.asarray(out), np.asarray(r_out), rtol=5e-2, atol=5e-2)
    np.testing.assert_allclose(np.asarray(coeffs), np.asarray(r_coeffs), rtol=5e-2, atol=5e-2)
    np.testing.assert_allclose(np.asarray(loss_kl), np.asarray(r_kl), rtol=5e-2, atol=5e-2)

    assert out.shape == (B, latent_dim)
    assert coeffs.shape == (B, len(input_dim_list))
    print("KERNEL_OK")
</pallas_src>

<mosaic_0001>
module attributes {stable_mosaic.version = 11 : i64} {
  func.func @kernel(%arg0: i32, %arg1: memref<8x32xf32, #tpu.memory_space<vmem>>, %arg2: memref<8x64xf32, #tpu.memory_space<vmem>>, %arg3: memref<32x64xbf16, #tpu.memory_space<vmem>>, %arg4: memref<1x64xf32, #tpu.memory_space<vmem>>, %arg5: memref<1x64x64xbf16, #tpu.memory_space<vmem>>, %arg6: memref<1x1x64xf32, #tpu.memory_space<vmem>>, %arg7: memref<64x128xbf16, #tpu.memory_space<vmem>>, %arg8: memref<1x128xf32, #tpu.memory_space<vmem>>, %arg9: memref<8x48xf32, #tpu.memory_space<vmem>>, %arg10: memref<8x64xf32, #tpu.memory_space<vmem>>, %arg11: memref<48x64xbf16, #tpu.memory_space<vmem>>, %arg12: memref<1x64xf32, #tpu.memory_space<vmem>>, %arg13: memref<1x64x64xbf16, #tpu.memory_space<vmem>>, %arg14: memref<1x1x64xf32, #tpu.memory_space<vmem>>, %arg15: memref<64x128xbf16, #tpu.memory_space<vmem>>, %arg16: memref<1x128xf32, #tpu.memory_space<vmem>>, %arg17: memref<2x64x128xbf16, #tpu.memory_space<vmem>>, %arg18: memref<2x1x128xf32, #tpu.memory_space<vmem>>, %arg19: memref<1x128xf32, #tpu.memory_space<vmem>>, %arg20: memref<1x1xf32, #tpu.memory_space<vmem>>, %arg21: memref<8x128xf32, #tpu.memory_space<vmem>>, %arg22: memref<8x3xf32, #tpu.memory_space<vmem>>) attributes {dimension_semantics = [#tpu.dimension_semantics<parallel>], iteration_bounds = array<i64: 1>, scalar_prefetch = 0 : i64, scratch_operands = 0 : i64, tpu.core_type = #tpu.core_type<tc>, window_params = [{transform_indices = @transform_0, window_bounds = array<i64: 8, 32>}, {transform_indices = @transform_1, window_bounds = array<i64: 8, 64>}, {pipeline_mode = #tpu.pipeline_mode<synchronous>, transform_indices = @transform_2, window_bounds = array<i64: 32, 64>}, {pipeline_mode = #tpu.pipeline_mode<synchronous>, transform_indices = @transform_3, window_bounds = array<i64: 1, 64>}, {pipeline_mode = #tpu.pipeline_mode<synchronous>, transform_indices = @transform_4, window_bounds = array<i64: 1, 64, 64>}, {pipeline_mode = #tpu.pipeline_mode<synchronous>, transform_indices = @transform_5, window_bounds = array<i64: 1, 1, 64>}, {pipeline_mode = #tpu.pipeline_mode<synchronous>, transform_indices = @transform_6, window_bounds = array<i64: 64, 128>}, {pipeline_mode = #tpu.pipeline_mode<synchronous>, transform_indices = @transform_7, window_bounds = array<i64: 1, 128>}, {transform_indices = @transform_8, window_bounds = array<i64: 8, 48>}, {transform_indices = @transform_9, window_bounds = array<i64: 8, 64>}, {pipeline_mode = #tpu.pipeline_mode<synchronous>, transform_indices = @transform_10, window_bounds = array<i64: 48, 64>}, {pipeline_mode = #tpu.pipeline_mode<synchronous>, transform_indices = @transform_11, window_bounds = array<i64: 1, 64>}, {pipeline_mode = #tpu.pipeline_mode<synchronous>, transform_indices = @transform_12, window_bounds = array<i64: 1, 64, 64>}, {pipeline_mode = #tpu.pipeline_mode<synchronous>, transform_indices = @transform_13, window_bounds = array<i64: 1, 1, 64>}, {pipeline_mode = #tpu.pipeline_mode<synchronous>, transform_indices = @transform_14, window_bounds = array<i64: 64, 128>}, {pipeline_mode = #tpu.pipeline_mode<synchronous>, transform_indices = @transform_15, window_bounds = array<i64: 1, 128>}, {pipeline_mode = #tpu.pipeline_mode<synchronous>, transform_indices = @transform_16, window_bounds = array<i64: 2, 64, 128>}, {pipeline_mode = #tpu.pipeline_mode<synchronous>, transform_indices = @transform_17, window_bounds = array<i64: 2, 1, 128>}, {pipeline_mode = #tpu.pipeline_mode<synchronous>, transform_indices = @transform_18, window_bounds = array<i64: 1, 128>}, {pipeline_mode = #tpu.pipeline_mode<synchronous>, transform_indices = @transform_19, window_bounds = array<i64: 1, 1>}, {transform_indices = @transform_20, window_bounds = array<i64: 8, 128>}, {transform_indices = @transform_21, window_bounds = array<i64: 8, 3>}]} {
    %c8_i32 = arith.constant 8 : i32
    %0 = arith.muli %arg0, %c8_i32 : i32
    %1 = tpu.iota {dimensions = array<i32: 0>} : vector<8x1xi32>
    %2 = vector.broadcast %0 : i32 to vector<8x1xi32>
    %3 = arith.addi %2, %1 : vector<8x1xi32>
    %c8_i32_0 = arith.constant 8 : i32
    %4 = vector.broadcast %c8_i32_0 : i32 to vector<8x1xi32>
    %5 = arith.cmpi slt, %3, %4 : vector<8x1xi32>
    %c0 = arith.constant 0 : index
    %c0_1 = arith.constant 0 : index
    %6 = vector.load %arg19[%c0, %c0_1] : memref<1x128xf32, #tpu.memory_space<vmem>>, vector<1x128xf32>
    %c0_2 = arith.constant 0 : index
    %c0_3 = arith.constant 0 : index
    %7 = vector.load %arg20[%c0_2, %c0_3] : memref<1x1xf32, #tpu.memory_space<vmem>>, vector<1x1xf32>
    %cst = arith.constant 0.000000e+00 : f32
    %8 = vector.broadcast %cst : f32 to vector<8x1xf32>
    %c0_4 = arith.constant 0 : index
    %c0_5 = arith.constant 0 : index
    %9 = vector.load %arg1[%c0_4, %c0_5] : memref<8x32xf32, #tpu.memory_space<vmem>>, vector<8x32xf32>
    %cst_6 = arith.constant dense<0.000000e+00> : vector<8xf32>
    %10 = vector.multi_reduction <add>, %9, %cst_6 [1] : vector<8x32xf32> to vector<8xf32>
    %11 = vector.shape_cast %10 : vector<8xf32> to vector<8x1xf32>
    %cst_7 = arith.constant 3.200000e+01 : f32
    %12 = vector.broadcast %cst_7 : f32 to vector<8x1xf32>
    %13 = arith.divf %11, %12 : vector<8x1xf32>
    %14 = vector.broadcast %13 : vector<8x1xf32> to vector<8x32xf32>
    %15 = arith.subf %9, %14 : vector<8x32xf32>
    %16 = vector.broadcast %13 : vector<8x1xf32> to vector<8x32xf32>
    %17 = arith.subf %9, %16 : vector<8x32xf32>
    %18 = arith.mulf %15, %17 : vector<8x32xf32>
    %cst_8 = arith.constant dense<0.000000e+00> : vector<8xf32>
    %19 = vector.multi_reduction <add>, %18, %cst_8 [1] : vector<8x32xf32> to vector<8xf32>
    %20 = vector.shape_cast %19 : vector<8xf32> to vector<8x1xf32>
    %cst_9 = arith.constant 3.200000e+01 : f32
    %21 = vector.broadcast %cst_9 : f32 to vector<8x1xf32>
    %22 = arith.divf %20, %21 : vector<8x1xf32>
    %23 = vector.broadcast %13 : vector<8x1xf32> to vector<8x32xf32>
    %24 = arith.subf %9, %23 : vector<8x32xf32>
    %cst_10 = arith.constant 9.99999974E-6 : f32
    %25 = vector.broadcast %cst_10 : f32 to vector<8x1xf32>
    %26 = arith.addf %22, %25 : vector<8x1xf32>
    %27 = math.rsqrt %26 : vector<8x1xf32>
    %28 = vector.broadcast %27 : vector<8x1xf32> to vector<8x32xf32>
    %29 = arith.mulf %24, %28 : vector<8x32xf32>
    %c0_11 = arith.constant 0 : index
    %c0_12 = arith.constant 0 : index
    %30 = vector.load %arg3[%c0_11, %c0_12] : memref<32x64xbf16, #tpu.memory_space<vmem>>, vector<32x64xbf16>
    %31 = arith.truncf %29 : vector<8x32xf32> to vector<8x32xbf16>
    %cst_13 = arith.constant dense<0.000000e+00> : vector<8x64xf32>
    %32 = tpu.matmul %31, %30, %cst_13 {dimension_numbers = #tpu.dot_dimension_numbers<[1], [0], [0], [1], [0, 0, 1, 1], [], []>} : vector<8x32xbf16>, vector<32x64xbf16>, vector<8x64xf32> -> vector<8x64xf32>
    %c0_14 = arith.constant 0 : index
    %c0_15 = arith.constant 0 : index
    %33 = vector.load %arg4[%c0_14, %c0_15] : memref<1x64xf32, #tpu.memory_space<vmem>>, vector<1x64xf32>
    %34 = vector.broadcast %33 : vector<1x64xf32> to vector<8x64xf32>
    %35 = arith.addf %32, %34 : vector<8x64xf32>
    %36 = arith.negf %35 : vector<8x64xf32>
    %37 = math.exp %36 : vector<8x64xf32>
    %cst_16 = arith.constant 1.000000e+00 : f32
    %38 = vector.broadcast %cst_16 : f32 to vector<8x64xf32>
    %39 = arith.addf %38, %37 : vector<8x64xf32>
    %40 = arith.divf %38, %39 : vector<8x64xf32>
    %41 = arith.mulf %35, %40 : vector<8x64xf32>
    %cst_17 = arith.constant dense<0.000000e+00> : vector<8xf32>
    %42 = vector.multi_reduction <add>, %41, %cst_17 [1] : vector<8x64xf32> to vector<8xf32>
    %43 = vector.shape_cast %42 : vector<8xf32> to vector<8x1xf32>
    %cst_18 = arith.constant 6.400000e+01 : f32
    %44 = vector.broadcast %cst_18 : f32 to vector<8x1xf32>
    %45 = arith.divf %43, %44 : vector<8x1xf32>
    %46 = vector.broadcast %45 : vector<8x1xf32> to vector<8x64xf32>
    %47 = arith.subf %41, %46 : vector<8x64xf32>
    %48 = vector.broadcast %45 : vector<8x1xf32> to vector<8x64xf32>
    %49 = arith.subf %41, %48 : vector<8x64xf32>
    %50 = arith.mulf %47, %49 : vector<8x64xf32>
    %cst_19 = arith.constant dense<0.000000e+00> : vector<8xf32>
    %51 = vector.multi_reduction <add>, %50, %cst_19 [1] : vector<8x64xf32> to vector<8xf32>
    %52 = vector.shape_cast %51 : vector<8xf32> to vector<8x1xf32>
    %cst_20 = arith.constant 6.400000e+01 : f32
    %53 = vector.broadcast %cst_20 : f32 to vector<8x1xf32>
    %54 = arith.divf %52, %53 : vector<8x1xf32>
    %55 = vector.broadcast %45 : vector<8x1xf32> to vector<8x64xf32>
    %56 = arith.subf %41, %55 : vector<8x64xf32>
    %cst_21 = arith.constant 9.99999974E-6 : f32
    %57 = vector.broadcast %cst_21 : f32 to vector<8x1xf32>
    %58 = arith.addf %54, %57 : vector<8x1xf32>
    %59 = math.rsqrt %58 : vector<8x1xf32>
    %60 = vector.broadcast %59 : vector<8x1xf32> to vector<8x64xf32>
    %61 = arith.mulf %56, %60 : vector<8x64xf32>
    %c0_22 = arith.constant 0 : index
    %c0_23 = arith.constant 0 : index
    %c0_24 = arith.constant 0 : index
    %62 = vector.load %arg5[%c0_22, %c0_23, %c0_24] : memref<1x64x64xbf16, #tpu.memory_space<vmem>>, vector<1x64x64xbf16>
    %63 = vector.shape_cast %62 : vector<1x64x64xbf16> to vector<64x64xbf16>
    %64 = arith.truncf %61 : vector<8x64xf32> to vector<8x64xbf16>
    %cst_25 = arith.constant dense<0.000000e+00> : vector<8x64xf32>
    %65 = tpu.matmul %64, %63, %cst_25 {dimension_numbers = #tpu.dot_dimension_numbers<[1], [0], [0], [1], [0, 0, 1, 1], [], []>} : vector<8x64xbf16>, vector<64x64xbf16>, vector<8x64xf32> -> vector<8x64xf32>
    %c0_26 = arith.constant 0 : index
    %c0_27 = arith.constant 0 : index
    %c0_28 = arith.constant 0 : index
    %66 = vector.load %arg6[%c0_26, %c0_27, %c0_28] : memref<1x1x64xf32, #tpu.memory_space<vmem>>, vector<1x1x64xf32>
    %67 = vector.shape_cast %66 : vector<1x1x64xf32> to vector<1x64xf32>
    %68 = vector.broadcast %67 : vector<1x64xf32> to vector<8x64xf32>
    %69 = arith.addf %65, %68 : vector<8x64xf32>
    %70 = arith.negf %69 : vector<8x64xf32>
    %71 = math.exp %70 : vector<8x64xf32>
    %cst_29 = arith.constant 1.000000e+00 : f32
    %72 = vector.broadcast %cst_29 : f32 to vector<8x64xf32>
    %73 = arith.addf %72, %71 : vector<8x64xf32>
    %74 = arith.divf %72, %73 : vector<8x64xf32>
    %75 = arith.mulf %69, %74 : vector<8x64xf32>
    %76 = arith.addf %41, %75 : vector<8x64xf32>
    %c0_30 = arith.constant 0 : index
    %c0_31 = arith.constant 0 : index
    %77 = vector.load %arg7[%c0_30, %c0_31] : memref<64x128xbf16, #tpu.memory_space<vmem>>, vector<64x128xbf16>
    %78 = arith.truncf %76 : vector<8x64xf32> to vector<8x64xbf16>
    %cst_32 = arith.constant dense<0.000000e+00> : vector<8x128xf32>
    %79 = tpu.matmul %78, %77, %cst_32 {dimension_numbers = #tpu.dot_dimension_numbers<[1], [0], [0], [1], [0, 0, 1, 1], [], []>} : vector<8x64xbf16>, vector<64x128xbf16>, vector<8x128xf32> -> vector<8x128xf32>
    %c0_33 = arith.constant 0 : index
    %c0_34 = arith.constant 0 : index
    %80 = vector.load %arg8[%c0_33, %c0_34] : memref<1x128xf32, #tpu.memory_space<vmem>>, vector<1x128xf32>
    %81 = vector.broadcast %80 : vector<1x128xf32> to vector<8x128xf32>
    %82 = arith.addf %79, %81 : vector<8x128xf32>
    %83 = vector.extract_strided_slice %82 {offsets = [0, 0], sizes = [8, 64], strides = [1, 1]} : vector<8x128xf32> to vector<8x64xf32>
    %c64_i32 = arith.constant 64 : i32
    %84 = tpu.dynamic_rotate %82 by %c64_i32 dim 1 : vector<8x128xf32>, i32 -> vector<8x128xf32>
    %85 = vector.extract_strided_slice %84 {offsets = [0, 0], sizes = [8, 64], strides = [1, 1]} : vector<8x128xf32> to vector<8x64xf32>
    %86 = math.exp %85 : vector<8x64xf32>
    %cst_35 = arith.constant 5.000000e-01 : f32
    %87 = vector.broadcast %cst_35 : f32 to vector<8x64xf32>
    %88 = arith.mulf %87, %85 : vector<8x64xf32>
    %89 = math.exp %88 : vector<8x64xf32>
    %c0_36 = arith.constant 0 : index
    %c0_37 = arith.constant 0 : index
    %90 = vector.load %arg2[%c0_36, %c0_37] : memref<8x64xf32, #tpu.memory_space<vmem>>, vector<8x64xf32>
    %91 = arith.mulf %90, %89 : vector<8x64xf32>
    %92 = arith.addf %83, %91 : vector<8x64xf32>
    %cst_38 = arith.constant 1.000000e+00 : f32
    %93 = vector.broadcast %cst_38 : f32 to vector<8x64xf32>
    %94 = arith.addf %93, %85 : vector<8x64xf32>
    %95 = arith.mulf %83, %83 : vector<8x64xf32>
    %96 = arith.subf %94, %95 : vector<8x64xf32>
    %97 = arith.subf %96, %86 : vector<8x64xf32>
    %cst_39 = arith.constant dense<0.000000e+00> : vector<8xf32>
    %98 = vector.multi_reduction <add>, %97, %cst_39 [1] : vector<8x64xf32> to vector<8xf32>
    %99 = vector.shape_cast %98 : vector<8xf32> to vector<8x1xf32>
    %100 = arith.addf %8, %99 : vector<8x1xf32>
    %c0_40 = arith.constant 0 : index
    %c0_41 = arith.constant 0 : index
    %c0_42 = arith.constant 0 : index
    %101 = vector.load %arg17[%c0_40, %c0_41, %c0_42] : memref<2x64x128xbf16, #tpu.memory_space<vmem>>, vector<1x64x128xbf16>
    %102 = vector.shape_cast %101 : vector<1x64x128xbf16> to vector<64x128xbf16>
    %103 = arith.truncf %92 : vector<8x64xf32> to vector<8x64xbf16>
    %cst_43 = arith.constant dense<0.000000e+00> : vector<8x128xf32>
    %104 = tpu.matmul %103, %102, %cst_43 {dimension_numbers = #tpu.dot_dimension_numbers<[1], [0], [0], [1], [0, 0, 1, 1], [], []>} : vector<8x64xbf16>, vector<64x128xbf16>, vector<8x128xf32> -> vector<8x128xf32>
    %c0_44 = arith.constant 0 : index
    %c0_45 = arith.constant 0 : index
    %c0_46 = arith.constant 0 : index
    %105 = vector.load %arg18[%c0_44, %c0_45, %c0_46] : memref<2x1x128xf32, #tpu.memory_space<vmem>>, vector<1x1x128xf32>
    %106 = vector.shape_cast %105 : vector<1x1x128xf32> to vector<1x128xf32>
    %107 = vector.broadcast %106 : vector<1x128xf32> to vector<8x128xf32>
    %108 = arith.addf %104, %107 : vector<8x128xf32>
    %109 = vector.broadcast %6 : vector<1x128xf32> to vector<8x128xf32>
    %110 = arith.mulf %108, %109 : vector<8x128xf32>
    %cst_47 = arith.constant dense<0.000000e+00> : vector<8xf32>
    %111 = vector.multi_reduction <add>, %110, %cst_47 [1] : vector<8x128xf32> to vector<8xf32>
    %112 = vector.shape_cast %111 : vector<8xf32> to vector<8x1xf32>
    %113 = vector.broadcast %7 : vector<1x1xf32> to vector<8x1xf32>
    %114 = arith.addf %112, %113 : vector<8x1xf32>
    %cst_48 = arith.constant 1.000000e+00 : f32
    %115 = vector.broadcast %cst_48 : f32 to vector<8x1xf32>
    %c0_49 = arith.constant 0 : index
    %c0_50 = arith.constant 0 : index
    %116 = vector.load %arg9[%c0_49, %c0_50] : memref<8x48xf32, #tpu.memory_space<vmem>>, vector<8x48xf32>
    %cst_51 = arith.constant dense<0.000000e+00> : vector<8xf32>
    %117 = vector.multi_reduction <add>, %116, %cst_51 [1] : vector<8x48xf32> to vector<8xf32>
    %118 = vector.shape_cast %117 : vector<8xf32> to vector<8x1xf32>
    %cst_52 = arith.constant 4.800000e+01 : f32
    %119 = vector.broadcast %cst_52 : f32 to vector<8x1xf32>
    %120 = arith.divf %118, %119 : vector<8x1xf32>
    %121 = vector.broadcast %120 : vector<8x1xf32> to vector<8x48xf32>
    %122 = arith.subf %116, %121 : vector<8x48xf32>
    %123 = vector.broadcast %120 : vector<8x1xf32> to vector<8x48xf32>
    %124 = arith.subf %116, %123 : vector<8x48xf32>
    %125 = arith.mulf %122, %124 : vector<8x48xf32>
    %cst_53 = arith.constant dense<0.000000e+00> : vector<8xf32>
    %126 = vector.multi_reduction <add>, %125, %cst_53 [1] : vector<8x48xf32> to vector<8xf32>
    %127 = vector.shape_cast %126 : vector<8xf32> to vector<8x1xf32>
    %cst_54 = arith.constant 4.800000e+01 : f32
    %128 = vector.broadcast %cst_54 : f32 to vector<8x1xf32>
    %129 = arith.divf %127, %128 : vector<8x1xf32>
    %130 = vector.broadcast %120 : vector<8x1xf32> to vector<8x48xf32>
    %131 = arith.subf %116, %130 : vector<8x48xf32>
    %cst_55 = arith.constant 9.99999974E-6 : f32
    %132 = vector.broadcast %cst_55 : f32 to vector<8x1xf32>
    %133 = arith.addf %129, %132 : vector<8x1xf32>
    %134 = math.rsqrt %133 : vector<8x1xf32>
    %135 = vector.broadcast %134 : vector<8x1xf32> to vector<8x48xf32>
    %136 = arith.mulf %131, %135 : vector<8x48xf32>
    %c0_56 = arith.constant 0 : index
    %c0_57 = arith.constant 0 : index
    %137 = vector.load %arg11[%c0_56, %c0_57] : memref<48x64xbf16, #tpu.memory_space<vmem>>, vector<48x64xbf16>
    %138 = arith.truncf %136 : vector<8x48xf32> to vector<8x48xbf16>
    %cst_58 = arith.constant dense<0.000000e+00> : vector<8x64xf32>
    %139 = tpu.matmul %138, %137, %cst_58 {dimension_numbers = #tpu.dot_dimension_numbers<[1], [0], [0], [1], [0, 0, 1, 1], [], []>} : vector<8x48xbf16>, vector<48x64xbf16>, vector<8x64xf32> -> vector<8x64xf32>
    %c0_59 = arith.constant 0 : index
    %c0_60 = arith.constant 0 : index
    %140 = vector.load %arg12[%c0_59, %c0_60] : memref<1x64xf32, #tpu.memory_space<vmem>>, vector<1x64xf32>
    %141 = vector.broadcast %140 : vector<1x64xf32> to vector<8x64xf32>
    %142 = arith.addf %139, %141 : vector<8x64xf32>
    %143 = arith.negf %142 : vector<8x64xf32>
    %144 = math.exp %143 : vector<8x64xf32>
    %cst_61 = arith.constant 1.000000e+00 : f32
    %145 = vector.broadcast %cst_61 : f32 to vector<8x64xf32>
    %146 = arith.addf %145, %144 : vector<8x64xf32>
    %147 = arith.divf %145, %146 : vector<8x64xf32>
    %148 = arith.mulf %142, %147 : vector<8x64xf32>
    %cst_62 = arith.constant dense<0.000000e+00> : vector<8xf32>
    %149 = vector.multi_reduction <add>, %148, %cst_62 [1] : vector<8x64xf32> to vector<8xf32>
    %150 = vector.shape_cast %149 : vector<8xf32> to vector<8x1xf32>
    %cst_63 = arith.constant 6.400000e+01 : f32
    %151 = vector.broadcast %cst_63 : f32 to vector<8x1xf32>
    %152 = arith.divf %150, %151 : vector<8x1xf32>
    %153 = vector.broadcast %152 : vector<8x1xf32> to vector<8x64xf32>
    %154 = arith.subf %148, %153 : vector<8x64xf32>
    %155 = vector.broadcast %152 : vector<8x1xf32> to vector<8x64xf32>
    %156 = arith.subf %148, %155 : vector<8x64xf32>
    %157 = arith.mulf %154, %156 : vector<8x64xf32>
    %cst_64 = arith.constant dense<0.000000e+00> : vector<8xf32>
    %158 = vector.multi_reduction <add>, %157, %cst_64 [1] : vector<8x64xf32> to vector<8xf32>
    %159 = vector.shape_cast %158 : vector<8xf32> to vector<8x1xf32>
    %cst_65 = arith.constant 6.400000e+01 : f32
    %160 = vector.broadcast %cst_65 : f32 to vector<8x1xf32>
    %161 = arith.divf %159, %160 : vector<8x1xf32>
    %162 = vector.broadcast %152 : vector<8x1xf32> to vector<8x64xf32>
    %163 = arith.subf %148, %162 : vector<8x64xf32>
    %cst_66 = arith.constant 9.99999974E-6 : f32
    %164 = vector.broadcast %cst_66 : f32 to vector<8x1xf32>
    %165 = arith.addf %161, %164 : vector<8x1xf32>
    %166 = math.rsqrt %165 : vector<8x1xf32>
    %167 = vector.broadcast %166 : vector<8x1xf32> to vector<8x64xf32>
    %168 = arith.mulf %163, %167 : vector<8x64xf32>
    %c0_67 = arith.constant 0 : index
    %c0_68 = arith.constant 0 : index
    %c0_69 = arith.constant 0 : index
    %169 = vector.load %arg13[%c0_67, %c0_68, %c0_69] : memref<1x64x64xbf16, #tpu.memory_space<vmem>>, vector<1x64x64xbf16>
    %170 = vector.shape_cast %169 : vector<1x64x64xbf16> to vector<64x64xbf16>
    %171 = arith.truncf %168 : vector<8x64xf32> to vector<8x64xbf16>
    %cst_70 = arith.constant dense<0.000000e+00> : vector<8x64xf32>
    %172 = tpu.matmul %171, %170, %cst_70 {dimension_numbers = #tpu.dot_dimension_numbers<[1], [0], [0], [1], [0, 0, 1, 1], [], []>} : vector<8x64xbf16>, vector<64x64xbf16>, vector<8x64xf32> -> vector<8x64xf32>
    %c0_71 = arith.constant 0 : index
    %c0_72 = arith.constant 0 : index
    %c0_73 = arith.constant 0 : index
    %173 = vector.load %arg14[%c0_71, %c0_72, %c0_73] : memref<1x1x64xf32, #tpu.memory_space<vmem>>, vector<1x1x64xf32>
    %174 = vector.shape_cast %173 : vector<1x1x64xf32> to vector<1x64xf32>
    %175 = vector.broadcast %174 : vector<1x64xf32> to vector<8x64xf32>
    %176 = arith.addf %172, %175 : vector<8x64xf32>
    %177 = arith.negf %176 : vector<8x64xf32>
    %178 = math.exp %177 : vector<8x64xf32>
    %cst_74 = arith.constant 1.000000e+00 : f32
    %179 = vector.broadcast %cst_74 : f32 to vector<8x64xf32>
    %180 = arith.addf %179, %178 : vector<8x64xf32>
    %181 = arith.divf %179, %180 : vector<8x64xf32>
    %182 = arith.mulf %176, %181 : vector<8x64xf32>
    %183 = arith.addf %148, %182 : vector<8x64xf32>
    %c0_75 = arith.constant 0 : index
    %c0_76 = arith.constant 0 : index
    %184 = vector.load %arg15[%c0_75, %c0_76] : memref<64x128xbf16, #tpu.memory_space<vmem>>, vector<64x128xbf16>
    %185 = arith.truncf %183 : vector<8x64xf32> to vector<8x64xbf16>
    %cst_77 = arith.constant dense<0.000000e+00> : vector<8x128xf32>
    %186 = tpu.matmul %185, %184, %cst_77 {dimension_numbers = #tpu.dot_dimension_numbers<[1], [0], [0], [1], [0, 0, 1, 1], [], []>} : vector<8x64xbf16>, vector<64x128xbf16>, vector<8x128xf32> -> vector<8x128xf32>
    %c0_78 = arith.constant 0 : index
    %c0_79 = arith.constant 0 : index
    %187 = vector.load %arg16[%c0_78, %c0_79] : memref<1x128xf32, #tpu.memory_space<vmem>>, vector<1x128xf32>
    %188 = vector.broadcast %187 : vector<1x128xf32> to vector<8x128xf32>
    %189 = arith.addf %186, %188 : vector<8x128xf32>
    %190 = vector.extract_strided_slice %189 {offsets = [0, 0], sizes = [8, 64], strides = [1, 1]} : vector<8x128xf32> to vector<8x64xf32>
    %c64_i32_80 = arith.constant 64 : i32
    %191 = tpu.dynamic_rotate %189 by %c64_i32_80 dim 1 : vector<8x128xf32>, i32 -> vector<8x128xf32>
    %192 = vector.extract_strided_slice %191 {offsets = [0, 0], sizes = [8, 64], strides = [1, 1]} : vector<8x128xf32> to vector<8x64xf32>
    %193 = math.exp %192 : vector<8x64xf32>
    %cst_81 = arith.constant 5.000000e-01 : f32
    %194 = vector.broadcast %cst_81 : f32 to vector<8x64xf32>
    %195 = arith.mulf %194, %192 : vector<8x64xf32>
    %196 = math.exp %195 : vector<8x64xf32>
    %c0_82 = arith.constant 0 : index
    %c0_83 = arith.constant 0 : index
    %197 = vector.load %arg10[%c0_82, %c0_83] : memref<8x64xf32, #tpu.memory_space<vmem>>, vector<8x64xf32>
    %198 = arith.mulf %197, %196 : vector<8x64xf32>
    %199 = arith.addf %190, %198 : vector<8x64xf32>
    %cst_84 = arith.constant 1.000000e+00 : f32
    %200 = vector.broadcast %cst_84 : f32 to vector<8x64xf32>
    %201 = arith.addf %200, %192 : vector<8x64xf32>
    %202 = arith.mulf %190, %190 : vector<8x64xf32>
    %203 = arith.subf %201, %202 : vector<8x64xf32>
    %204 = arith.subf %203, %193 : vector<8x64xf32>
    %cst_85 = arith.constant dense<0.000000e+00> : vector<8xf32>
    %205 = vector.multi_reduction <add>, %204, %cst_85 [1] : vector<8x64xf32> to vector<8xf32>
    %206 = vector.shape_cast %205 : vector<8xf32> to vector<8x1xf32>
    %207 = arith.addf %100, %206 : vector<8x1xf32>
    %c1 = arith.constant 1 : index
    %c0_86 = arith.constant 0 : index
    %c0_87 = arith.constant 0 : index
    %208 = vector.load %arg17[%c1, %c0_86, %c0_87] : memref<2x64x128xbf16, #tpu.memory_space<vmem>>, vector<1x64x128xbf16>
    %209 = vector.shape_cast %208 : vector<1x64x128xbf16> to vector<64x128xbf16>
    %210 = arith.truncf %199 : vector<8x64xf32> to vector<8x64xbf16>
    %cst_88 = arith.constant dense<0.000000e+00> : vector<8x128xf32>
    %211 = tpu.matmul %210, %209, %cst_88 {dimension_numbers = #tpu.dot_dimension_numbers<[1], [0], [0], [1], [0, 0, 1, 1], [], []>} : vector<8x64xbf16>, vector<64x128xbf16>, vector<8x128xf32> -> vector<8x128xf32>
    %c1_89 = arith.constant 1 : index
    %c0_90 = arith.constant 0 : index
    %c0_91 = arith.constant 0 : index
    %212 = vector.load %arg18[%c1_89, %c0_90, %c0_91] : memref<2x1x128xf32, #tpu.memory_space<vmem>>, vector<1x1x128xf32>
    %213 = vector.shape_cast %212 : vector<1x1x128xf32> to vector<1x128xf32>
    %214 = vector.broadcast %213 : vector<1x128xf32> to vector<8x128xf32>
    %215 = arith.addf %211, %214 : vector<8x128xf32>
    %216 = vector.broadcast %6 : vector<1x128xf32> to vector<8x128xf32>
    %217 = arith.mulf %215, %216 : vector<8x128xf32>
    %cst_92 = arith.constant dense<0.000000e+00> : vector<8xf32>
    %218 = vector.multi_reduction <add>, %217, %cst_92 [1] : vector<8x128xf32> to vector<8xf32>
    %219 = vector.shape_cast %218 : vector<8xf32> to vector<8x1xf32>
    %220 = vector.broadcast %7 : vector<1x1xf32> to vector<8x1xf32>
    %221 = arith.addf %219, %220 : vector<8x1xf32>
    %222 = arith.maximumf %114, %221 : vector<8x1xf32>
    %223 = arith.subf %114, %222 : vector<8x1xf32>
    %224 = math.exp %223 : vector<8x1xf32>
    %225 = arith.subf %221, %222 : vector<8x1xf32>
    %226 = math.exp %225 : vector<8x1xf32>
    %227 = arith.mulf %224, %115 : vector<8x1xf32>
    %228 = arith.addf %227, %226 : vector<8x1xf32>
    %229 = vector.broadcast %224 : vector<8x1xf32> to vector<8x128xf32>
    %230 = arith.mulf %229, %108 : vector<8x128xf32>
    %231 = vector.broadcast %226 : vector<8x1xf32> to vector<8x128xf32>
    %232 = arith.mulf %231, %215 : vector<8x128xf32>
    %233 = arith.addf %230, %232 : vector<8x128xf32>
    %234 = tpu.reciprocal %228 {approx = true} : vector<8x1xf32> -> vector<8x1xf32>
    %235 = vector.broadcast %234 : vector<8x1xf32> to vector<8x128xf32>
    %236 = arith.mulf %233, %235 : vector<8x128xf32>
    %c0_93 = arith.constant 0 : index
    %c0_94 = arith.constant 0 : index
    %237 = vector.load %arg21[%c0_93, %c0_94] : memref<8x128xf32, #tpu.memory_space<vmem>>, vector<8x128xf32>
    tpu.vector_store %arg21[%c0_93, %c0_94], %236 {strides = array<i32>} : memref<8x128xf32, #tpu.memory_space<vmem>>, vector<8x128xf32>,
    %238 = arith.subf %114, %222 : vector<8x1xf32>
    %239 = math.exp %238 : vector<8x1xf32>
    %240 = arith.mulf %239, %234 : vector<8x1xf32>
    %241 = arith.subf %221, %222 : vector<8x1xf32>
    %242 = math.exp %241 : vector<8x1xf32>
    %243 = arith.mulf %242, %234 : vector<8x1xf32>
    %cst_95 = arith.constant -3.906250e-03 : f32
    %244 = vector.broadcast %cst_95 : f32 to vector<8x1xf32>
    %245 = arith.mulf %244, %207 : vector<8x1xf32>
    %cst_96 = arith.constant 0.000000e+00 : f32
    %246 = vector.broadcast %cst_96 : f32 to vector<8x1xf32>
    %247 = arith.select %5, %245, %246 : vector<8x1xi1>, vector<8x1xf32>
    %248 = tpu.concatenate %240, %243, %247 in 1 : vector<8x1xf32>, vector<8x1xf32>, vector<8x1xf32> -> vector<8x3xf32>
    %c0_97 = arith.constant 0 : index
    %c0_98 = arith.constant 0 : index
    %249 = vector.load %arg22[%c0_97, %c0_98] : memref<8x3xf32, #tpu.memory_space<vmem>>, vector<8x3xf32>
    tpu.vector_store %arg22[%c0_97, %c0_98], %248 {strides = array<i32>} : memref<8x3xf32, #tpu.memory_space<vmem>>, vector<8x3xf32>,
    return
  }
  func.func @transform_0(%arg0: i32) -> (i32, i32) {
    %c0_i32 = arith.constant 0 : i32
    %c0_i32_0 = arith.constant 0 : i32
    return %arg0, %c0_i32 : i32, i32
  }
  func.func @transform_1(%arg0: i32) -> (i32, i32) {
    %c0_i32 = arith.constant 0 : i32
    %c0_i32_0 = arith.constant 0 : i32
    return %arg0, %c0_i32 : i32, i32
  }
  func.func @transform_2(%arg0: i32) -> (i32, i32) {
    %c0_i32 = arith.constant 0 : i32
    %c0_i32_0 = arith.constant 0 : i32
    %c0_i32_1 = arith.constant 0 : i32
    return %c0_i32, %c0_i32_0 : i32, i32
  }
  func.func @transform_3(%arg0: i32) -> (i32, i32) {
    %c0_i32 = arith.constant 0 : i32
    %c0_i32_0 = arith.constant 0 : i32
    %c0_i32_1 = arith.constant 0 : i32
    return %c0_i32, %c0_i32_0 : i32, i32
  }
  func.func @transform_4(%arg0: i32) -> (i32, i32, i32) {
    %c0_i32 = arith.constant 0 : i32
    %c0_i32_0 = arith.constant 0 : i32
    %c0_i32_1 = arith.constant 0 : i32
    %c0_i32_2 = arith.constant 0 : i32
    return %c0_i32, %c0_i32_0, %c0_i32_1 : i32, i32, i32
  }
  func.func @transform_5(%arg0: i32) -> (i32, i32, i32) {
    %c0_i32 = arith.constant 0 : i32
    %c0_i32_0 = arith.constant 0 : i32
    %c0_i32_1 = arith.constant 0 : i32
    %c0_i32_2 = arith.constant 0 : i32
    return %c0_i32, %c0_i32_0, %c0_i32_1 : i32, i32, i32
  }
  func.func @transform_6(%arg0: i32) -> (i32, i32) {
    %c0_i32 = arith.constant 0 : i32
    %c0_i32_0 = arith.constant 0 : i32
    %c0_i32_1 = arith.constant 0 : i32
    return %c0_i32, %c0_i32_0 : i32, i32
  }
  func.func @transform_7(%arg0: i32) -> (i32, i32) {
    %c0_i32 = arith.constant 0 : i32
    %c0_i32_0 = arith.constant 0 : i32
    %c0_i32_1 = arith.constant 0 : i32
    return %c0_i32, %c0_i32_0 : i32, i32
  }
  func.func @transform_8(%arg0: i32) -> (i32, i32) {
    %c0_i32 = arith.constant 0 : i32
    %c0_i32_0 = arith.constant 0 : i32
    return %arg0, %c0_i32 : i32, i32
  }
  func.func @transform_9(%arg0: i32) -> (i32, i32) {
    %c0_i32 = arith.constant 0 : i32
    %c0_i32_0 = arith.constant 0 : i32
    return %arg0, %c0_i32 : i32, i32
  }
  func.func @transform_10(%arg0: i32) -> (i32, i32) {
    %c0_i32 = arith.constant 0 : i32
    %c0_i32_0 = arith.constant 0 : i32
    %c0_i32_1 = arith.constant 0 : i32
    return %c0_i32, %c0_i32_0 : i32, i32
  }
  func.func @transform_11(%arg0: i32) -> (i32, i32) {
    %c0_i32 = arith.constant 0 : i32
    %c0_i32_0 = arith.constant 0 : i32
    %c0_i32_1 = arith.constant 0 : i32
    return %c0_i32, %c0_i32_0 : i32, i32
  }
  func.func @transform_12(%arg0: i32) -> (i32, i32, i32) {
    %c0_i32 = arith.constant 0 : i32
    %c0_i32_0 = arith.constant 0 : i32
    %c0_i32_1 = arith.constant 0 : i32
    %c0_i32_2 = arith.constant 0 : i32
    return %c0_i32, %c0_i32_0, %c0_i32_1 : i32, i32, i32
  }
  func.func @transform_13(%arg0: i32) -> (i32, i32, i32) {
    %c0_i32 = arith.constant 0 : i32
    %c0_i32_0 = arith.constant 0 : i32
    %c0_i32_1 = arith.constant 0 : i32
    %c0_i32_2 = arith.constant 0 : i32
    return %c0_i32, %c0_i32_0, %c0_i32_1 : i32, i32, i32
  }
  func.func @transform_14(%arg0: i32) -> (i32, i32) {
    %c0_i32 = arith.constant 0 : i32
    %c0_i32_0 = arith.constant 0 : i32
    %c0_i32_1 = arith.constant 0 : i32
    return %c0_i32, %c0_i32_0 : i32, i32
  }
  func.func @transform_15(%arg0: i32) -> (i32, i32) {
    %c0_i32 = arith.constant 0 : i32
    %c0_i32_0 = arith.constant 0 : i32
    %c0_i32_1 = arith.constant 0 : i32
    return %c0_i32, %c0_i32_0 : i32, i32
  }
  func.func @transform_16(%arg0: i32) -> (i32, i32, i32) {
    %c0_i32 = arith.constant 0 : i32
    %c0_i32_0 = arith.constant 0 : i32
    %c0_i32_1 = arith.constant 0 : i32
    %c0_i32_2 = arith.constant 0 : i32
    return %c0_i32, %c0_i32_0, %c0_i32_1 : i32, i32, i32
  }
  func.func @transform_17(%arg0: i32) -> (i32, i32, i32) {
    %c0_i32 = arith.constant 0 : i32
    %c0_i32_0 = arith.constant 0 : i32
    %c0_i32_1 = arith.constant 0 : i32
    %c0_i32_2 = arith.constant 0 : i32
    return %c0_i32, %c0_i32_0, %c0_i32_1 : i32, i32, i32
  }
  func.func @transform_18(%arg0: i32) -> (i32, i32) {
    %c0_i32 = arith.constant 0 : i32
    %c0_i32_0 = arith.constant 0 : i32
    %c0_i32_1 = arith.constant 0 : i32
    return %c0_i32, %c0_i32_0 : i32, i32
  }
  func.func @transform_19(%arg0: i32) -> (i32, i32) {
    %c0_i32 = arith.constant 0 : i32
    %c0_i32_0 = arith.constant 0 : i32
    %c0_i32_1 = arith.constant 0 : i32
    return %c0_i32, %c0_i32_0 : i32, i32
  }
  func.func @transform_20(%arg0: i32) -> (i32, i32) {
    %c0_i32 = arith.constant 0 : i32
    %c0_i32_0 = arith.constant 0 : i32
    return %arg0, %c0_i32 : i32, i32
  }
  func.func @transform_21(%arg0: i32) -> (i32, i32) {
    %c0_i32 = arith.constant 0 : i32
    %c0_i32_0 = arith.constant 0 : i32
    return %arg0, %c0_i32 : i32, i32
  }
}

module attributes {stable_mosaic.version = 11 : i64} {
  func.func @kernel(%arg0: i32, %arg1: memref<8x32xf32, #tpu.memory_space<vmem>>, %arg2: memref<8x64xf32, #tpu.memory_space<vmem>>, %arg3: memref<32x64xbf16, #tpu.memory_space<vmem>>, %arg4: memref<1x64xf32, #tpu.memory_space<vmem>>, %arg5: memref<1x64x64xbf16, #tpu.memory_space<vmem>>, %arg6: memref<1x1x64xf32, #tpu.memory_space<vmem>>, %arg7: memref<64x128xbf16, #tpu.memory_space<vmem>>, %arg8: memref<1x128xf32, #tpu.memory_space<vmem>>, %arg9: memref<8x48xf32, #tpu.memory_space<vmem>>, %arg10: memref<8x64xf32, #tpu.memory_space<vmem>>, %arg11: memref<48x64xbf16, #tpu.memory_space<vmem>>, %arg12: memref<1x64xf32, #tpu.memory_space<vmem>>, %arg13: memref<1x64x64xbf16, #tpu.memory_space<vmem>>, %arg14: memref<1x1x64xf32, #tpu.memory_space<vmem>>, %arg15: memref<64x128xbf16, #tpu.memory_space<vmem>>, %arg16: memref<1x128xf32, #tpu.memory_space<vmem>>, %arg17: memref<2x64x128xbf16, #tpu.memory_space<vmem>>, %arg18: memref<2x1x128xf32, #tpu.memory_space<vmem>>, %arg19: memref<1x128xf32, #tpu.memory_space<vmem>>, %arg20: memref<1x1xf32, #tpu.memory_space<vmem>>, %arg21: memref<8x128xf32, #tpu.memory_space<vmem>>, %arg22: memref<8x3xf32, #tpu.memory_space<vmem>>) attributes {dimension_semantics = [#tpu.dimension_semantics<parallel>], iteration_bounds = array<i64: 1>, scalar_prefetch = 0 : i64, scratch_operands = 0 : i64, tpu.core_type = #tpu.core_type<tc>, window_params = [{transform_indices = @transform_0, window_bounds = array<i64: 8, 32>}, {transform_indices = @transform_1, window_bounds = array<i64: 8, 64>}, {pipeline_mode = #tpu.pipeline_mode<synchronous>, transform_indices = @transform_2, window_bounds = array<i64: 32, 64>}, {pipeline_mode = #tpu.pipeline_mode<synchronous>, transform_indices = @transform_3, window_bounds = array<i64: 1, 64>}, {pipeline_mode = #tpu.pipeline_mode<synchronous>, transform_indices = @transform_4, window_bounds = array<i64: 1, 64, 64>}, {pipeline_mode = #tpu.pipeline_mode<synchronous>, transform_indices = @transform_5, window_bounds = array<i64: 1, 1, 64>}, {pipeline_mode = #tpu.pipeline_mode<synchronous>, transform_indices = @transform_6, window_bounds = array<i64: 64, 128>}, {pipeline_mode = #tpu.pipeline_mode<synchronous>, transform_indices = @transform_7, window_bounds = array<i64: 1, 128>}, {transform_indices = @transform_8, window_bounds = array<i64: 8, 48>}, {transform_indices = @transform_9, window_bounds = array<i64: 8, 64>}, {pipeline_mode = #tpu.pipeline_mode<synchronous>, transform_indices = @transform_10, window_bounds = array<i64: 48, 64>}, {pipeline_mode = #tpu.pipeline_mode<synchronous>, transform_indices = @transform_11, window_bounds = array<i64: 1, 64>}, {pipeline_mode = #tpu.pipeline_mode<synchronous>, transform_indices = @transform_12, window_bounds = array<i64: 1, 64, 64>}, {pipeline_mode = #tpu.pipeline_mode<synchronous>, transform_indices = @transform_13, window_bounds = array<i64: 1, 1, 64>}, {pipeline_mode = #tpu.pipeline_mode<synchronous>, transform_indices = @transform_14, window_bounds = array<i64: 64, 128>}, {pipeline_mode = #tpu.pipeline_mode<synchronous>, transform_indices = @transform_15, window_bounds = array<i64: 1, 128>}, {pipeline_mode = #tpu.pipeline_mode<synchronous>, transform_indices = @transform_16, window_bounds = array<i64: 2, 64, 128>}, {pipeline_mode = #tpu.pipeline_mode<synchronous>, transform_indices = @transform_17, window_bounds = array<i64: 2, 1, 128>}, {pipeline_mode = #tpu.pipeline_mode<synchronous>, transform_indices = @transform_18, window_bounds = array<i64: 1, 128>}, {pipeline_mode = #tpu.pipeline_mode<synchronous>, transform_indices = @transform_19, window_bounds = array<i64: 1, 1>}, {transform_indices = @transform_20, window_bounds = array<i64: 8, 128>}, {transform_indices = @transform_21, window_bounds = array<i64: 8, 3>}]} {
    %c8_i32 = arith.constant 8 : i32
    %0 = arith.muli %arg0, %c8_i32 : i32
    %1 = tpu.iota {dimensions = array<i32: 0>} : vector<8x1xi32>
    %2 = vector.broadcast %0 : i32 to vector<8x1xi32>
    %3 = arith.addi %2, %1 : vector<8x1xi32>
    %c8_i32_0 = arith.constant 8 : i32
    %4 = vector.broadcast %c8_i32_0 : i32 to vector<8x1xi32>
    %5 = arith.cmpi slt, %3, %4 : vector<8x1xi32>
    %c0 = arith.constant 0 : index
    %c0_1 = arith.constant 0 : index
    %6 = vector.load %arg19[%c0, %c0_1] : memref<1x128xf32, #tpu.memory_space<vmem>>, vector<1x128xf32>
    %c0_2 = arith.constant 0 : index
    %c0_3 = arith.constant 0 : index
    %7 = vector.load %arg20[%c0_2, %c0_3] : memref<1x1xf32, #tpu.memory_space<vmem>>, vector<1x1xf32>
    %cst = arith.constant 0.000000e+00 : f32
    %8 = vector.broadcast %cst : f32 to vector<8x1xf32>
    %c0_4 = arith.constant 0 : index
    %c0_5 = arith.constant 0 : index
    %9 = vector.load %arg1[%c0_4, %c0_5] : memref<8x32xf32, #tpu.memory_space<vmem>>, vector<8x32xf32>
    %cst_6 = arith.constant dense<0.000000e+00> : vector<8xf32>
    %10 = vector.multi_reduction <add>, %9, %cst_6 [1] : vector<8x32xf32> to vector<8xf32>
    %11 = vector.shape_cast %10 : vector<8xf32> to vector<8x1xf32>
    %cst_7 = arith.constant 3.200000e+01 : f32
    %12 = vector.broadcast %cst_7 : f32 to vector<8x1xf32>
    %13 = arith.divf %11, %12 : vector<8x1xf32>
    %14 = vector.broadcast %13 : vector<8x1xf32> to vector<8x32xf32>
    %15 = arith.subf %9, %14 : vector<8x32xf32>
    %16 = vector.broadcast %13 : vector<8x1xf32> to vector<8x32xf32>
    %17 = arith.subf %9, %16 : vector<8x32xf32>
    %18 = arith.mulf %15, %17 : vector<8x32xf32>
    %cst_8 = arith.constant dense<0.000000e+00> : vector<8xf32>
    %19 = vector.multi_reduction <add>, %18, %cst_8 [1] : vector<8x32xf32> to vector<8xf32>
    %20 = vector.shape_cast %19 : vector<8xf32> to vector<8x1xf32>
    %cst_9 = arith.constant 3.200000e+01 : f32
    %21 = vector.broadcast %cst_9 : f32 to vector<8x1xf32>
    %22 = arith.divf %20, %21 : vector<8x1xf32>
    %23 = vector.broadcast %13 : vector<8x1xf32> to vector<8x32xf32>
    %24 = arith.subf %9, %23 : vector<8x32xf32>
    %cst_10 = arith.constant 9.99999974E-6 : f32
    %25 = vector.broadcast %cst_10 : f32 to vector<8x1xf32>
    %26 = arith.addf %22, %25 : vector<8x1xf32>
    %27 = math.rsqrt %26 : vector<8x1xf32>
    %28 = vector.broadcast %27 : vector<8x1xf32> to vector<8x32xf32>
    %29 = arith.mulf %24, %28 : vector<8x32xf32>
    %c0_11 = arith.constant 0 : index
    %c0_12 = arith.constant 0 : index
    %30 = vector.load %arg3[%c0_11, %c0_12] : memref<32x64xbf16, #tpu.memory_space<vmem>>, vector<32x64xbf16>
    %31 = arith.truncf %29 : vector<8x32xf32> to vector<8x32xbf16>
    %cst_13 = arith.constant dense<0.000000e+00> : vector<8x64xf32>
    %32 = tpu.matmul %31, %30, %cst_13 {dimension_numbers = #tpu.dot_dimension_numbers<[1], [0], [0], [1], [0, 0, 1, 1], [], []>} : vector<8x32xbf16>, vector<32x64xbf16>, vector<8x64xf32> -> vector<8x64xf32>
    %c0_14 = arith.constant 0 : index
    %c0_15 = arith.constant 0 : index
    %33 = vector.load %arg4[%c0_14, %c0_15] : memref<1x64xf32, #tpu.memory_space<vmem>>, vector<1x64xf32>
    %34 = vector.broadcast %33 : vector<1x64xf32> to vector<8x64xf32>
    %35 = arith.addf %32, %34 : vector<8x64xf32>
    %36 = arith.negf %35 : vector<8x64xf32>
    %37 = math.exp %36 : vector<8x64xf32>
    %cst_16 = arith.constant 1.000000e+00 : f32
    %38 = vector.broadcast %cst_16 : f32 to vector<8x64xf32>
    %39 = arith.addf %38, %37 : vector<8x64xf32>
    %40 = arith.divf %38, %39 : vector<8x64xf32>
    %41 = arith.mulf %35, %40 : vector<8x64xf32>
    %cst_17 = arith.constant dense<0.000000e+00> : vector<8xf32>
    %42 = vector.multi_reduction <add>, %41, %cst_17 [1] : vector<8x64xf32> to vector<8xf32>
    %43 = vector.shape_cast %42 : vector<8xf32> to vector<8x1xf32>
    %cst_18 = arith.constant 6.400000e+01 : f32
    %44 = vector.broadcast %cst_18 : f32 to vector<8x1xf32>
    %45 = arith.divf %43, %44 : vector<8x1xf32>
    %46 = vector.broadcast %45 : vector<8x1xf32> to vector<8x64xf32>
    %47 = arith.subf %41, %46 : vector<8x64xf32>
    %48 = vector.broadcast %45 : vector<8x1xf32> to vector<8x64xf32>
    %49 = arith.subf %41, %48 : vector<8x64xf32>
    %50 = arith.mulf %47, %49 : vector<8x64xf32>
    %cst_19 = arith.constant dense<0.000000e+00> : vector<8xf32>
    %51 = vector.multi_reduction <add>, %50, %cst_19 [1] : vector<8x64xf32> to vector<8xf32>
    %52 = vector.shape_cast %51 : vector<8xf32> to vector<8x1xf32>
    %cst_20 = arith.constant 6.400000e+01 : f32
    %53 = vector.broadcast %cst_20 : f32 to vector<8x1xf32>
    %54 = arith.divf %52, %53 : vector<8x1xf32>
    %55 = vector.broadcast %45 : vector<8x1xf32> to vector<8x64xf32>
    %56 = arith.subf %41, %55 : vector<8x64xf32>
    %cst_21 = arith.constant 9.99999974E-6 : f32
    %57 = vector.broadcast %cst_21 : f32 to vector<8x1xf32>
    %58 = arith.addf %54, %57 : vector<8x1xf32>
    %59 = math.rsqrt %58 : vector<8x1xf32>
    %60 = vector.broadcast %59 : vector<8x1xf32> to vector<8x64xf32>
    %61 = arith.mulf %56, %60 : vector<8x64xf32>
    %c0_22 = arith.constant 0 : index
    %c0_23 = arith.constant 0 : index
    %c0_24 = arith.constant 0 : index
    %62 = vector.load %arg5[%c0_22, %c0_23, %c0_24] : memref<1x64x64xbf16, #tpu.memory_space<vmem>>, vector<1x64x64xbf16>
    %63 = vector.shape_cast %62 : vector<1x64x64xbf16> to vector<64x64xbf16>
    %64 = arith.truncf %61 : vector<8x64xf32> to vector<8x64xbf16>
    %cst_25 = arith.constant dense<0.000000e+00> : vector<8x64xf32>
    %65 = tpu.matmul %64, %63, %cst_25 {dimension_numbers = #tpu.dot_dimension_numbers<[1], [0], [0], [1], [0, 0, 1, 1], [], []>} : vector<8x64xbf16>, vector<64x64xbf16>, vector<8x64xf32> -> vector<8x64xf32>
    %c0_26 = arith.constant 0 : index
    %c0_27 = arith.constant 0 : index
    %c0_28 = arith.constant 0 : index
    %66 = vector.load %arg6[%c0_26, %c0_27, %c0_28] : memref<1x1x64xf32, #tpu.memory_space<vmem>>, vector<1x1x64xf32>
    %67 = vector.shape_cast %66 : vector<1x1x64xf32> to vector<1x64xf32>
    %68 = vector.broadcast %67 : vector<1x64xf32> to vector<8x64xf32>
    %69 = arith.addf %65, %68 : vector<8x64xf32>
    %70 = arith.negf %69 : vector<8x64xf32>
    %71 = math.exp %70 : vector<8x64xf32>
    %cst_29 = arith.constant 1.000000e+00 : f32
    %72 = vector.broadcast %cst_29 : f32 to vector<8x64xf32>
    %73 = arith.addf %72, %71 : vector<8x64xf32>
    %74 = arith.divf %72, %73 : vector<8x64xf32>
    %75 = arith.mulf %69, %74 : vector<8x64xf32>
    %76 = arith.addf %41, %75 : vector<8x64xf32>
    %c0_30 = arith.constant 0 : index
    %c0_31 = arith.constant 0 : index
    %77 = vector.load %arg7[%c0_30, %c0_31] : memref<64x128xbf16, #tpu.memory_space<vmem>>, vector<64x128xbf16>
    %78 = arith.truncf %76 : vector<8x64xf32> to vector<8x64xbf16>
    %cst_32 = arith.constant dense<0.000000e+00> : vector<8x128xf32>
    %79 = tpu.matmul %78, %77, %cst_32 {dimension_numbers = #tpu.dot_dimension_numbers<[1], [0], [0], [1], [0, 0, 1, 1], [], []>} : vector<8x64xbf16>, vector<64x128xbf16>, vector<8x128xf32> -> vector<8x128xf32>
    %c0_33 = arith.constant 0 : index
    %c0_34 = arith.constant 0 : index
    %80 = vector.load %arg8[%c0_33, %c0_34] : memref<1x128xf32, #tpu.memory_space<vmem>>, vector<1x128xf32>
    %81 = vector.broadcast %80 : vector<1x128xf32> to vector<8x128xf32>
    %82 = arith.addf %79, %81 : vector<8x128xf32>
    %83 = vector.extract_strided_slice %82 {offsets = [0, 0], sizes = [8, 64], strides = [1, 1]} : vector<8x128xf32> to vector<8x64xf32>
    %c64_i32 = arith.constant 64 : i32
    %84 = tpu.dynamic_rotate %82 by %c64_i32 dim 1 : vector<8x128xf32>, i32 -> vector<8x128xf32>
    %85 = vector.extract_strided_slice %84 {offsets = [0, 0], sizes = [8, 64], strides = [1, 1]} : vector<8x128xf32> to vector<8x64xf32>
    %86 = math.exp %85 : vector<8x64xf32>
    %cst_35 = arith.constant 5.000000e-01 : f32
    %87 = vector.broadcast %cst_35 : f32 to vector<8x64xf32>
    %88 = arith.mulf %87, %85 : vector<8x64xf32>
    %89 = math.exp %88 : vector<8x64xf32>
    %c0_36 = arith.constant 0 : index
    %c0_37 = arith.constant 0 : index
    %90 = vector.load %arg2[%c0_36, %c0_37] : memref<8x64xf32, #tpu.memory_space<vmem>>, vector<8x64xf32>
    %91 = arith.mulf %90, %89 : vector<8x64xf32>
    %92 = arith.addf %83, %91 : vector<8x64xf32>
    %cst_38 = arith.constant 1.000000e+00 : f32
    %93 = vector.broadcast %cst_38 : f32 to vector<8x64xf32>
    %94 = arith.addf %93, %85 : vector<8x64xf32>
    %95 = arith.mulf %83, %83 : vector<8x64xf32>
    %96 = arith.subf %94, %95 : vector<8x64xf32>
    %97 = arith.subf %96, %86 : vector<8x64xf32>
    %cst_39 = arith.constant dense<0.000000e+00> : vector<8xf32>
    %98 = vector.multi_reduction <add>, %97, %cst_39 [1] : vector<8x64xf32> to vector<8xf32>
    %99 = vector.shape_cast %98 : vector<8xf32> to vector<8x1xf32>
    %100 = arith.addf %8, %99 : vector<8x1xf32>
    %c0_40 = arith.constant 0 : index
    %c0_41 = arith.constant 0 : index
    %c0_42 = arith.constant 0 : index
    %101 = vector.load %arg17[%c0_40, %c0_41, %c0_42] : memref<2x64x128xbf16, #tpu.memory_space<vmem>>, vector<1x64x128xbf16>
    %102 = vector.shape_cast %101 : vector<1x64x128xbf16> to vector<64x128xbf16>
    %103 = arith.truncf %92 : vector<8x64xf32> to vector<8x64xbf16>
    %cst_43 = arith.constant dense<0.000000e+00> : vector<8x128xf32>
    %104 = tpu.matmul %103, %102, %cst_43 {dimension_numbers = #tpu.dot_dimension_numbers<[1], [0], [0], [1], [0, 0, 1, 1], [], []>} : vector<8x64xbf16>, vector<64x128xbf16>, vector<8x128xf32> -> vector<8x128xf32>
    %c0_44 = arith.constant 0 : index
    %c0_45 = arith.constant 0 : index
    %c0_46 = arith.constant 0 : index
    %105 = vector.load %arg18[%c0_44, %c0_45, %c0_46] : memref<2x1x128xf32, #tpu.memory_space<vmem>>, vector<1x1x128xf32>
    %106 = vector.shape_cast %105 : vector<1x1x128xf32> to vector<1x128xf32>
    %107 = vector.broadcast %106 : vector<1x128xf32> to vector<8x128xf32>
    %108 = arith.addf %104, %107 : vector<8x128xf32>
    %109 = vector.broadcast %6 : vector<1x128xf32> to vector<8x128xf32>
    %110 = arith.mulf %108, %109 : vector<8x128xf32>
    %cst_47 = arith.constant dense<0.000000e+00> : vector<8xf32>
    %111 = vector.multi_reduction <add>, %110, %cst_47 [1] : vector<8x128xf32> to vector<8xf32>
    %112 = vector.shape_cast %111 : vector<8xf32> to vector<8x1xf32>
    %113 = vector.broadcast %7 : vector<1x1xf32> to vector<8x1xf32>
    %114 = arith.addf %112, %113 : vector<8x1xf32>
    %cst_48 = arith.constant 1.000000e+00 : f32
    %115 = vector.broadcast %cst_48 : f32 to vector<8x1xf32>
    %c0_49 = arith.constant 0 : index
    %c0_50 = arith.constant 0 : index
    %116 = vector.load %arg9[%c0_49, %c0_50] : memref<8x48xf32, #tpu.memory_space<vmem>>, vector<8x48xf32>
    %cst_51 = arith.constant dense<0.000000e+00> : vector<8xf32>
    %117 = vector.multi_reduction <add>, %116, %cst_51 [1] : vector<8x48xf32> to vector<8xf32>
    %118 = vector.shape_cast %117 : vector<8xf32> to vector<8x1xf32>
    %cst_52 = arith.constant 4.800000e+01 : f32
    %119 = vector.broadcast %cst_52 : f32 to vector<8x1xf32>
    %120 = arith.divf %118, %119 : vector<8x1xf32>
    %121 = vector.broadcast %120 : vector<8x1xf32> to vector<8x48xf32>
    %122 = arith.subf %116, %121 : vector<8x48xf32>
    %123 = vector.broadcast %120 : vector<8x1xf32> to vector<8x48xf32>
    %124 = arith.subf %116, %123 : vector<8x48xf32>
    %125 = arith.mulf %122, %124 : vector<8x48xf32>
    %cst_53 = arith.constant dense<0.000000e+00> : vector<8xf32>
    %126 = vector.multi_reduction <add>, %125, %cst_53 [1] : vector<8x48xf32> to vector<8xf32>
    %127 = vector.shape_cast %126 : vector<8xf32> to vector<8x1xf32>
    %cst_54 = arith.constant 4.800000e+01 : f32
    %128 = vector.broadcast %cst_54 : f32 to vector<8x1xf32>
    %129 = arith.divf %127, %128 : vector<8x1xf32>
    %130 = vector.broadcast %120 : vector<8x1xf32> to vector<8x48xf32>
    %131 = arith.subf %116, %130 : vector<8x48xf32>
    %cst_55 = arith.constant 9.99999974E-6 : f32
    %132 = vector.broadcast %cst_55 : f32 to vector<8x1xf32>
    %133 = arith.addf %129, %132 : vector<8x1xf32>
    %134 = math.rsqrt %133 : vector<8x1xf32>
    %135 = vector.broadcast %134 : vector<8x1xf32> to vector<8x48xf32>
    %136 = arith.mulf %131, %135 : vector<8x48xf32>
    %c0_56 = arith.constant 0 : index
    %c0_57 = arith.constant 0 : index
    %137 = vector.load %arg11[%c0_56, %c0_57] : memref<48x64xbf16, #tpu.memory_space<vmem>>, vector<48x64xbf16>
    %138 = arith.truncf %136 : vector<8x48xf32> to vector<8x48xbf16>
    %cst_58 = arith.constant dense<0.000000e+00> : vector<8x64xf32>
    %139 = tpu.matmul %138, %137, %cst_58 {dimension_numbers = #tpu.dot_dimension_numbers<[1], [0], [0], [1], [0, 0, 1, 1], [], []>} : vector<8x48xbf16>, vector<48x64xbf16>, vector<8x64xf32> -> vector<8x64xf32>
    %c0_59 = arith.constant 0 : index
    %c0_60 = arith.constant 0 : index
    %140 = vector.load %arg12[%c0_59, %c0_60] : memref<1x64xf32, #tpu.memory_space<vmem>>, vector<1x64xf32>
    %141 = vector.broadcast %140 : vector<1x64xf32> to vector<8x64xf32>
    %142 = arith.addf %139, %141 : vector<8x64xf32>
    %143 = arith.negf %142 : vector<8x64xf32>
    %144 = math.exp %143 : vector<8x64xf32>
    %cst_61 = arith.constant 1.000000e+00 : f32
    %145 = vector.broadcast %cst_61 : f32 to vector<8x64xf32>
    %146 = arith.addf %145, %144 : vector<8x64xf32>
    %147 = arith.divf %145, %146 : vector<8x64xf32>
    %148 = arith.mulf %142, %147 : vector<8x64xf32>
    %cst_62 = arith.constant dense<0.000000e+00> : vector<8xf32>
    %149 = vector.multi_reduction <add>, %148, %cst_62 [1] : vector<8x64xf32> to vector<8xf32>
    %150 = vector.shape_cast %149 : vector<8xf32> to vector<8x1xf32>
    %cst_63 = arith.constant 6.400000e+01 : f32
    %151 = vector.broadcast %cst_63 : f32 to vector<8x1xf32>
    %152 = arith.divf %150, %151 : vector<8x1xf32>
    %153 = vector.broadcast %152 : vector<8x1xf32> to vector<8x64xf32>
    %154 = arith.subf %148, %153 : vector<8x64xf32>
    %155 = vector.broadcast %152 : vector<8x1xf32> to vector<8x64xf32>
    %156 = arith.subf %148, %155 : vector<8x64xf32>
    %157 = arith.mulf %154, %156 : vector<8x64xf32>
    %cst_64 = arith.constant dense<0.000000e+00> : vector<8xf32>
    %158 = vector.multi_reduction <add>, %157, %cst_64 [1] : vector<8x64xf32> to vector<8xf32>
    %159 = vector.shape_cast %158 : vector<8xf32> to vector<8x1xf32>
    %cst_65 = arith.constant 6.400000e+01 : f32
    %160 = vector.broadcast %cst_65 : f32 to vector<8x1xf32>
    %161 = arith.divf %159, %160 : vector<8x1xf32>
    %162 = vector.broadcast %152 : vector<8x1xf32> to vector<8x64xf32>
    %163 = arith.subf %148, %162 : vector<8x64xf32>
    %cst_66 = arith.constant 9.99999974E-6 : f32
    %164 = vector.broadcast %cst_66 : f32 to vector<8x1xf32>
    %165 = arith.addf %161, %164 : vector<8x1xf32>
    %166 = math.rsqrt %165 : vector<8x1xf32>
    %167 = vector.broadcast %166 : vector<8x1xf32> to vector<8x64xf32>
    %168 = arith.mulf %163, %167 : vector<8x64xf32>
    %c0_67 = arith.constant 0 : index
    %c0_68 = arith.constant 0 : index
    %c0_69 = arith.constant 0 : index
    %169 = vector.load %arg13[%c0_67, %c0_68, %c0_69] : memref<1x64x64xbf16, #tpu.memory_space<vmem>>, vector<1x64x64xbf16>
    %170 = vector.shape_cast %169 : vector<1x64x64xbf16> to vector<64x64xbf16>
    %171 = arith.truncf %168 : vector<8x64xf32> to vector<8x64xbf16>
    %cst_70 = arith.constant dense<0.000000e+00> : vector<8x64xf32>
    %172 = tpu.matmul %171, %170, %cst_70 {dimension_numbers = #tpu.dot_dimension_numbers<[1], [0], [0], [1], [0, 0, 1, 1], [], []>} : vector<8x64xbf16>, vector<64x64xbf16>, vector<8x64xf32> -> vector<8x64xf32>
    %c0_71 = arith.constant 0 : index
    %c0_72 = arith.constant 0 : index
    %c0_73 = arith.constant 0 : index
    %173 = vector.load %arg14[%c0_71, %c0_72, %c0_73] : memref<1x1x64xf32, #tpu.memory_space<vmem>>, vector<1x1x64xf32>
    %174 = vector.shape_cast %173 : vector<1x1x64xf32> to vector<1x64xf32>
    %175 = vector.broadcast %174 : vector<1x64xf32> to vector<8x64xf32>
    %176 = arith.addf %172, %175 : vector<8x64xf32>
    %177 = arith.negf %176 : vector<8x64xf32>
    %178 = math.exp %177 : vector<8x64xf32>
    %cst_74 = arith.constant 1.000000e+00 : f32
    %179 = vector.broadcast %cst_74 : f32 to vector<8x64xf32>
    %180 = arith.addf %179, %178 : vector<8x64xf32>
    %181 = arith.divf %179, %180 : vector<8x64xf32>
    %182 = arith.mulf %176, %181 : vector<8x64xf32>
    %183 = arith.addf %148, %182 : vector<8x64xf32>
    %c0_75 = arith.constant 0 : index
    %c0_76 = arith.constant 0 : index
    %184 = vector.load %arg15[%c0_75, %c0_76] : memref<64x128xbf16, #tpu.memory_space<vmem>>, vector<64x128xbf16>
    %185 = arith.truncf %183 : vector<8x64xf32> to vector<8x64xbf16>
    %cst_77 = arith.constant dense<0.000000e+00> : vector<8x128xf32>
    %186 = tpu.matmul %185, %184, %cst_77 {dimension_numbers = #tpu.dot_dimension_numbers<[1], [0], [0], [1], [0, 0, 1, 1], [], []>} : vector<8x64xbf16>, vector<64x128xbf16>, vector<8x128xf32> -> vector<8x128xf32>
    %c0_78 = arith.constant 0 : index
    %c0_79 = arith.constant 0 : index
    %187 = vector.load %arg16[%c0_78, %c0_79] : memref<1x128xf32, #tpu.memory_space<vmem>>, vector<1x128xf32>
    %188 = vector.broadcast %187 : vector<1x128xf32> to vector<8x128xf32>
    %189 = arith.addf %186, %188 : vector<8x128xf32>
    %190 = vector.extract_strided_slice %189 {offsets = [0, 0], sizes = [8, 64], strides = [1, 1]} : vector<8x128xf32> to vector<8x64xf32>
    %c64_i32_80 = arith.constant 64 : i32
    %191 = tpu.dynamic_rotate %189 by %c64_i32_80 dim 1 : vector<8x128xf32>, i32 -> vector<8x128xf32>
    %192 = vector.extract_strided_slice %191 {offsets = [0, 0], sizes = [8, 64], strides = [1, 1]} : vector<8x128xf32> to vector<8x64xf32>
    %193 = math.exp %192 : vector<8x64xf32>
    %cst_81 = arith.constant 5.000000e-01 : f32
    %194 = vector.broadcast %cst_81 : f32 to vector<8x64xf32>
    %195 = arith.mulf %194, %192 : vector<8x64xf32>
    %196 = math.exp %195 : vector<8x64xf32>
    %c0_82 = arith.constant 0 : index
    %c0_83 = arith.constant 0 : index
    %197 = vector.load %arg10[%c0_82, %c0_83] : memref<8x64xf32, #tpu.memory_space<vmem>>, vector<8x64xf32>
    %198 = arith.mulf %197, %196 : vector<8x64xf32>
    %199 = arith.addf %190, %198 : vector<8x64xf32>
    %cst_84 = arith.constant 1.000000e+00 : f32
    %200 = vector.broadcast %cst_84 : f32 to vector<8x64xf32>
    %201 = arith.addf %200, %192 : vector<8x64xf32>
    %202 = arith.mulf %190, %190 : vector<8x64xf32>
    %203 = arith.subf %201, %202 : vector<8x64xf32>
    %204 = arith.subf %203, %193 : vector<8x64xf32>
    %cst_85 = arith.constant dense<0.000000e+00> : vector<8xf32>
    %205 = vector.multi_reduction <add>, %204, %cst_85 [1] : vector<8x64xf32> to vector<8xf32>
    %206 = vector.shape_cast %205 : vector<8xf32> to vector<8x1xf32>
    %207 = arith.addf %100, %206 : vector<8x1xf32>
    %c1 = arith.constant 1 : index
    %c0_86 = arith.constant 0 : index
    %c0_87 = arith.constant 0 : index
    %208 = vector.load %arg17[%c1, %c0_86, %c0_87] : memref<2x64x128xbf16, #tpu.memory_space<vmem>>, vector<1x64x128xbf16>
    %209 = vector.shape_cast %208 : vector<1x64x128xbf16> to vector<64x128xbf16>
    %210 = arith.truncf %199 : vector<8x64xf32> to vector<8x64xbf16>
    %cst_88 = arith.constant dense<0.000000e+00> : vector<8x128xf32>
    %211 = tpu.matmul %210, %209, %cst_88 {dimension_numbers = #tpu.dot_dimension_numbers<[1], [0], [0], [1], [0, 0, 1, 1], [], []>} : vector<8x64xbf16>, vector<64x128xbf16>, vector<8x128xf32> -> vector<8x128xf32>
    %c1_89 = arith.constant 1 : index
    %c0_90 = arith.constant 0 : index
    %c0_91 = arith.constant 0 : index
    %212 = vector.load %arg18[%c1_89, %c0_90, %c0_91] : memref<2x1x128xf32, #tpu.memory_space<vmem>>, vector<1x1x128xf32>
    %213 = vector.shape_cast %212 : vector<1x1x128xf32> to vector<1x128xf32>
    %214 = vector.broadcast %213 : vector<1x128xf32> to vector<8x128xf32>
    %215 = arith.addf %211, %214 : vector<8x128xf32>
    %216 = vector.broadcast %6 : vector<1x128xf32> to vector<8x128xf32>
    %217 = arith.mulf %215, %216 : vector<8x128xf32>
    %cst_92 = arith.constant dense<0.000000e+00> : vector<8xf32>
    %218 = vector.multi_reduction <add>, %217, %cst_92 [1] : vector<8x128xf32> to vector<8xf32>
    %219 = vector.shape_cast %218 : vector<8xf32> to vector<8x1xf32>
    %220 = vector.broadcast %7 : vector<1x1xf32> to vector<8x1xf32>
    %221 = arith.addf %219, %220 : vector<8x1xf32>
    %222 = arith.maximumf %114, %221 : vector<8x1xf32>
    %223 = arith.subf %114, %222 : vector<8x1xf32>
    %224 = math.exp %223 : vector<8x1xf32>
    %225 = arith.subf %221, %222 : vector<8x1xf32>
    %226 = math.exp %225 : vector<8x1xf32>
    %227 = arith.mulf %224, %115 : vector<8x1xf32>
    %228 = arith.addf %227, %226 : vector<8x1xf32>
    %229 = vector.broadcast %224 : vector<8x1xf32> to vector<8x128xf32>
    %230 = arith.mulf %229, %108 : vector<8x128xf32>
    %231 = vector.broadcast %226 : vector<8x1xf32> to vector<8x128xf32>
    %232 = arith.mulf %231, %215 : vector<8x128xf32>
    %233 = arith.addf %230, %232 : vector<8x128xf32>
    %234 = tpu.reciprocal %228 {approx = true} : vector<8x1xf32> -> vector<8x1xf32>
    %235 = vector.broadcast %234 : vector<8x1xf32> to vector<8x128xf32>
    %236 = arith.mulf %233, %235 : vector<8x128xf32>
    %c0_93 = arith.constant 0 : index
    %c0_94 = arith.constant 0 : index
    %237 = vector.load %arg21[%c0_93, %c0_94] : memref<8x128xf32, #tpu.memory_space<vmem>>, vector<8x128xf32>
    tpu.vector_store %arg21[%c0_93, %c0_94], %236 {strides = array<i32>} : memref<8x128xf32, #tpu.memory_space<vmem>>, vector<8x128xf32>,
    %238 = arith.subf %114, %222 : vector<8x1xf32>
    %239 = math.exp %238 : vector<8x1xf32>
    %240 = arith.mulf %239, %234 : vector<8x1xf32>
    %241 = arith.subf %221, %222 : vector<8x1xf32>
    %242 = math.exp %241 : vector<8x1xf32>
    %243 = arith.mulf %242, %234 : vector<8x1xf32>
    %cst_95 = arith.constant -3.906250e-03 : f32
    %244 = vector.broadcast %cst_95 : f32 to vector<8x1xf32>
    %245 = arith.mulf %244, %207 : vector<8x1xf32>
    %cst_96 = arith.constant 0.000000e+00 : f32
    %246 = vector.broadcast %cst_96 : f32 to vector<8x1xf32>
    %247 = arith.select %5, %245, %246 : vector<8x1xi1>, vector<8x1xf32>
    %248 = tpu.concatenate %240, %243, %247 in 1 : vector<8x1xf32>, vector<8x1xf32>, vector<8x1xf32> -> vector<8x3xf32>
    %c0_97 = arith.constant 0 : index
    %c0_98 = arith.constant 0 : index
    %249 = vector.load %arg22[%c0_97, %c0_98] : memref<8x3xf32, #tpu.memory_space<vmem>>, vector<8x3xf32>
    tpu.vector_store %arg22[%c0_97, %c0_98], %248 {strides = array<i32>} : memref<8x3xf32, #tpu.memory_space<vmem>>, vector<8x3xf32>,
    return
  }
  func.func @transform_0(%arg0: i32) -> (i32, i32) {
    %c0_i32 = arith.constant 0 : i32
    %c0_i32_0 = arith.constant 0 : i32
    return %arg0, %c0_i32 : i32, i32
  }
  func.func @transform_1(%arg0: i32) -> (i32, i32) {
    %c0_i32 = arith.constant 0 : i32
    %c0_i32_0 = arith.constant 0 : i32
    return %arg0, %c0_i32 : i32, i32
  }
  func.func @transform_2(%arg0: i32) -> (i32, i32) {
    %c0_i32 = arith.constant 0 : i32
    %c0_i32_0 = arith.constant 0 : i32
    %c0_i32_1 = arith.constant 0 : i32
    return %c0_i32, %c0_i32_0 : i32, i32
  }
  func.func @transform_3(%arg0: i32) -> (i32, i32) {
    %c0_i32 = arith.constant 0 : i32
    %c0_i32_0 = arith.constant 0 : i32
    %c0_i32_1 = arith.constant 0 : i32
    return %c0_i32, %c0_i32_0 : i32, i32
  }
  func.func @transform_4(%arg0: i32) -> (i32, i32, i32) {
    %c0_i32 = arith.constant 0 : i32
    %c0_i32_0 = arith.constant 0 : i32
    %c0_i32_1 = arith.constant 0 : i32
    %c0_i32_2 = arith.constant 0 : i32
    return %c0_i32, %c0_i32_0, %c0_i32_1 : i32, i32, i32
  }
  func.func @transform_5(%arg0: i32) -> (i32, i32, i32) {
    %c0_i32 = arith.constant 0 : i32
    %c0_i32_0 = arith.constant 0 : i32
    %c0_i32_1 = arith.constant 0 : i32
    %c0_i32_2 = arith.constant 0 : i32
    return %c0_i32, %c0_i32_0, %c0_i32_1 : i32, i32, i32
  }
  func.func @transform_6(%arg0: i32) -> (i32, i32) {
    %c0_i32 = arith.constant 0 : i32
    %c0_i32_0 = arith.constant 0 : i32
    %c0_i32_1 = arith.constant 0 : i32
    return %c0_i32, %c0_i32_0 : i32, i32
  }
  func.func @transform_7(%arg0: i32) -> (i32, i32) {
    %c0_i32 = arith.constant 0 : i32
    %c0_i32_0 = arith.constant 0 : i32
    %c0_i32_1 = arith.constant 0 : i32
    return %c0_i32, %c0_i32_0 : i32, i32
  }
  func.func @transform_8(%arg0: i32) -> (i32, i32) {
    %c0_i32 = arith.constant 0 : i32
    %c0_i32_0 = arith.constant 0 : i32
    return %arg0, %c0_i32 : i32, i32
  }
  func.func @transform_9(%arg0: i32) -> (i32, i32) {
    %c0_i32 = arith.constant 0 : i32
    %c0_i32_0 = arith.constant 0 : i32
    return %arg0, %c0_i32 : i32, i32
  }
  func.func @transform_10(%arg0: i32) -> (i32, i32) {
    %c0_i32 = arith.constant 0 : i32
    %c0_i32_0 = arith.constant 0 : i32
    %c0_i32_1 = arith.constant 0 : i32
    return %c0_i32, %c0_i32_0 : i32, i32
  }
  func.func @transform_11(%arg0: i32) -> (i32, i32) {
    %c0_i32 = arith.constant 0 : i32
    %c0_i32_0 = arith.constant 0 : i32
    %c0_i32_1 = arith.constant 0 : i32
    return %c0_i32, %c0_i32_0 : i32, i32
  }
  func.func @transform_12(%arg0: i32) -> (i32, i32, i32) {
    %c0_i32 = arith.constant 0 : i32
    %c0_i32_0 = arith.constant 0 : i32
    %c0_i32_1 = arith.constant 0 : i32
    %c0_i32_2 = arith.constant 0 : i32
    return %c0_i32, %c0_i32_0, %c0_i32_1 : i32, i32, i32
  }
  func.func @transform_13(%arg0: i32) -> (i32, i32, i32) {
    %c0_i32 = arith.constant 0 : i32
    %c0_i32_0 = arith.constant 0 : i32
    %c0_i32_1 = arith.constant 0 : i32
    %c0_i32_2 = arith.constant 0 : i32
    return %c0_i32, %c0_i32_0, %c0_i32_1 : i32, i32, i32
  }
  func.func @transform_14(%arg0: i32) -> (i32, i32) {
    %c0_i32 = arith.constant 0 : i32
    %c0_i32_0 = arith.constant 0 : i32
    %c0_i32_1 = arith.constant 0 : i32
    return %c0_i32, %c0_i32_0 : i32, i32
  }
  func.func @transform_15(%arg0: i32) -> (i32, i32) {
    %c0_i32 = arith.constant 0 : i32
    %c0_i32_0 = arith.constant 0 : i32
    %c0_i32_1 = arith.constant 0 : i32
    return %c0_i32, %c0_i32_0 : i32, i32
  }
  func.func @transform_16(%arg0: i32) -> (i32, i32, i32) {
    %c0_i32 = arith.constant 0 : i32
    %c0_i32_0 = arith.constant 0 : i32
    %c0_i32_1 = arith.constant 0 : i32
    %c0_i32_2 = arith.constant 0 : i32
    return %c0_i32, %c0_i32_0, %c0_i32_1 : i32, i32, i32
  }
  func.func @transform_17(%arg0: i32) -> (i32, i32, i32) {
    %c0_i32 = arith.constant 0 : i32
    %c0_i32_0 = arith.constant 0 : i32
    %c0_i32_1 = arith.constant 0 : i32
    %c0_i32_2 = arith.constant 0 : i32
    return %c0_i32, %c0_i32_0, %c0_i32_1 : i32, i32, i32
  }
  func.func @transform_18(%arg0: i32) -> (i32, i32) {
    %c0_i32 = arith.constant 0 : i32
    %c0_i32_0 = arith.constant 0 : i32
    %c0_i32_1 = arith.constant 0 : i32
    return %c0_i32, %c0_i32_0 : i32, i32
  }
  func.func @transform_19(%arg0: i32) -> (i32, i32) {
    %c0_i32 = arith.constant 0 : i32
    %c0_i32_0 = arith.constant 0 : i32
    %c0_i32_1 = arith.constant 0 : i32
    return %c0_i32, %c0_i32_0 : i32, i32
  }
  func.func @transform_20(%arg0: i32) -> (i32, i32) {
    %c0_i32 = arith.constant 0 : i32
    %c0_i32_0 = arith.constant 0 : i32
    return %arg0, %c0_i32 : i32, i32
  }
  func.func @transform_21(%arg0: i32) -> (i32, i32) {
    %c0_i32 = arith.constant 0 : i32
    %c0_i32_0 = arith.constant 0 : i32
    return %arg0, %c0_i32 : i32, i32
  }
}

</mosaic_0001>

<llo_original>
// kernel: tpu_custom_call.1
$region0: #{tpu_custom_call.1}
  #allocation0 [shape = 'u32[]', space=smem, size = 0x4, offset = 0x4, fixed_abs, tag = 'smem constant byte address 0x4 - core index']
  #allocation1 [shape = 'u32[144,128]{1,0:T(1,128)}', space=vmem, size = 0x12000, scoped, tag = 'internal scratch']
  #allocation2 [shape = 'f32[1,1]{1,0:T(1,128)S(1)}', space=vmem, size = 0x200, scoped, tag = 'scoped memory for tpu_custom_call.1']
  %s0 = inlined_call_operand.hbm [shape: f32[8,32], index: 0, kind: input, shape index: {}]
  %s1 = inlined_call_operand.hbm [shape: f32[8,64], index: 1, kind: input, shape index: {}]
  %s2 = inlined_call_operand.hbm [shape: bf16[32,64], index: 2, kind: input, shape index: {}]
  %s3 = inlined_call_operand.hbm [shape: f32[1,64], index: 3, kind: input, shape index: {}]
  %s4 = inlined_call_operand.hbm [shape: bf16[1,64,64], index: 4, kind: input, shape index: {}]
  %s5 = inlined_call_operand.hbm [shape: f32[1,1,64], index: 5, kind: input, shape index: {}]
  %s6 = inlined_call_operand.hbm [shape: bf16[64,128], index: 6, kind: input, shape index: {}]
  %s7 = inlined_call_operand.hbm [shape: f32[1,128], index: 7, kind: input, shape index: {}]
  %s8 = inlined_call_operand.hbm [shape: f32[8,48], index: 8, kind: input, shape index: {}]
  %s9 = inlined_call_operand.hbm [shape: f32[8,64], index: 9, kind: input, shape index: {}]
  %s10 = inlined_call_operand.hbm [shape: bf16[48,64], index: 10, kind: input, shape index: {}]
  %s11 = inlined_call_operand.hbm [shape: f32[1,64], index: 11, kind: input, shape index: {}]
  %s12 = inlined_call_operand.hbm [shape: bf16[1,64,64], index: 12, kind: input, shape index: {}]
  %s13 = inlined_call_operand.hbm [shape: f32[1,1,64], index: 13, kind: input, shape index: {}]
  %s14 = inlined_call_operand.hbm [shape: bf16[64,128], index: 14, kind: input, shape index: {}]
  %s15 = inlined_call_operand.hbm [shape: f32[1,128], index: 15, kind: input, shape index: {}]
  %s16 = inlined_call_operand.vmem [shape: bf16[2,64,128], index: 16, kind: input, shape index: {}]
  %s17 = inlined_call_operand.vmem [shape: f32[2,1,128], index: 17, kind: input, shape index: {}]
  %s18 = inlined_call_operand.vmem [shape: f32[1,128], index: 18, kind: input, shape index: {}]
  %s19 = inlined_call_operand.<no memory space> [shape: f32[1,1], index: 19, kind: input, shape index: {}]
  %s20 = inlined_call_operand.hbm [shape: f32[8,128], index: 20, kind: output, shape index: {0}]
  %s21 = inlined_call_operand.vmem [shape: f32[8,3], index: 21, kind: output, shape index: {1}]
  %22 = xla_tuple %s20, %s21
  %s23 = sld [smem:[#allocation0]]
  $region162: #{tpu_custom_call.1} parent=0
    _
  %s25 = ssub.s32 1, %s23
  %s26 = scalar_select 0, %s25, %s23
  %v27 = vstv %s19
  %28 = vst [vmem:[#allocation2] sm:$0x1] %v27
  $region1: #{tpu_custom_call.1} parent=0
    #allocation3 [shape = 'u8[4096]{0}', space=vmem, size = 0x1000, scoped, tag = 'input window, operand 0, single buffered']
    #allocation4 [shape = 's32[1]{0}', space=sflag, size = 0x4, scoped, tag = 'scoped memory for tpu_custom_call.1']
    #allocation5 [shape = 's32[1]{0}', space=sflag, size = 0x4, scoped, tag = 'scoped memory for tpu_custom_call.1']
    #allocation6 [shape = 'u8[4096]{0}', space=vmem, size = 0x1000, scoped, tag = 'input window, operand 1, single buffered']
    #allocation7 [shape = 's32[1]{0}', space=sflag, size = 0x4, scoped, tag = 'scoped memory for tpu_custom_call.1']
    #allocation8 [shape = 'u8[8192]{0}', space=vmem, size = 0x2000, scoped, tag = 'input window, operand 2, single buffered']
    #allocation9 [shape = 'u8[512]{0}', space=vmem, size = 0x400, scoped, tag = 'input window, operand 3, single buffered']
    #allocation10 [shape = 's32[1]{0}', space=sflag, size = 0x4, scoped, tag = 'scoped memory for tpu_custom_call.1']
    #allocation11 [shape = 'u8[16384]{0}', space=vmem, size = 0x4000, scoped, tag = 'input window, operand 4, single buffered']
    #allocation12 [shape = 'u8[512]{0}', space=vmem, size = 0x400, scoped, tag = 'input window, operand 5, single buffered']
    #allocation13 [shape = 's32[1]{0}', space=sflag, size = 0x4, scoped, tag = 'scoped memory for tpu_custom_call.1']
    #allocation14 [shape = 'u8[16384]{0}', space=vmem, size = 0x4000, scoped, tag = 'input window, operand 6, single buffered']
    #allocation15 [shape = 'u8[512]{0}', space=vmem, size = 0x400, scoped, tag = 'input window, operand 7, single buffered']
    #allocation16 [shape = 's32[1]{0}', space=sflag, size = 0x4, scoped, tag = 'scoped memory for tpu_custom_call.1']
    #allocation17 [shape = 'u8[4096]{0}', space=vmem, size = 0x1000, scoped, tag = 'input window, operand 8, single buffered']
    #allocation18 [shape = 'u8[4096]{0}', space=vmem, size = 0x1000, scoped, tag = 'input window, operand 9, single buffered']
    #allocation19 [shape = 's32[1]{0}', space=sflag, size = 0x4, scoped, tag = 'scoped memory for tpu_custom_call.1']
    #allocation20 [shape = 'u8[12288]{0}', space=vmem, size = 0x3000, scoped, tag = 'input window, operand 10, single buffered']
    #allocation21 [shape = 'u8[512]{0}', space=vmem, size = 0x400, scoped, tag = 'input window, operand 11, single buffered']
    #allocation22 [shape = 's32[1]{0}', space=sflag, size = 0x4, scoped, tag = 'scoped memory for tpu_custom_call.1']
    #allocation23 [shape = 'u8[16384]{0}', space=vmem, size = 0x4000, scoped, tag = 'input window, operand 12, single buffered']
    #allocation24 [shape = 'u8[512]{0}', space=vmem, size = 0x400, scoped, tag = 'input window, operand 13, single buffered']
    #allocation25 [shape = 's32[1]{0}', space=sflag, size = 0x4, scoped, tag = 'scoped memory for tpu_custom_call.1']
    #allocation26 [shape = 'u8[16384]{0}', space=vmem, size = 0x4000, scoped, tag = 'input window, operand 14, single buffered']
    #allocation27 [shape = 'u8[512]{0}', space=vmem, size = 0x400, scoped, tag = 'input window, operand 15, single buffered']
    #allocation28 [shape = 's32[1]{0}', space=sflag, size = 0x4, scoped, tag = 'scoped memory for tpu_custom_call.1']
    #allocation29 [shape = 'u8[4096]{0}', space=vmem, size = 0x1000, scoped, tag = 'output window, operand 0, single buffered']
    %29 = vsyncpa [#allocation4], 0
    %30 = vsyncpa [#allocation7], 0
    %31 = vsyncpa [#allocation10], 0
    %32 = vsyncpa [#allocation13], 0
    %33 = vsyncpa [#allocation16], 0
    %34 = vsyncpa [#allocation19], 0
    %35 = vsyncpa [#allocation22], 0
    %36 = vsyncpa [#allocation25], 0
    %37 = vsyncpa [#allocation28], 0
    %38 = vsyncpa [#allocation5], 0
    // Predicated region
    $region2: #{tpu_custom_call.1} parent=1 // pred_check
      _
    $region3: #{tpu_custom_call.1} parent=1 // pred_check_branch
      %40 = sbr.rel (0) target = $region5
    $region4: #{tpu_custom_call.1} parent=1 // pred_region
      %s42 = ssub.s32 128, 128
      %43 = vsyncadd [#allocation4], %s42
      %s45 = sshll.u32 [#allocation3], 4
      %s46 = int_to_ptr.vmem [resolvable:$true] %s45
      %48 = dma.hbm_to_vmem [thread:$0]  %s0, 128, %s46, [#allocation4]
    $region5: #{tpu_custom_call.1} parent=1 // pred_fallthru
      _
    // Predicated region
    $region6: #{tpu_custom_call.1} parent=1 // pred_check
      _
    $region7: #{tpu_custom_call.1} parent=1 // pred_check_branch
      %50 = sbr.rel (0) target = $region9
    $region8: #{tpu_custom_call.1} parent=1 // pred_region
      %s52 = ssub.s32 128, 128
      %53 = vsyncadd [#allocation7], %s52
      %s55 = sshll.u32 [#allocation6], 4
      %s56 = int_to_ptr.vmem [resolvable:$true] %s55
      %58 = dma.hbm_to_vmem [thread:$0]  %s1, 128, %s56, [#allocation7]
    $region9: #{tpu_custom_call.1} parent=1 // pred_fallthru
      _
    // Predicated region
    $region10: #{tpu_custom_call.1} parent=1 // pred_check
      _
    $region11: #{tpu_custom_call.1} parent=1 // pred_check_branch
      %60 = sbr.rel (0) target = $region13
    $region12: #{tpu_custom_call.1} parent=1 // pred_region
      %s62 = ssub.s32 256, 256
      %63 = vsyncadd [#allocation7], %s62
      %s64 = sshll.u32 [#allocation8], 4
      %s65 = int_to_ptr.vmem [resolvable:$true] %s64
      %70 = dma.hbm_to_vmem [thread:$0]  %s2, 256, %s65, [#allocation7], 64, 64, 4
    $region13: #{tpu_custom_call.1} parent=1 // pred_fallthru
      _
    // Predicated region
    $region14: #{tpu_custom_call.1} parent=1 // pred_check
      _
    $region15: #{tpu_custom_call.1} parent=1 // pred_check_branch
      %72 = sbr.rel (0) target = $region17
    $region16: #{tpu_custom_call.1} parent=1 // pred_region
      %s74 = ssub.s32 16, 16
      %75 = vsyncadd [#allocation10], %s74
      %s77 = sshll.u32 [#allocation9], 4
      %s78 = int_to_ptr.vmem [resolvable:$true] %s77
      %80 = dma.hbm_to_vmem [thread:$0]  %s3, 16, %s78, [#allocation10]
    $region17: #{tpu_custom_call.1} parent=1 // pred_fallthru
      _
    // Predicated region
    $region18: #{tpu_custom_call.1} parent=1 // pred_check
      _
    $region19: #{tpu_custom_call.1} parent=1 // pred_check_branch
      %82 = sbr.rel (0) target = $region21
    $region20: #{tpu_custom_call.1} parent=1 // pred_region
      %s84 = ssub.s32 512, 512
      %85 = vsyncadd [#allocation10], %s84
      %s86 = sshll.u32 [#allocation11], 4
      %s87 = int_to_ptr.vmem [resolvable:$true] %s86
      %92 = dma.hbm_to_vmem [thread:$0]  %s4, 512, %s87, [#allocation10], 64, 64, 4
    $region21: #{tpu_custom_call.1} parent=1 // pred_fallthru
      _
    // Predicated region
    $region22: #{tpu_custom_call.1} parent=1 // pred_check
      _
    $region23: #{tpu_custom_call.1} parent=1 // pred_check_branch
      %94 = sbr.rel (0) target = $region25
    $region24: #{tpu_custom_call.1} parent=1 // pred_region
      %s96 = ssub.s32 16, 16
      %97 = vsyncadd [#allocation13], %s96
      %s99 = sshll.u32 [#allocation12], 4
      %s100 = int_to_ptr.vmem [resolvable:$true] %s99
      %102 = dma.hbm_to_vmem [thread:$0]  %s5, 16, %s100, [#allocation13]
    $region25: #{tpu_custom_call.1} parent=1 // pred_fallthru
      _
    // Predicated region
    $region26: #{tpu_custom_call.1} parent=1 // pred_check
      _
    $region27: #{tpu_custom_call.1} parent=1 // pred_check_branch
      %104 = sbr.rel (0) target = $region29
    $region28: #{tpu_custom_call.1} parent=1 // pred_region
      %s106 = ssub.s32 512, 512
      %107 = vsyncadd [#allocation13], %s106
      %s108 = sshll.u32 [#allocation14], 4
      %s109 = int_to_ptr.vmem [resolvable:$true] %s108
      %114 = dma.hbm_to_vmem [thread:$0]  %s6, 512, %s109, [#allocation13], 64, 64, 4
    $region29: #{tpu_custom_call.1} parent=1 // pred_fallthru
      _
    // Predicated region
    $region30: #{tpu_custom_call.1} parent=1 // pred_check
      _
    $region31: #{tpu_custom_call.1} parent=1 // pred_check_branch
      %116 = sbr.rel (0) target = $region33
    $region32: #{tpu_custom_call.1} parent=1 // pred_region
      %s118 = ssub.s32 16, 16
      %119 = vsyncadd [#allocation16], %s118
      %s121 = sshll.u32 [#allocation15], 4
      %s122 = int_to_ptr.vmem [resolvable:$true] %s121
      %124 = dma.hbm_to_vmem [thread:$0]  %s7, 16, %s122, [#allocation16]
    $region33: #{tpu_custom_call.1} parent=1 // pred_fallthru
      _
    // Predicated region
    $region34: #{tpu_custom_call.1} parent=1 // pred_check
      _
    $region35: #{tpu_custom_call.1} parent=1 // pred_check_branch
      %126 = sbr.rel (0) target = $region37
    $region36: #{tpu_custom_call.1} parent=1 // pred_region
      %s128 = ssub.s32 128, 128
      %129 = vsyncadd [#allocation16], %s128
      %s131 = sshll.u32 [#allocation17], 4
      %s132 = int_to_ptr.vmem [resolvable:$true] %s131
      %134 = dma.hbm_to_vmem [thread:$0]  %s8, 128, %s132, [#allocation16]
    $region37: #{tpu_custom_call.1} parent=1 // pred_fallthru
      _
    // Predicated region
    $region38: #{tpu_custom_call.1} parent=1 // pred_check
      _
    $region39: #{tpu_custom_call.1} parent=1 // pred_check_branch
      %136 = sbr.rel (0) target = $region41
    $region40: #{tpu_custom_call.1} parent=1 // pred_region
      %s138 = ssub.s32 128, 128
      %139 = vsyncadd [#allocation19], %s138
      %s141 = sshll.u32 [#allocation18], 4
      %s142 = int_to_ptr.vmem [resolvable:$true] %s141
      %144 = dma.hbm_to_vmem [thread:$0]  %s9, 128, %s142, [#allocation19]
    $region41: #{tpu_custom_call.1} parent=1 // pred_fallthru
      _
    // Predicated region
    $region42: #{tpu_custom_call.1} parent=1 // pred_check
      _
    $region43: #{tpu_custom_call.1} parent=1 // pred_check_branch
      %146 = sbr.rel (0) target = $region45
    $region44: #{tpu_custom_call.1} parent=1 // pred_region
      %s148 = ssub.s32 384, 384
      %149 = vsyncadd [#allocation19], %s148
      %s150 = sshll.u32 [#allocation20], 4
      %s151 = int_to_ptr.vmem [resolvable:$true] %s150
      %156 = dma.hbm_to_vmem [thread:$0]  %s10, 384, %s151, [#allocation19], 64, 64, 4
    $region45: #{tpu_custom_call.1} parent=1 // pred_fallthru
      _
    // Predicated region
    $region46: #{tpu_custom_call.1} parent=1 // pred_check
      _
    $region47: #{tpu_custom_call.1} parent=1 // pred_check_branch
      %158 = sbr.rel (0) target = $region49
    $region48: #{tpu_custom_call.1} parent=1 // pred_region
      %s160 = ssub.s32 16, 16
      %161 = vsyncadd [#allocation22], %s160
      %s163 = sshll.u32 [#allocation21], 4
      %s164 = int_to_ptr.vmem [resolvable:$true] %s163
      %166 = dma.hbm_to_vmem [thread:$0]  %s11, 16, %s164, [#allocation22]
    $region49: #{tpu_custom_call.1} parent=1 // pred_fallthru
      _
    // Predicated region
    $region50: #{tpu_custom_call.1} parent=1 // pred_check
      _
    $region51: #{tpu_custom_call.1} parent=1 // pred_check_branch
      %168 = sbr.rel (0) target = $region53
    $region52: #{tpu_custom_call.1} parent=1 // pred_region
      %s170 = ssub.s32 512, 512
      %171 = vsyncadd [#allocation22], %s170
      %s172 = sshll.u32 [#allocation23], 4
      %s173 = int_to_ptr.vmem [resolvable:$true] %s172
      %178 = dma.hbm_to_vmem [thread:$0]  %s12, 512, %s173, [#allocation22], 64, 64, 4
    $region53: #{tpu_custom_call.1} parent=1 // pred_fallthru
      _
    // Predicated region
    $region54: #{tpu_custom_call.1} parent=1 // pred_check
      _
    $region55: #{tpu_custom_call.1} parent=1 // pred_check_branch
      %180 = sbr.rel (0) target = $region57
    $region56: #{tpu_custom_call.1} parent=1 // pred_region
      %s182 = ssub.s32 16, 16
      %183 = vsyncadd [#allocation25], %s182
      %s185 = sshll.u32 [#allocation24], 4
      %s186 = int_to_ptr.vmem [resolvable:$true] %s185
      %188 = dma.hbm_to_vmem [thread:$0]  %s13, 16, %s186, [#allocation25]
    $region57: #{tpu_custom_call.1} parent=1 // pred_fallthru
      _
    // Predicated region
    $region58: #{tpu_custom_call.1} parent=1 // pred_check
      _
    $region59: #{tpu_custom_call.1} parent=1 // pred_check_branch
      %190 = sbr.rel (0) target = $region61
    $region60: #{tpu_custom_call.1} parent=1 // pred_region
      %s192 = ssub.s32 512, 512
      %193 = vsyncadd [#allocation25], %s192
      %s194 = sshll.u32 [#allocation26], 4
      %s195 = int_to_ptr.vmem [resolvable:$true] %s194
      %200 = dma.hbm_to_vmem [thread:$0]  %s14, 512, %s195, [#allocation25], 64, 64, 4
    $region61: #{tpu_custom_call.1} parent=1 // pred_fallthru
      _
    // Predicated region
    $region62: #{tpu_custom_call.1} parent=1 // pred_check
      _
    $region63: #{tpu_custom_call.1} parent=1 // pred_check_branch
      %202 = sbr.rel (0) target = $region65
    $region64: #{tpu_custom_call.1} parent=1 // pred_region
      %s204 = ssub.s32 16, 16
      %205 = vsyncadd [#allocation28], %s204
      %s207 = sshll.u32 [#allocation27], 4
      %s208 = int_to_ptr.vmem [resolvable:$true] %s207
      %210 = dma.hbm_to_vmem [thread:$0]  %s15, 16, %s208, [#allocation28]
    $region65: #{tpu_custom_call.1} parent=1 // pred_fallthru
      _
    // Predicated region
    $region66: #{tpu_custom_call.1} parent=1 // pred_check
      _
    $region67: #{tpu_custom_call.1} parent=1 // pred_check_branch
      %212 = sbr.rel (0) target = $region69
    $region68: #{tpu_custom_call.1} parent=1 // pred_region
      _
    $region69: #{tpu_custom_call.1} parent=1 // pred_fallthru
      _
    // Predicated region
    $region70: #{tpu_custom_call.1} parent=1 // pred_check
      _
    $region71: #{tpu_custom_call.1} parent=1 // pred_check_branch
      %214 = sbr.rel (0) target = $region73
    $region72: #{tpu_custom_call.1} parent=1 // pred_region
      _
    $region73: #{tpu_custom_call.1} parent=1 // pred_fallthru
      _
    // Predicated region
    $region74: #{tpu_custom_call.1} parent=1 // pred_check
      _
    $region75: #{tpu_custom_call.1} parent=1 // pred_check_branch
      %216 = sbr.rel (0) target = $region77
    $region76: #{tpu_custom_call.1} parent=1 // pred_region
      _
    $region77: #{tpu_custom_call.1} parent=1 // pred_fallthru
      _
    // Predicated region
    $region78: #{tpu_custom_call.1} parent=1 // pred_check
      _
    $region79: #{tpu_custom_call.1} parent=1 // pred_check_branch
      %218 = sbr.rel (0) target = $region81
    $region80: #{tpu_custom_call.1} parent=1 // pred_region
      _
    $region81: #{tpu_custom_call.1} parent=1 // pred_fallthru
      _
    // Predicated region
    $region82: #{tpu_custom_call.1} parent=1 // pred_check
      _
    $region83: #{tpu_custom_call.1} parent=1 // pred_check_branch
      %220 = sbr.rel (0) target = $region85
    $region84: #{tpu_custom_call.1} parent=1 // pred_region
      %221 = dma.done [#allocation4], 128
    $region85: #{tpu_custom_call.1} parent=1 // pred_fallthru
      _
    // Predicated region
    $region86: #{tpu_custom_call.1} parent=1 // pred_check
      _
    $region87: #{tpu_custom_call.1} parent=1 // pred_check_branch
      %223 = sbr.rel (0) target = $region89
    $region88: #{tpu_custom_call.1} parent=1 // pred_region
      %224 = dma.done [#allocation7], 128
    $region89: #{tpu_custom_call.1} parent=1 // pred_fallthru
      _
    // Predicated region
    $region90: #{tpu_custom_call.1} parent=1 // pred_check
      _
    $region91: #{tpu_custom_call.1} parent=1 // pred_check_branch
      %226 = sbr.rel (0) target = $region93
    $region92: #{tpu_custom_call.1} parent=1 // pred_region
      %227 = dma.done [#allocation7], 256
    $region93: #{tpu_custom_call.1} parent=1 // pred_fallthru
      _
    // Predicated region
    $region94: #{tpu_custom_call.1} parent=1 // pred_check
      _
    $region95: #{tpu_custom_call.1} parent=1 // pred_check_branch
      %229 = sbr.rel (0) target = $region97
    $region96: #{tpu_custom_call.1} parent=1 // pred_region
      %230 = dma.done [#allocation10], 16
    $region97: #{tpu_custom_call.1} parent=1 // pred_fallthru
      _
    // Predicated region
    $region98: #{tpu_custom_call.1} parent=1 // pred_check
      _
    $region99: #{tpu_custom_call.1} parent=1 // pred_check_branch
      %232 = sbr.rel (0) target = $region101
    $region100: #{tpu_custom_call.1} parent=1 // pred_region
      %233 = dma.done [#allocation10], 512
    $region101: #{tpu_custom_call.1} parent=1 // pred_fallthru
      _
    // Predicated region
    $region102: #{tpu_custom_call.1} parent=1 // pred_check
      _
    $region103: #{tpu_custom_call.1} parent=1 // pred_check_branch
      %235 = sbr.rel (0) target = $region105
    $region104: #{tpu_custom_call.1} parent=1 // pred_region
      %236 = dma.done [#allocation13], 16
    $region105: #{tpu_custom_call.1} parent=1 // pred_fallthru
      _
    // Predicated region
    $region106: #{tpu_custom_call.1} parent=1 // pred_check
      _
    $region107: #{tpu_custom_call.1} parent=1 // pred_check_branch
      %238 = sbr.rel (0) target = $region109
    $region108: #{tpu_custom_call.1} parent=1 // pred_region
      %239 = dma.done [#allocation13], 512
    $region109: #{tpu_custom_call.1} parent=1 // pred_fallthru
      _
    // Predicated region
    $region110: #{tpu_custom_call.1} parent=1 // pred_check
      _
    $region111: #{tpu_custom_call.1} parent=1 // pred_check_branch
      %241 = sbr.rel (0) target = $region113
    $region112: #{tpu_custom_call.1} parent=1 // pred_region
      %242 = dma.done [#allocation16], 16
    $region113: #{tpu_custom_call.1} parent=1 // pred_fallthru
      _
    // Predicated region
    $region114: #{tpu_custom_call.1} parent=1 // pred_check
      _
    $region115: #{tpu_custom_call.1} parent=1 // pred_check_branch
      %244 = sbr.rel (0) target = $region117
    $region116: #{tpu_custom_call.1} parent=1 // pred_region
      %245 = dma.done [#allocation16], 128
    $region117: #{tpu_custom_call.1} parent=1 // pred_fallthru
      _
    // Predicated region
    $region118: #{tpu_custom_call.1} parent=1 // pred_check
      _
    $region119: #{tpu_custom_call.1} parent=1 // pred_check_branch
      %247 = sbr.rel (0) target = $region121
    $region120: #{tpu_custom_call.1} parent=1 // pred_region
      %248 = dma.done [#allocation19], 128
    $region121: #{tpu_custom_call.1} parent=1 // pred_fallthru
      _
    // Predicated region
    $region122: #{tpu_custom_call.1} parent=1 // pred_check
      _
    $region123: #{tpu_custom_call.1} parent=1 // pred_check_branch
      %250 = sbr.rel (0) target = $region125
    $region124: #{tpu_custom_call.1} parent=1 // pred_region
      %251 = dma.done [#allocation19], 384
    $region125: #{tpu_custom_call.1} parent=1 // pred_fallthru
      _
    // Predicated region
    $region126: #{tpu_custom_call.1} parent=1 // pred_check
      _
    $region127: #{tpu_custom_call.1} parent=1 // pred_check_branch
      %253 = sbr.rel (0) target = $region129
    $region128: #{tpu_custom_call.1} parent=1 // pred_region
      %254 = dma.done [#allocation22], 16
    $region129: #{tpu_custom_call.1} parent=1 // pred_fallthru
      _
    // Predicated region
    $region130: #{tpu_custom_call.1} parent=1 // pred_check
      _
    $region131: #{tpu_custom_call.1} parent=1 // pred_check_branch
      %256 = sbr.rel (0) target = $region133
    $region132: #{tpu_custom_call.1} parent=1 // pred_region
      %257 = dma.done [#allocation22], 512
    $region133: #{tpu_custom_call.1} parent=1 // pred_fallthru
      _
    // Predicated region
    $region134: #{tpu_custom_call.1} parent=1 // pred_check
      _
    $region135: #{tpu_custom_call.1} parent=1 // pred_check_branch
      %259 = sbr.rel (0) target = $region137
    $region136: #{tpu_custom_call.1} parent=1 // pred_region
      %260 = dma.done [#allocation25], 16
    $region137: #{tpu_custom_call.1} parent=1 // pred_fallthru
      _
    // Predicated region
    $region138: #{tpu_custom_call.1} parent=1 // pred_check
      _
    $region139: #{tpu_custom_call.1} parent=1 // pred_check_branch
      %262 = sbr.rel (0) target = $region141
    $region140: #{tpu_custom_call.1} parent=1 // pred_region
      %263 = dma.done [#allocation25], 512
    $region141: #{tpu_custom_call.1} parent=1 // pred_fallthru
      _
    // Predicated region
    $region142: #{tpu_custom_call.1} parent=1 // pred_check
      _
    $region143: #{tpu_custom_call.1} parent=1 // pred_check_branch
      %265 = sbr.rel (0) target = $region145
    $region144: #{tpu_custom_call.1} parent=1 // pred_region
      %266 = dma.done [#allocation28], 16
    $region145: #{tpu_custom_call.1} parent=1 // pred_fallthru
      _
    %s268 = smul.u32 0, 8
    %v269 = vlaneseq
    %v270 = vshrl.u32 %v269, 7
    %v271 = vstv %s268
    %v272 = vadd.s32 %v271, %v270
    %vm273 = vcmp.lt.s32.totalorder %v272, 8
    %v274 = vld [vmem:[%s18] sm:$0x1]
    %v275 = vld [vmem:[#allocation2] sm:$0x1]
    %v276 = vld [vmem:[#allocation3] sm:$0xff]
    %vm277 = vcmask 261120
    %v278 = vsel %vm277, %v276, 0.0
    %279 = vadd.xlane.f32.xlu0 %v278
    %v280 = vpop.xlane.xlu0 %279
    %v281 = vrcp.pop 32.0
    %v282 = vmul.f32 %v280, %v281
    %v283 = vsub.f32 %v276, %v282
    %v284 = vmul.f32 %v283, %v283
    %v285 = vsel %vm277, %v284, 0.0
    %286 = vadd.xlane.f32.xlu0 %v285
    %v287 = vpop.xlane.xlu0 %286
    %v288 = vmul.f32 %v287, %v281
    %v289 = vadd.f32 %v288, 1e-05
    %v290 = vrsqrt.pop %v289
    %v291 = vmul.f32 %v283, %v290
    %v292 = vld [vmem:[#allocation8] sm:$0xf]
    %v293 = vld [vmem:[#allocation8 + $0x4] sm:$0xf]
    %v294 = vld [vmem:[#allocation8 + $0x8] sm:$0xf]
    %v295 = vld [vmem:[#allocation8 + $0xc] sm:$0xf]
    %v296 = vpack.c.bf16 %v291, %v291
    %v297 = vld [vmem:[#allocation9] sm:$0x1]
    %v299 = vlaneseq
    %v300 = vshrl.u32 %v299, 7
    %v301 = vsub.s32 0, %v300
    %v302 = vrot.slane %v297, %v301
    %v308 = vunpack.c.l.b16 %v292
    %v309 = vunpack.c.l.b16 %v293
    %v310 = vunpack.c.l.b16 %v294
    %v311 = vunpack.c.l.b16 %v295
    %v312 = vpack.c.b16 %v309, %v308
    %v313 = vpack.c.b16 %v311, %v310
    %v317 = vsel %vm277, %v296, 0
    %319 = vmatprep.subr.bf16.mxu0 0
    %320 = vmatpush1.bf16.msra.mxu0 %v312
    %321 = vmatprep.subr.bf16.mxu0 0
    %322 = vmatpush1.bf16.msra.mxu0 %v313
    %323 = vmatprep.subr.bf16.mxu0 0
    %324 = vmatpush1.bf16.msra.mxu0 0
    %325 = vmatprep.subr.bf16.mxu0 0
    %326 = vmatpush1.bf16.msra.mxu0 0
    %327 = vmatprep.subr.bf16.mxu0 0
    %328 = vmatpush1.bf16.msra.mxu0 0
    %329 = vmatprep.subr.bf16.mxu0 0
    %330 = vmatpush1.bf16.msra.mxu0 0
    %331 = vmatprep.subr.bf16.mxu0 0
    %332 = vmatpush1.bf16.msra.mxu0 0
    %333 = vmatprep.subr.bf16.mxu0 0
    %334 = vmatpush1.bf16.msra.mxu0 0
    %335 = vmatprep.subr.bf16.mxu0 0
    %336 = vmatpush1.bf16.msra.mxu0 0
    %337 = vmatprep.subr.bf16.mxu0 0
    %338 = vmatpush1.bf16.msra.mxu0 0
    %339 = vmatprep.subr.bf16.mxu0 0
    %340 = vmatpush1.bf16.msra.mxu0 0
    %341 = vmatprep.subr.bf16.mxu0 0
    %342 = vmatpush1.bf16.msra.mxu0 0
    %343 = vmatprep.subr.bf16.mxu0 0
    %344 = vmatpush1.bf16.msra.mxu0 0
    %345 = vmatprep.subr.bf16.mxu0 0
    %346 = vmatpush1.bf16.msra.mxu0 0
    %347 = vmatprep.subr.bf16.mxu0 0
    %348 = vmatpush1.bf16.msra.mxu0 0
    %349 = vmatprep.subr.bf16.mxu0 0
    %350 = vmatpush1.bf16.msra.mxu0 0
    %351 = vmatprep.mubr.bf16.mxu0 0
    %352 = vmatmul.mubr.bf16.gmra.mrb[0].mxu0 %v317
    %v353 = vpop.f32.mrb[0].mxu0
    %v354 = vadd.f32 %v302, %v353
    %v355 = vpop.f32.mrb[0].mxu0
    %v356 = vpop.f32.mrb[0].mxu0
    %v357 = vpop.f32.mrb[0].mxu0
    %358 = vdwg.mxu0
    %v359 = vxor.u32 %v354, 2147483648
    %v360 = vmul.f32 %v359, 1.442695
    %v361 = vpow.pop %v360
    %v362 = vadd.f32 %v361, 1.0
    %v363 = vrcp.pop %v362
    %v364 = vmul.f32 1.0, %v363
    %v365 = vmul.f32 %v354, %v364
    %vm366 = vcmask 523264
    %v367 = vsel %vm366, %v365, 0.0
    %368 = vadd.xlane.f32.xlu0 %v367
    %v369 = vpop.xlane.xlu0 %368
    %v370 = vrcp.pop 64.0
    %v371 = vmul.f32 %v369, %v370
    %v372 = vsub.f32 %v365, %v371
    %v373 = vmul.f32 %v372, %v372
    %v374 = vsel %vm366, %v373, 0.0
    %375 = vadd.xlane.f32.xlu0 %v374
    %v376 = vpop.xlane.xlu0 %375
    %v377 = vmul.f32 %v376, %v370
    %v378 = vadd.f32 %v377, 1e-05
    %v379 = vrsqrt.pop %v378
    %v380 = vmul.f32 %v372, %v379
    %v381 = vld [vmem:[#allocation11] sm:$0xf]
    %v382 = vld [vmem:[#allocation11 + $0x4] sm:$0xf]
    %v383 = vld [vmem:[#allocation11 + $0x8] sm:$0xf]
    %v384 = vld [vmem:[#allocation11 + $0xc] sm:$0xf]
    %v385 = vld [vmem:[#allocation11 + $0x10] sm:$0xf]
    %v386 = vld [vmem:[#allocation11 + $0x14] sm:$0xf]
    %v387 = vld [vmem:[#allocation11 + $0x18] sm:$0xf]
    %v388 = vld [vmem:[#allocation11 + $0x1c] sm:$0xf]
    %v389 = vpack.c.bf16 %v380, %v380
    %v390 = vld [vmem:[#allocation12] sm:$0x1]
    %v392 = vlaneseq
    %v393 = vshrl.u32 %v392, 7
    %v394 = vsub.s32 0, %v393
    %v395 = vrot.slane %v390, %v394
    %v405 = vunpack.c.l.b16 %v381
    %v406 = vunpack.c.l.b16 %v382
    %v407 = vunpack.c.l.b16 %v383
    %v408 = vunpack.c.l.b16 %v384
    %v409 = vunpack.c.l.b16 %v385
    %v410 = vunpack.c.l.b16 %v386
    %v411 = vunpack.c.l.b16 %v387
    %v412 = vunpack.c.l.b16 %v388
    %v413 = vpack.c.b16 %v406, %v405
    %v414 = vpack.c.b16 %v408, %v407
    %v415 = vpack.c.b16 %v410, %v409
    %v416 = vpack.c.b16 %v412, %v411
    %v422 = vsel %vm366, %v389, 0
    %424 = vmatprep.subr.bf16.mxu0 0
    %425 = vmatpush1.bf16.msra.mxu0 %v413
    %426 = vmatprep.subr.bf16.mxu0 0
    %427 = vmatpush1.bf16.msra.mxu0 %v414
    %428 = vmatprep.subr.bf16.mxu0 0
    %429 = vmatpush1.bf16.msra.mxu0 %v415
    %430 = vmatprep.subr.bf16.mxu0 0
    %431 = vmatpush1.bf16.msra.mxu0 %v416
    %432 = vmatprep.subr.bf16.mxu0 0
    %433 = vmatpush1.bf16.msra.mxu0 0
    %434 = vmatprep.subr.bf16.mxu0 0
    %435 = vmatpush1.bf16.msra.mxu0 0
    %436 = vmatprep.subr.bf16.mxu0 0
    %437 = vmatpush1.bf16.msra.mxu0 0
    %438 = vmatprep.subr.bf16.mxu0 0
    %439 = vmatpush1.bf16.msra.mxu0 0
    %440 = vmatprep.subr.bf16.mxu0 0
    %441 = vmatpush1.bf16.msra.mxu0 0
    %442 = vmatprep.subr.bf16.mxu0 0
    %443 = vmatpush1.bf16.msra.mxu0 0
    %444 = vmatprep.subr.bf16.mxu0 0
    %445 = vmatpush1.bf16.msra.mxu0 0
    %446 = vmatprep.subr.bf16.mxu0 0
    %447 = vmatpush1.bf16.msra.mxu0 0
    %448 = vmatprep.subr.bf16.mxu0 0
    %449 = vmatpush1.bf16.msra.mxu0 0
    %450 = vmatprep.subr.bf16.mxu0 0
    %451 = vmatpush1.bf16.msra.mxu0 0
    %452 = vmatprep.subr.bf16.mxu0 0
    %453 = vmatpush1.bf16.msra.mxu0 0
    %454 = vmatprep.subr.bf16.mxu0 0
    %455 = vmatpush1.bf16.msra.mxu0 0
    %456 = vmatprep.mubr.bf16.mxu0 0
    %457 = vmatmul.mubr.bf16.gmra.mrb[0].mxu0 %v422
    %v458 = vpop.f32.mrb[0].mxu0
    %v459 = vadd.f32 %v395, %v458
    %v460 = vpop.f32.mrb[0].mxu0
    %v461 = vpop.f32.mrb[0].mxu0
    %v462 = vpop.f32.mrb[0].mxu0
    %463 = vdwg.mxu0
    %v464 = vxor.u32 %v459, 2147483648
    %v465 = vmul.f32 %v464, 1.442695
    %v466 = vpow.pop %v465
    %v467 = vadd.f32 %v466, 1.0
    %v468 = vrcp.pop %v467
    %v469 = vmul.f32 1.0, %v468
    %v470 = vmul.f32 %v459, %v469
    %v471 = vadd.f32 %v365, %v470
    %v472 = vld [vmem:[#allocation14] sm:$0xf]
    %v473 = vld [vmem:[#allocation14 + $0x4] sm:$0xf]
    %v474 = vld [vmem:[#allocation14 + $0x8] sm:$0xf]
    %v475 = vld [vmem:[#allocation14 + $0xc] sm:$0xf]
    %v476 = vld [vmem:[#allocation14 + $0x10] sm:$0xf]
    %v477 = vld [vmem:[#allocation14 + $0x14] sm:$0xf]
    %v478 = vld [vmem:[#allocation14 + $0x18] sm:$0xf]
    %v479 = vld [vmem:[#allocation14 + $0x1c] sm:$0xf]
    %v480 = vpack.c.bf16 %v471, %v471
    %v481 = vld [vmem:[#allocation15] sm:$0x1]
    %v483 = vlaneseq
    %v484 = vshrl.u32 %v483, 7
    %v485 = vsub.s32 0, %v484
    %v486 = vrot.slane %v481, %v485
    %v496 = vunpack.c.l.b16 %v472
    %v497 = vunpack.c.l.b16 %v473
    %v498 = vunpack.c.l.b16 %v474
    %v499 = vunpack.c.l.b16 %v475
    %v500 = vunpack.c.l.b16 %v476
    %v501 = vunpack.c.l.b16 %v477
    %v502 = vunpack.c.l.b16 %v478
    %v503 = vunpack.c.l.b16 %v479
    %v504 = vpack.c.b16 %v497, %v496
    %v505 = vpack.c.b16 %v499, %v498
    %v506 = vpack.c.b16 %v501, %v500
    %v507 = vpack.c.b16 %v503, %v502
    %v513 = vsel %vm366, %v480, 0
    %515 = vmatprep.subr.bf16.mxu0 0
    %516 = vmatpush1.bf16.msra.mxu0 %v504
    %517 = vmatprep.subr.bf16.mxu0 0
    %518 = vmatpush1.bf16.msra.mxu0 %v505
    %519 = vmatprep.subr.bf16.mxu0 0
    %520 = vmatpush1.bf16.msra.mxu0 %v506
    %521 = vmatprep.subr.bf16.mxu0 0
    %522 = vmatpush1.bf16.msra.mxu0 %v507
    %523 = vmatprep.subr.bf16.mxu0 0
    %524 = vmatpush1.bf16.msra.mxu0 0
    %525 = vmatprep.subr.bf16.mxu0 0
    %526 = vmatpush1.bf16.msra.mxu0 0
    %527 = vmatprep.subr.bf16.mxu0 0
    %528 = vmatpush1.bf16.msra.mxu0 0
    %529 = vmatprep.subr.bf16.mxu0 0
    %530 = vmatpush1.bf16.msra.mxu0 0
    %531 = vmatprep.subr.bf16.mxu0 0
    %532 = vmatpush1.bf16.msra.mxu0 0
    %533 = vmatprep.subr.bf16.mxu0 0
    %534 = vmatpush1.bf16.msra.mxu0 0
    %535 = vmatprep.subr.bf16.mxu0 0
    %536 = vmatpush1.bf16.msra.mxu0 0
    %537 = vmatprep.subr.bf16.mxu0 0
    %538 = vmatpush1.bf16.msra.mxu0 0
    %539 = vmatprep.subr.bf16.mxu0 0
    %540 = vmatpush1.bf16.msra.mxu0 0
    %541 = vmatprep.subr.bf16.mxu0 0
    %542 = vmatpush1.bf16.msra.mxu0 0
    %543 = vmatprep.subr.bf16.mxu0 0
    %544 = vmatpush1.bf16.msra.mxu0 0
    %545 = vmatprep.subr.bf16.mxu0 0
    %546 = vmatpush1.bf16.msra.mxu0 0
    %547 = vmatprep.mubr.bf16.mxu0 0
    %548 = vmatmul.mubr.bf16.gmra.mrb[0].mxu0 %v513
    %v549 = vpop.f32.mrb[0].mxu0
    %v550 = vadd.f32 %v486, %v549
    %v551 = vpop.f32.mrb[0].mxu0
    %v552 = vpop.f32.mrb[0].mxu0
    %v553 = vpop.f32.mrb[0].mxu0
    %554 = vdwg.mxu0
    %555 = vrot.lane.b32.xlu0 %v550, 64
    %v556 = vpop.permute.xlu0 %555
    %v557 = vmul.f32 %v556, 1.442695
    %v558 = vpow.pop %v557
    %v559 = vmul.f32 %v556, 0.5
    %v560 = vmul.f32 %v559, 1.442695
    %v561 = vpow.pop %v560
    %v562 = vld [vmem:[#allocation6] sm:$0xff]
    %v563 = vmul.f32 %v562, %v561
    %v564 = vadd.f32 %v550, %v563
    %v565 = vadd.f32 %v556, 1.0
    %v566 = vmul.f32 %v550, %v550
    %v567 = vsub.f32 %v565, %v566
    %v568 = vsub.f32 %v567, %v558
    %v569 = vsel %vm366, %v568, 0.0
    %570 = vadd.xlane.f32.xlu0 %v569
    %v571 = vpop.xlane.xlu0 %570
    %v572 = vadd.f32 %v571, 0.0
    %v573 = vld [vmem:[%s16] sm:$0xf]
    %v574 = vld [vmem:[%s16 + $0x4] sm:$0xf]
    %v575 = vld [vmem:[%s16 + $0x8] sm:$0xf]
    %v576 = vld [vmem:[%s16 + $0xc] sm:$0xf]
    %v577 = vld [vmem:[%s16 + $0x10] sm:$0xf]
    %v578 = vld [vmem:[%s16 + $0x14] sm:$0xf]
    %v579 = vld [vmem:[%s16 + $0x18] sm:$0xf]
    %v580 = vld [vmem:[%s16 + $0x1c] sm:$0xf]
    %v581 = vpack.c.bf16 %v564, %v564
    %v582 = vld [vmem:[%s17] sm:$0x1]
    %v584 = vlaneseq
    %v585 = vshrl.u32 %v584, 7
    %v586 = vsub.s32 0, %v585
    %v587 = vrot.slane %v582, %v586
    %v597 = vunpack.c.l.b16 %v573
    %v598 = vunpack.c.l.b16 %v574
    %v599 = vunpack.c.l.b16 %v575
    %v600 = vunpack.c.l.b16 %v576
    %v601 = vunpack.c.l.b16 %v577
    %v602 = vunpack.c.l.b16 %v578
    %v603 = vunpack.c.l.b16 %v579
    %v604 = vunpack.c.l.b16 %v580
    %v605 = vpack.c.b16 %v598, %v597
    %v606 = vpack.c.b16 %v600, %v599
    %v607 = vpack.c.b16 %v602, %v601
    %v608 = vpack.c.b16 %v604, %v603
    %v614 = vsel %vm366, %v581, 0
    %616 = vmatprep.subr.bf16.mxu0 0
    %617 = vmatpush1.bf16.msra.mxu0 %v605
    %618 = vmatprep.subr.bf16.mxu0 0
    %619 = vmatpush1.bf16.msra.mxu0 %v606
    %620 = vmatprep.subr.bf16.mxu0 0
    %621 = vmatpush1.bf16.msra.mxu0 %v607
    %622 = vmatprep.subr.bf16.mxu0 0
    %623 = vmatpush1.bf16.msra.mxu0 %v608
    %624 = vmatprep.subr.bf16.mxu0 0
    %625 = vmatpush1.bf16.msra.mxu0 0
    %626 = vmatprep.subr.bf16.mxu0 0
    %627 = vmatpush1.bf16.msra.mxu0 0
    %628 = vmatprep.subr.bf16.mxu0 0
    %629 = vmatpush1.bf16.msra.mxu0 0
    %630 = vmatprep.subr.bf16.mxu0 0
    %631 = vmatpush1.bf16.msra.mxu0 0
    %632 = vmatprep.subr.bf16.mxu0 0
    %633 = vmatpush1.bf16.msra.mxu0 0
    %634 = vmatprep.subr.bf16.mxu0 0
    %635 = vmatpush1.bf16.msra.mxu0 0
    %636 = vmatprep.subr.bf16.mxu0 0
    %637 = vmatpush1.bf16.msra.mxu0 0
    %638 = vmatprep.subr.bf16.mxu0 0
    %639 = vmatpush1.bf16.msra.mxu0 0
    %640 = vmatprep.subr.bf16.mxu0 0
    %641 = vmatpush1.bf16.msra.mxu0 0
    %642 = vmatprep.subr.bf16.mxu0 0
    %643 = vmatpush1.bf16.msra.mxu0 0
    %644 = vmatprep.subr.bf16.mxu0 0
    %645 = vmatpush1.bf16.msra.mxu0 0
    %646 = vmatprep.subr.bf16.mxu0 0
    %647 = vmatpush1.bf16.msra.mxu0 0
    %648 = vmatprep.mubr.bf16.mxu0 0
    %649 = vmatmul.mubr.bf16.gmra.mrb[0].mxu0 %v614
    %v650 = vpop.f32.mrb[0].mxu0
    %v651 = vadd.f32 %v587, %v650
    %v652 = vpop.f32.mrb[0].mxu0
    %v653 = vpop.f32.mrb[0].mxu0
    %v654 = vpop.f32.mrb[0].mxu0
    %655 = vdwg.mxu0
    %v657 = vlaneseq
    %v658 = vshrl.u32 %v657, 7
    %v659 = vsub.s32 0, %v658
    %v660 = vrot.slane %v274, %v659
    %v662 = vmul.f32 %v651, %v660
    %663 = vadd.xlane.f32.xlu0 %v662
    %v664 = vpop.xlane.xlu0 %663
    %v666 = vlaneseq
    %v667 = vshrl.u32 %v666, 7
    %v668 = vsub.s32 0, %v667
    %v669 = vrot.slane %v275, %v668
    %v671 = vadd.f32 %v664, %v669
    %v672 = vld [vmem:[#allocation17] sm:$0xff]
    %vm673 = vcmask 392192
    %v674 = vsel %vm673, %v672, 0.0
    %675 = vadd.xlane.f32.xlu0 %v674
    %v676 = vpop.xlane.xlu0 %675
    %v677 = vrcp.pop 48.0
    %v678 = vmul.f32 %v676, %v677
    %v679 = vsub.f32 %v672, %v678
    %v680 = vmul.f32 %v679, %v679
    %v681 = vsel %vm673, %v680, 0.0
    %682 = vadd.xlane.f32.xlu0 %v681
    %v683 = vpop.xlane.xlu0 %682
    %v684 = vmul.f32 %v683, %v677
    %v685 = vadd.f32 %v684, 1e-05
    %v686 = vrsqrt.pop %v685
    %v687 = vmul.f32 %v679, %v686
    %v688 = vld [vmem:[#allocation20] sm:$0xf]
    %v689 = vld [vmem:[#allocation20 + $0x4] sm:$0xf]
    %v690 = vld [vmem:[#allocation20 + $0x8] sm:$0xf]
    %v691 = vld [vmem:[#allocation20 + $0xc] sm:$0xf]
    %v692 = vld [vmem:[#allocation20 + $0x10] sm:$0xf]
    %v693 = vld [vmem:[#allocation20 + $0x14] sm:$0xf]
    %v694 = vpack.c.bf16 %v687, %v687
    %v695 = vld [vmem:[#allocation21] sm:$0x1]
    %v697 = vlaneseq
    %v698 = vshrl.u32 %v697, 7
    %v699 = vsub.s32 0, %v698
    %v700 = vrot.slane %v695, %v699
    %v708 = vunpack.c.l.b16 %v688
    %v709 = vunpack.c.l.b16 %v689
    %v710 = vunpack.c.l.b16 %v690
    %v711 = vunpack.c.l.b16 %v691
    %v712 = vunpack.c.l.b16 %v692
    %v713 = vunpack.c.l.b16 %v693
    %v714 = vpack.c.b16 %v709, %v708
    %v715 = vpack.c.b16 %v711, %v710
    %v716 = vpack.c.b16 %v713, %v712
    %v721 = vsel %vm673, %v694, 0
    %723 = vmatprep.subr.bf16.mxu0 0
    %724 = vmatpush1.bf16.msra.mxu0 %v714
    %725 = vmatprep.subr.bf16.mxu0 0
    %726 = vmatpush1.bf16.msra.mxu0 %v715
    %727 = vmatprep.subr.bf16.mxu0 0
    %728 = vmatpush1.bf16.msra.mxu0 %v716
    %729 = vmatprep.subr.bf16.mxu0 0
    %730 = vmatpush1.bf16.msra.mxu0 0
    %731 = vmatprep.subr.bf16.mxu0 0
    %732 = vmatpush1.bf16.msra.mxu0 0
    %733 = vmatprep.subr.bf16.mxu0 0
    %734 = vmatpush1.bf16.msra.mxu0 0
    %735 = vmatprep.subr.bf16.mxu0 0
    %736 = vmatpush1.bf16.msra.mxu0 0
    %737 = vmatprep.subr.bf16.mxu0 0
    %738 = vmatpush1.bf16.msra.mxu0 0
    %739 = vmatprep.subr.bf16.mxu0 0
    %740 = vmatpush1.bf16.msra.mxu0 0
    %741 = vmatprep.subr.bf16.mxu0 0
    %742 = vmatpush1.bf16.msra.mxu0 0
    %743 = vmatprep.subr.bf16.mxu0 0
    %744 = vmatpush1.bf16.msra.mxu0 0
    %745 = vmatprep.subr.bf16.mxu0 0
    %746 = vmatpush1.bf16.msra.mxu0 0
    %747 = vmatprep.subr.bf16.mxu0 0
    %748 = vmatpush1.bf16.msra.mxu0 0
    %749 = vmatprep.subr.bf16.mxu0 0
    %750 = vmatpush1.bf16.msra.mxu0 0
    %751 = vmatprep.subr.bf16.mxu0 0
    %752 = vmatpush1.bf16.msra.mxu0 0
    %753 = vmatprep.subr.bf16.mxu0 0
    %754 = vmatpush1.bf16.msra.mxu0 0
    %755 = vmatprep.mubr.bf16.mxu0 0
    %756 = vmatmul.mubr.bf16.gmra.mrb[0].mxu0 %v721
    %v757 = vpop.f32.mrb[0].mxu0
    %v758 = vadd.f32 %v700, %v757
    %v759 = vpop.f32.mrb[0].mxu0
    %v760 = vpop.f32.mrb[0].mxu0
    %v761 = vpop.f32.mrb[0].mxu0
    %762 = vdwg.mxu0
    %v763 = vxor.u32 %v758, 2147483648
    %v764 = vmul.f32 %v763, 1.442695
    %v765 = vpow.pop %v764
    %v766 = vadd.f32 %v765, 1.0
    %v767 = vrcp.pop %v766
    %v768 = vmul.f32 1.0, %v767
    %v769 = vmul.f32 %v758, %v768
    %v770 = vsel %vm366, %v769, 0.0
    %771 = vadd.xlane.f32.xlu0 %v770
    %v772 = vpop.xlane.xlu0 %771
    %v773 = vmul.f32 %v772, %v370
    %v774 = vsub.f32 %v769, %v773
    %v775 = vmul.f32 %v774, %v774
    %v776 = vsel %vm366, %v775, 0.0
    %777 = vadd.xlane.f32.xlu0 %v776
    %v778 = vpop.xlane.xlu0 %777
    %v779 = vmul.f32 %v778, %v370
    %v780 = vadd.f32 %v779, 1e-05
    %v781 = vrsqrt.pop %v780
    %v782 = vmul.f32 %v774, %v781
    %v783 = vld [vmem:[#allocation23] sm:$0xf]
    %v784 = vld [vmem:[#allocation23 + $0x4] sm:$0xf]
    %v785 = vld [vmem:[#allocation23 + $0x8] sm:$0xf]
    %v786 = vld [vmem:[#allocation23 + $0xc] sm:$0xf]
    %v787 = vld [vmem:[#allocation23 + $0x10] sm:$0xf]
    %v788 = vld [vmem:[#allocation23 + $0x14] sm:$0xf]
    %v789 = vld [vmem:[#allocation23 + $0x18] sm:$0xf]
    %v790 = vld [vmem:[#allocation23 + $0x1c] sm:$0xf]
    %v791 = vpack.c.bf16 %v782, %v782
    %v792 = vld [vmem:[#allocation24] sm:$0x1]
    %v794 = vlaneseq
    %v795 = vshrl.u32 %v794, 7
    %v796 = vsub.s32 0, %v795
    %v797 = vrot.slane %v792, %v796
    %v807 = vunpack.c.l.b16 %v783
    %v808 = vunpack.c.l.b16 %v784
    %v809 = vunpack.c.l.b16 %v785
    %v810 = vunpack.c.l.b16 %v786
    %v811 = vunpack.c.l.b16 %v787
    %v812 = vunpack.c.l.b16 %v788
    %v813 = vunpack.c.l.b16 %v789
    %v814 = vunpack.c.l.b16 %v790
    %v815 = vpack.c.b16 %v808, %v807
    %v816 = vpack.c.b16 %v810, %v809
    %v817 = vpack.c.b16 %v812, %v811
    %v818 = vpack.c.b16 %v814, %v813
    %v824 = vsel %vm366, %v791, 0
    %826 = vmatprep.subr.bf16.mxu0 0
    %827 = vmatpush1.bf16.msra.mxu0 %v815
    %828 = vmatprep.subr.bf16.mxu0 0
    %829 = vmatpush1.bf16.msra.mxu0 %v816
    %830 = vmatprep.subr.bf16.mxu0 0
    %831 = vmatpush1.bf16.msra.mxu0 %v817
    %832 = vmatprep.subr.bf16.mxu0 0
    %833 = vmatpush1.bf16.msra.mxu0 %v818
    %834 = vmatprep.subr.bf16.mxu0 0
    %835 = vmatpush1.bf16.msra.mxu0 0
    %836 = vmatprep.subr.bf16.mxu0 0
    %837 = vmatpush1.bf16.msra.mxu0 0
    %838 = vmatprep.subr.bf16.mxu0 0
    %839 = vmatpush1.bf16.msra.mxu0 0
    %840 = vmatprep.subr.bf16.mxu0 0
    %841 = vmatpush1.bf16.msra.mxu0 0
    %842 = vmatprep.subr.bf16.mxu0 0
    %843 = vmatpush1.bf16.msra.mxu0 0
    %844 = vmatprep.subr.bf16.mxu0 0
    %845 = vmatpush1.bf16.msra.mxu0 0
    %846 = vmatprep.subr.bf16.mxu0 0
    %847 = vmatpush1.bf16.msra.mxu0 0
    %848 = vmatprep.subr.bf16.mxu0 0
    %849 = vmatpush1.bf16.msra.mxu0 0
    %850 = vmatprep.subr.bf16.mxu0 0
    %851 = vmatpush1.bf16.msra.mxu0 0
    %852 = vmatprep.subr.bf16.mxu0 0
    %853 = vmatpush1.bf16.msra.mxu0 0
    %854 = vmatprep.subr.bf16.mxu0 0
    %855 = vmatpush1.bf16.msra.mxu0 0
    %856 = vmatprep.subr.bf16.mxu0 0
    %857 = vmatpush1.bf16.msra.mxu0 0
    %858 = vmatprep.mubr.bf16.mxu0 0
    %859 = vmatmul.mubr.bf16.gmra.mrb[0].mxu0 %v824
    %v860 = vpop.f32.mrb[0].mxu0
    %v861 = vadd.f32 %v797, %v860
    %v862 = vpop.f32.mrb[0].mxu0
    %v863 = vpop.f32.mrb[0].mxu0
    %v864 = vpop.f32.mrb[0].mxu0
    %865 = vdwg.mxu0
    %v866 = vxor.u32 %v861, 2147483648
    %v867 = vmul.f32 %v866, 1.442695
    %v868 = vpow.pop %v867
    %v869 = vadd.f32 %v868, 1.0
    %v870 = vrcp.pop %v869
    %v871 = vmul.f32 1.0, %v870
    %v872 = vmul.f32 %v861, %v871
    %v873 = vadd.f32 %v769, %v872
    %v874 = vld [vmem:[#allocation26] sm:$0xf]
    %v875 = vld [vmem:[#allocation26 + $0x4] sm:$0xf]
    %v876 = vld [vmem:[#allocation26 + $0x8] sm:$0xf]
    %v877 = vld [vmem:[#allocation26 + $0xc] sm:$0xf]
    %v878 = vld [vmem:[#allocation26 + $0x10] sm:$0xf]
    %v879 = vld [vmem:[#allocation26 + $0x14] sm:$0xf]
    %v880 = vld [vmem:[#allocation26 + $0x18] sm:$0xf]
    %v881 = vld [vmem:[#allocation26 + $0x1c] sm:$0xf]
    %v882 = vpack.c.bf16 %v873, %v873
    %v883 = vld [vmem:[#allocation27] sm:$0x1]
    %v885 = vlaneseq
    %v886 = vshrl.u32 %v885, 7
    %v887 = vsub.s32 0, %v886
    %v888 = vrot.slane %v883, %v887
    %v898 = vunpack.c.l.b16 %v874
    %v899 = vunpack.c.l.b16 %v875
    %v900 = vunpack.c.l.b16 %v876
    %v901 = vunpack.c.l.b16 %v877
    %v902 = vunpack.c.l.b16 %v878
    %v903 = vunpack.c.l.b16 %v879
    %v904 = vunpack.c.l.b16 %v880
    %v905 = vunpack.c.l.b16 %v881
    %v906 = vpack.c.b16 %v899, %v898
    %v907 = vpack.c.b16 %v901, %v900
    %v908 = vpack.c.b16 %v903, %v902
    %v909 = vpack.c.b16 %v905, %v904
    %v915 = vsel %vm366, %v882, 0
    %917 = vmatprep.subr.bf16.mxu0 0
    %918 = vmatpush1.bf16.msra.mxu0 %v906
    %919 = vmatprep.subr.bf16.mxu0 0
    %920 = vmatpush1.bf16.msra.mxu0 %v907
    %921 = vmatprep.subr.bf16.mxu0 0
    %922 = vmatpush1.bf16.msra.mxu0 %v908
    %923 = vmatprep.subr.bf16.mxu0 0
    %924 = vmatpush1.bf16.msra.mxu0 %v909
    %925 = vmatprep.subr.bf16.mxu0 0
    %926 = vmatpush1.bf16.msra.mxu0 0
    %927 = vmatprep.subr.bf16.mxu0 0
    %928 = vmatpush1.bf16.msra.mxu0 0
    %929 = vmatprep.subr.bf16.mxu0 0
    %930 = vmatpush1.bf16.msra.mxu0 0
    %931 = vmatprep.subr.bf16.mxu0 0
    %932 = vmatpush1.bf16.msra.mxu0 0
    %933 = vmatprep.subr.bf16.mxu0 0
    %934 = vmatpush1.bf16.msra.mxu0 0
    %935 = vmatprep.subr.bf16.mxu0 0
    %936 = vmatpush1.bf16.msra.mxu0 0
    %937 = vmatprep.subr.bf16.mxu0 0
    %938 = vmatpush1.bf16.msra.mxu0 0
    %939 = vmatprep.subr.bf16.mxu0 0
    %940 = vmatpush1.bf16.msra.mxu0 0
    %941 = vmatprep.subr.bf16.mxu0 0
    %942 = vmatpush1.bf16.msra.mxu0 0
    %943 = vmatprep.subr.bf16.mxu0 0
    %944 = vmatpush1.bf16.msra.mxu0 0
    %945 = vmatprep.subr.bf16.mxu0 0
    %946 = vmatpush1.bf16.msra.mxu0 0
    %947 = vmatprep.subr.bf16.mxu0 0
    %948 = vmatpush1.bf16.msra.mxu0 0
    %949 = vmatprep.mubr.bf16.mxu0 0
    %950 = vmatmul.mubr.bf16.gmra.mrb[0].mxu0 %v915
    %v951 = vpop.f32.mrb[0].mxu0
    %v952 = vadd.f32 %v888, %v951
    %v953 = vpop.f32.mrb[0].mxu0
    %v954 = vpop.f32.mrb[0].mxu0
    %v955 = vpop.f32.mrb[0].mxu0
    %956 = vdwg.mxu0
    %957 = vrot.lane.b32.xlu0 %v952, 64
    %v958 = vpop.permute.xlu0 %957
    %v959 = vmul.f32 %v958, 1.442695
    %v960 = vpow.pop %v959
    %v961 = vmul.f32 %v958, 0.5
    %v962 = vmul.f32 %v961, 1.442695
    %v963 = vpow.pop %v962
    %v964 = vld [vmem:[#allocation18] sm:$0xff]
    %v965 = vmul.f32 %v964, %v963
    %v966 = vadd.f32 %v952, %v965
    %v967 = vadd.f32 %v958, 1.0
    %v968 = vmul.f32 %v952, %v952
    %v969 = vsub.f32 %v967, %v968
    %v970 = vsub.f32 %v969, %v960
    %v971 = vsel %vm366, %v970, 0.0
    %972 = vadd.xlane.f32.xlu0 %v971
    %v973 = vpop.xlane.xlu0 %972
    %v974 = vadd.f32 %v572, %v973
    %s975 = scalar_lea.vmem %s16, 32
    %v976 = vld [vmem:[%s975] sm:$0xf]
    %v977 = vld [vmem:[%s975 + $0x4] sm:$0xf]
    %v978 = vld [vmem:[%s975 + $0x8] sm:$0xf]
    %v979 = vld [vmem:[%s975 + $0xc] sm:$0xf]
    %v980 = vld [vmem:[%s975 + $0x10] sm:$0xf]
    %v981 = vld [vmem:[%s975 + $0x14] sm:$0xf]
    %v982 = vld [vmem:[%s975 + $0x18] sm:$0xf]
    %v983 = vld [vmem:[%s975 + $0x1c] sm:$0xf]
    %v984 = vpack.c.bf16 %v966, %v966
    %s985 = scalar_lea.vmem %s17, 1
    %v986 = vld [vmem:[%s985] sm:$0x1]
    %v988 = vlaneseq
    %v989 = vshrl.u32 %v988, 7
    %v990 = vsub.s32 0, %v989
    %v991 = vrot.slane %v986, %v990
    %v1001 = vunpack.c.l.b16 %v976
    %v1002 = vunpack.c.l.b16 %v977
    %v1003 = vunpack.c.l.b16 %v978
    %v1004 = vunpack.c.l.b16 %v979
    %v1005 = vunpack.c.l.b16 %v980
    %v1006 = vunpack.c.l.b16 %v981
    %v1007 = vunpack.c.l.b16 %v982
    %v1008 = vunpack.c.l.b16 %v983
    %v1009 = vpack.c.b16 %v1002, %v1001
    %v1010 = vpack.c.b16 %v1004, %v1003
    %v1011 = vpack.c.b16 %v1006, %v1005
    %v1012 = vpack.c.b16 %v1008, %v1007
    %v1018 = vsel %vm366, %v984, 0
    %1020 = vmatprep.subr.bf16.mxu0 0
    %1021 = vmatpush1.bf16.msra.mxu0 %v1009
    %1022 = vmatprep.subr.bf16.mxu0 0
    %1023 = vmatpush1.bf16.msra.mxu0 %v1010
    %1024 = vmatprep.subr.bf16.mxu0 0
    %1025 = vmatpush1.bf16.msra.mxu0 %v1011
    %1026 = vmatprep.subr.bf16.mxu0 0
    %1027 = vmatpush1.bf16.msra.mxu0 %v1012
    %1028 = vmatprep.subr.bf16.mxu0 0
    %1029 = vmatpush1.bf16.msra.mxu0 0
    %1030 = vmatprep.subr.bf16.mxu0 0
    %1031 = vmatpush1.bf16.msra.mxu0 0
    %1032 = vmatprep.subr.bf16.mxu0 0
    %1033 = vmatpush1.bf16.msra.mxu0 0
    %1034 = vmatprep.subr.bf16.mxu0 0
    %1035 = vmatpush1.bf16.msra.mxu0 0
    %1036 = vmatprep.subr.bf16.mxu0 0
    %1037 = vmatpush1.bf16.msra.mxu0 0
    %1038 = vmatprep.subr.bf16.mxu0 0
    %1039 = vmatpush1.bf16.msra.mxu0 0
    %1040 = vmatprep.subr.bf16.mxu0 0
    %1041 = vmatpush1.bf16.msra.mxu0 0
    %1042 = vmatprep.subr.bf16.mxu0 0
    %1043 = vmatpush1.bf16.msra.mxu0 0
    %1044 = vmatprep.subr.bf16.mxu0 0
    %1045 = vmatpush1.bf16.msra.mxu0 0
    %1046 = vmatprep.subr.bf16.mxu0 0
    %1047 = vmatpush1.bf16.msra.mxu0 0
    %1048 = vmatprep.subr.bf16.mxu0 0
    %1049 = vmatpush1.bf16.msra.mxu0 0
    %1050 = vmatprep.subr.bf16.mxu0 0
    %1051 = vmatpush1.bf16.msra.mxu0 0
    %1052 = vmatprep.mubr.bf16.mxu0 0
    %1053 = vmatmul.mubr.bf16.gmra.mrb[0].mxu0 %v1018
    %v1054 = vpop.f32.mrb[0].mxu0
    %v1055 = vadd.f32 %v991, %v1054
    %v1056 = vpop.f32.mrb[0].mxu0
    %v1057 = vpop.f32.mrb[0].mxu0
    %v1058 = vpop.f32.mrb[0].mxu0
    %1059 = vdwg.mxu0
    %v1060 = vmul.f32 %v1055, %v660
    %1061 = vadd.xlane.f32.xlu0 %v1060
    %v1062 = vpop.xlane.xlu0 %1061
    %v1063 = vadd.f32 %v1062, %v669
    %v1064 = vmax.f32 %v671, %v1063
    %v1065 = vsub.f32 %v671, %v1064
    %v1066 = vmul.f32 %v1065, 1.442695
    %v1067 = vpow.pop %v1066
    %v1068 = vsub.f32 %v1063, %v1064
    %v1069 = vmul.f32 %v1068, 1.442695
    %v1070 = vpow.pop %v1069
    %v1071 = vadd.f32 %v1067, %v1070
    %1073 = vset.pattern.permute.xlu0 0
    %1074 = vperm.xlu0 %1073, %v1067
    %v1075 = vpop.permute.xlu0 %1074
    %v1077 = vmul.f32 %v1075, %v651
    %1079 = vset.pattern.permute.xlu0 0
    %1080 = vperm.xlu0 %1079, %v1070
    %v1081 = vpop.permute.xlu0 %1080
    %v1083 = vmul.f32 %v1081, %v1055
    %v1084 = vadd.f32 %v1077, %v1083
    %v1085 = vrcp.pop %v1071
    %1087 = vset.pattern.permute.xlu0 0
    %1088 = vperm.xlu0 %1087, %v1085
    %v1089 = vpop.permute.xlu0 %1088
    %v1091 = vmul.f32 %v1084, %v1089
    %1092 = vst [vmem:[#allocation29] sm:$0xff] %v1091
    %v1093 = vmul.f32 %v1067, %v1085
    %v1094 = vmul.f32 %v1070, %v1085
    %v1095 = vmul.f32 %v974, -0.00390625
    %v1096 = vsel %vm273, %v1095, 0.0
    %1098 = vrot.lane.b32.xlu0 %v1094, 1
    %v1099 = vpop.permute.xlu0 %1098
    %vm1101 = vcmask 7168
    %v1102 = vsel %vm1101, %v1093, %v1099
    %vm1103 = vcmask 15360
    %v1104 = vsel %vm1103, %v1102, %v1096
    %vm1105 = vcmask 23552
    %1106 = vst.msk [vmem:[%s21] sm:$0xff] %vm1105, %v1104
    // Predicated region
    $region146: #{tpu_custom_call.1} parent=1 // pred_check
      _
    $region147: #{tpu_custom_call.1} parent=1 // pred_check_branch
      %1108 = sbr.rel (0) target = $region149
    $region148: #{tpu_custom_call.1} parent=1 // pred_region
      %s1110 = ssub.s32 128, 128
      %1111 = vsyncadd [#allocation5], %s1110
      %s1113 = sshll.u32 [#allocation29], 4
      %s1114 = int_to_ptr.vmem [resolvable:$true] %s1113
      %1116 = dma.vmem_to_hbm [thread:$0]  %s1114, 128, %s20, [#allocation5]
    $region149: #{tpu_custom_call.1} parent=1 // pred_fallthru
      _
    // Predicated region
    $region150: #{tpu_custom_call.1} parent=1 // pred_check
      _
    $region151: #{tpu_custom_call.1} parent=1 // pred_check_branch
      %1118 = sbr.rel (0) target = $region153
    $region152: #{tpu_custom_call.1} parent=1 // pred_region
      _
    $region153: #{tpu_custom_call.1} parent=1 // pred_fallthru
      _
    // Predicated region
    $region154: #{tpu_custom_call.1} parent=1 // pred_check
      _
    $region155: #{tpu_custom_call.1} parent=1 // pred_check_branch
      %1120 = sbr.rel (0) target = $region157
    $region156: #{tpu_custom_call.1} parent=1 // pred_region
      %1121 = dma.done [#allocation5], 128
    $region157: #{tpu_custom_call.1} parent=1 // pred_fallthru
      _
    // Predicated region
    $region158: #{tpu_custom_call.1} parent=1 // pred_check
      _
    $region159: #{tpu_custom_call.1} parent=1 // pred_check_branch
      %1123 = sbr.rel (0) target = $region161
    $region160: #{tpu_custom_call.1} parent=1 // pred_region
      _
    $region161: #{tpu_custom_call.1} parent=1 // pred_fallthru
      _
    %1124 = vsyncpa [#allocation4], 1
    %1125 = vsyncpa [#allocation7], 1
    %1126 = vsyncpa [#allocation10], 1
    %1127 = vsyncpa [#allocation13], 1
    %1128 = vsyncpa [#allocation16], 1
    %1129 = vsyncpa [#allocation19], 1
    %1130 = vsyncpa [#allocation22], 1
    %1131 = vsyncpa [#allocation25], 1
    %1132 = vsyncpa [#allocation28], 1
    %1133 = vsyncpa [#allocation5], 1

// kernel: tpu_custom_call.1
$region0: #{tpu_custom_call.1}
  #allocation0 [shape = 'u32[]', space=smem, size = 0x4, offset = 0x4, fixed_abs, tag = 'smem constant byte address 0x4 - core index']
  #allocation1 [shape = 'u32[144,128]{1,0:T(1,128)}', space=vmem, size = 0x12000, scoped, tag = 'internal scratch']
  #allocation2 [shape = 'f32[1,1]{1,0:T(1,128)S(1)}', space=vmem, size = 0x200, scoped, tag = 'scoped memory for tpu_custom_call.1']
  %s0 = inlined_call_operand.hbm [shape: f32[8,32], index: 0, kind: input, shape index: {}]
  %s1 = inlined_call_operand.hbm [shape: f32[8,64], index: 1, kind: input, shape index: {}]
  %s2 = inlined_call_operand.hbm [shape: bf16[32,64], index: 2, kind: input, shape index: {}]
  %s3 = inlined_call_operand.hbm [shape: f32[1,64], index: 3, kind: input, shape index: {}]
  %s4 = inlined_call_operand.hbm [shape: bf16[1,64,64], index: 4, kind: input, shape index: {}]
  %s5 = inlined_call_operand.hbm [shape: f32[1,1,64], index: 5, kind: input, shape index: {}]
  %s6 = inlined_call_operand.hbm [shape: bf16[64,128], index: 6, kind: input, shape index: {}]
  %s7 = inlined_call_operand.hbm [shape: f32[1,128], index: 7, kind: input, shape index: {}]
  %s8 = inlined_call_operand.hbm [shape: f32[8,48], index: 8, kind: input, shape index: {}]
  %s9 = inlined_call_operand.hbm [shape: f32[8,64], index: 9, kind: input, shape index: {}]
  %s10 = inlined_call_operand.hbm [shape: bf16[48,64], index: 10, kind: input, shape index: {}]
  %s11 = inlined_call_operand.hbm [shape: f32[1,64], index: 11, kind: input, shape index: {}]
  %s12 = inlined_call_operand.hbm [shape: bf16[1,64,64], index: 12, kind: input, shape index: {}]
  %s13 = inlined_call_operand.hbm [shape: f32[1,1,64], index: 13, kind: input, shape index: {}]
  %s14 = inlined_call_operand.hbm [shape: bf16[64,128], index: 14, kind: input, shape index: {}]
  %s15 = inlined_call_operand.hbm [shape: f32[1,128], index: 15, kind: input, shape index: {}]
  %s16 = inlined_call_operand.vmem [shape: bf16[2,64,128], index: 16, kind: input, shape index: {}]
  %s17 = inlined_call_operand.vmem [shape: f32[2,1,128], index: 17, kind: input, shape index: {}]
  %s18 = inlined_call_operand.vmem [shape: f32[1,128], index: 18, kind: input, shape index: {}]
  %s19 = inlined_call_operand.<no memory space> [shape: f32[1,1], index: 19, kind: input, shape index: {}]
  %s20 = inlined_call_operand.hbm [shape: f32[8,128], index: 20, kind: output, shape index: {0}]
  %s21 = inlined_call_operand.vmem [shape: f32[8,3], index: 21, kind: output, shape index: {1}]
  %22 = xla_tuple %s20, %s21
  %s23 = sld [smem:[#allocation0]]
  $region162: #{tpu_custom_call.1} parent=0
    _
  %s25 = ssub.s32 1, %s23
  %s26 = scalar_select 0, %s25, %s23
  %v27 = vstv %s19
  %28 = vst [vmem:[#allocation2] sm:$0x1] %v27
  $region1: #{tpu_custom_call.1} parent=0
    #allocation3 [shape = 'u8[4096]{0}', space=vmem, size = 0x1000, scoped, tag = 'input window, operand 0, single buffered']
    #allocation4 [shape = 's32[1]{0}', space=sflag, size = 0x4, scoped, tag = 'scoped memory for tpu_custom_call.1']
    #allocation5 [shape = 's32[1]{0}', space=sflag, size = 0x4, scoped, tag = 'scoped memory for tpu_custom_call.1']
    #allocation6 [shape = 'u8[4096]{0}', space=vmem, size = 0x1000, scoped, tag = 'input window, operand 1, single buffered']
    #allocation7 [shape = 's32[1]{0}', space=sflag, size = 0x4, scoped, tag = 'scoped memory for tpu_custom_call.1']
    #allocation8 [shape = 'u8[8192]{0}', space=vmem, size = 0x2000, scoped, tag = 'input window, operand 2, single buffered']
    #allocation9 [shape = 'u8[512]{0}', space=vmem, size = 0x400, scoped, tag = 'input window, operand 3, single buffered']
    #allocation10 [shape = 's32[1]{0}', space=sflag, size = 0x4, scoped, tag = 'scoped memory for tpu_custom_call.1']
    #allocation11 [shape = 'u8[16384]{0}', space=vmem, size = 0x4000, scoped, tag = 'input window, operand 4, single buffered']
    #allocation12 [shape = 'u8[512]{0}', space=vmem, size = 0x400, scoped, tag = 'input window, operand 5, single buffered']
    #allocation13 [shape = 's32[1]{0}', space=sflag, size = 0x4, scoped, tag = 'scoped memory for tpu_custom_call.1']
    #allocation14 [shape = 'u8[16384]{0}', space=vmem, size = 0x4000, scoped, tag = 'input window, operand 6, single buffered']
    #allocation15 [shape = 'u8[512]{0}', space=vmem, size = 0x400, scoped, tag = 'input window, operand 7, single buffered']
    #allocation16 [shape = 's32[1]{0}', space=sflag, size = 0x4, scoped, tag = 'scoped memory for tpu_custom_call.1']
    #allocation17 [shape = 'u8[4096]{0}', space=vmem, size = 0x1000, scoped, tag = 'input window, operand 8, single buffered']
    #allocation18 [shape = 'u8[4096]{0}', space=vmem, size = 0x1000, scoped, tag = 'input window, operand 9, single buffered']
    #allocation19 [shape = 's32[1]{0}', space=sflag, size = 0x4, scoped, tag = 'scoped memory for tpu_custom_call.1']
    #allocation20 [shape = 'u8[12288]{0}', space=vmem, size = 0x3000, scoped, tag = 'input window, operand 10, single buffered']
    #allocation21 [shape = 'u8[512]{0}', space=vmem, size = 0x400, scoped, tag = 'input window, operand 11, single buffered']
    #allocation22 [shape = 's32[1]{0}', space=sflag, size = 0x4, scoped, tag = 'scoped memory for tpu_custom_call.1']
    #allocation23 [shape = 'u8[16384]{0}', space=vmem, size = 0x4000, scoped, tag = 'input window, operand 12, single buffered']
    #allocation24 [shape = 'u8[512]{0}', space=vmem, size = 0x400, scoped, tag = 'input window, operand 13, single buffered']
    #allocation25 [shape = 's32[1]{0}', space=sflag, size = 0x4, scoped, tag = 'scoped memory for tpu_custom_call.1']
    #allocation26 [shape = 'u8[16384]{0}', space=vmem, size = 0x4000, scoped, tag = 'input window, operand 14, single buffered']
    #allocation27 [shape = 'u8[512]{0}', space=vmem, size = 0x400, scoped, tag = 'input window, operand 15, single buffered']
    #allocation28 [shape = 's32[1]{0}', space=sflag, size = 0x4, scoped, tag = 'scoped memory for tpu_custom_call.1']
    #allocation29 [shape = 'u8[4096]{0}', space=vmem, size = 0x1000, scoped, tag = 'output window, operand 0, single buffered']
    %29 = vsyncpa [#allocation4], 0
    %30 = vsyncpa [#allocation7], 0
    %31 = vsyncpa [#allocation10], 0
    %32 = vsyncpa [#allocation13], 0
    %33 = vsyncpa [#allocation16], 0
    %34 = vsyncpa [#allocation19], 0
    %35 = vsyncpa [#allocation22], 0
    %36 = vsyncpa [#allocation25], 0
    %37 = vsyncpa [#allocation28], 0
    %38 = vsyncpa [#allocation5], 0
    // Predicated region
    $region2: #{tpu_custom_call.1} parent=1 // pred_check
      _
    $region3: #{tpu_custom_call.1} parent=1 // pred_check_branch
      %40 = sbr.rel (0) target = $region5
    $region4: #{tpu_custom_call.1} parent=1 // pred_region
      %s42 = ssub.s32 128, 128
      %43 = vsyncadd [#allocation4], %s42
      %s45 = sshll.u32 [#allocation3], 4
      %s46 = int_to_ptr.vmem [resolvable:$true] %s45
      %48 = dma.hbm_to_vmem [thread:$0]  %s0, 128, %s46, [#allocation4]
    $region5: #{tpu_custom_call.1} parent=1 // pred_fallthru
      _
    // Predicated region
    $region6: #{tpu_custom_call.1} parent=1 // pred_check
      _
    $region7: #{tpu_custom_call.1} parent=1 // pred_check_branch
      %50 = sbr.rel (0) target = $region9
    $region8: #{tpu_custom_call.1} parent=1 // pred_region
      %s52 = ssub.s32 128, 128
      %53 = vsyncadd [#allocation7], %s52
      %s55 = sshll.u32 [#allocation6], 4
      %s56 = int_to_ptr.vmem [resolvable:$true] %s55
      %58 = dma.hbm_to_vmem [thread:$0]  %s1, 128, %s56, [#allocation7]
    $region9: #{tpu_custom_call.1} parent=1 // pred_fallthru
      _
    // Predicated region
    $region10: #{tpu_custom_call.1} parent=1 // pred_check
      _
    $region11: #{tpu_custom_call.1} parent=1 // pred_check_branch
      %60 = sbr.rel (0) target = $region13
    $region12: #{tpu_custom_call.1} parent=1 // pred_region
      %s62 = ssub.s32 256, 256
      %63 = vsyncadd [#allocation7], %s62
      %s64 = sshll.u32 [#allocation8], 4
      %s65 = int_to_ptr.vmem [resolvable:$true] %s64
      %70 = dma.hbm_to_vmem [thread:$0]  %s2, 256, %s65, [#allocation7], 64, 64, 4
    $region13: #{tpu_custom_call.1} parent=1 // pred_fallthru
      _
    // Predicated region
    $region14: #{tpu_custom_call.1} parent=1 // pred_check
      _
    $region15: #{tpu_custom_call.1} parent=1 // pred_check_branch
      %72 = sbr.rel (0) target = $region17
    $region16: #{tpu_custom_call.1} parent=1 // pred_region
      %s74 = ssub.s32 16, 16
      %75 = vsyncadd [#allocation10], %s74
      %s77 = sshll.u32 [#allocation9], 4
      %s78 = int_to_ptr.vmem [resolvable:$true] %s77
      %80 = dma.hbm_to_vmem [thread:$0]  %s3, 16, %s78, [#allocation10]
    $region17: #{tpu_custom_call.1} parent=1 // pred_fallthru
      _
    // Predicated region
    $region18: #{tpu_custom_call.1} parent=1 // pred_check
      _
    $region19: #{tpu_custom_call.1} parent=1 // pred_check_branch
      %82 = sbr.rel (0) target = $region21
    $region20: #{tpu_custom_call.1} parent=1 // pred_region
      %s84 = ssub.s32 512, 512
      %85 = vsyncadd [#allocation10], %s84
      %s86 = sshll.u32 [#allocation11], 4
      %s87 = int_to_ptr.vmem [resolvable:$true] %s86
      %92 = dma.hbm_to_vmem [thread:$0]  %s4, 512, %s87, [#allocation10], 64, 64, 4
    $region21: #{tpu_custom_call.1} parent=1 // pred_fallthru
      _
    // Predicated region
    $region22: #{tpu_custom_call.1} parent=1 // pred_check
      _
    $region23: #{tpu_custom_call.1} parent=1 // pred_check_branch
      %94 = sbr.rel (0) target = $region25
    $region24: #{tpu_custom_call.1} parent=1 // pred_region
      %s96 = ssub.s32 16, 16
      %97 = vsyncadd [#allocation13], %s96
      %s99 = sshll.u32 [#allocation12], 4
      %s100 = int_to_ptr.vmem [resolvable:$true] %s99
      %102 = dma.hbm_to_vmem [thread:$0]  %s5, 16, %s100, [#allocation13]
    $region25: #{tpu_custom_call.1} parent=1 // pred_fallthru
      _
    // Predicated region
    $region26: #{tpu_custom_call.1} parent=1 // pred_check
      _
    $region27: #{tpu_custom_call.1} parent=1 // pred_check_branch
      %104 = sbr.rel (0) target = $region29
    $region28: #{tpu_custom_call.1} parent=1 // pred_region
      %s106 = ssub.s32 512, 512
      %107 = vsyncadd [#allocation13], %s106
      %s108 = sshll.u32 [#allocation14], 4
      %s109 = int_to_ptr.vmem [resolvable:$true] %s108
      %114 = dma.hbm_to_vmem [thread:$0]  %s6, 512, %s109, [#allocation13], 64, 64, 4
    $region29: #{tpu_custom_call.1} parent=1 // pred_fallthru
      _
    // Predicated region
    $region30: #{tpu_custom_call.1} parent=1 // pred_check
      _
    $region31: #{tpu_custom_call.1} parent=1 // pred_check_branch
      %116 = sbr.rel (0) target = $region33
    $region32: #{tpu_custom_call.1} parent=1 // pred_region
      %s118 = ssub.s32 16, 16
      %119 = vsyncadd [#allocation16], %s118
      %s121 = sshll.u32 [#allocation15], 4
      %s122 = int_to_ptr.vmem [resolvable:$true] %s121
      %124 = dma.hbm_to_vmem [thread:$0]  %s7, 16, %s122, [#allocation16]
    $region33: #{tpu_custom_call.1} parent=1 // pred_fallthru
      _
    // Predicated region
    $region34: #{tpu_custom_call.1} parent=1 // pred_check
      _
    $region35: #{tpu_custom_call.1} parent=1 // pred_check_branch
      %126 = sbr.rel (0) target = $region37
    $region36: #{tpu_custom_call.1} parent=1 // pred_region
      %s128 = ssub.s32 128, 128
      %129 = vsyncadd [#allocation16], %s128
      %s131 = sshll.u32 [#allocation17], 4
      %s132 = int_to_ptr.vmem [resolvable:$true] %s131
      %134 = dma.hbm_to_vmem [thread:$0]  %s8, 128, %s132, [#allocation16]
    $region37: #{tpu_custom_call.1} parent=1 // pred_fallthru
      _
    // Predicated region
    $region38: #{tpu_custom_call.1} parent=1 // pred_check
      _
    $region39: #{tpu_custom_call.1} parent=1 // pred_check_branch
      %136 = sbr.rel (0) target = $region41
    $region40: #{tpu_custom_call.1} parent=1 // pred_region
      %s138 = ssub.s32 128, 128
      %139 = vsyncadd [#allocation19], %s138
      %s141 = sshll.u32 [#allocation18], 4
      %s142 = int_to_ptr.vmem [resolvable:$true] %s141
      %144 = dma.hbm_to_vmem [thread:$0]  %s9, 128, %s142, [#allocation19]
    $region41: #{tpu_custom_call.1} parent=1 // pred_fallthru
      _
    // Predicated region
    $region42: #{tpu_custom_call.1} parent=1 // pred_check
      _
    $region43: #{tpu_custom_call.1} parent=1 // pred_check_branch
      %146 = sbr.rel (0) target = $region45
    $region44: #{tpu_custom_call.1} parent=1 // pred_region
      %s148 = ssub.s32 384, 384
      %149 = vsyncadd [#allocation19], %s148
      %s150 = sshll.u32 [#allocation20], 4
      %s151 = int_to_ptr.vmem [resolvable:$true] %s150
      %156 = dma.hbm_to_vmem [thread:$0]  %s10, 384, %s151, [#allocation19], 64, 64, 4
    $region45: #{tpu_custom_call.1} parent=1 // pred_fallthru
      _
    // Predicated region
    $region46: #{tpu_custom_call.1} parent=1 // pred_check
      _
    $region47: #{tpu_custom_call.1} parent=1 // pred_check_branch
      %158 = sbr.rel (0) target = $region49
    $region48: #{tpu_custom_call.1} parent=1 // pred_region
      %s160 = ssub.s32 16, 16
      %161 = vsyncadd [#allocation22], %s160
      %s163 = sshll.u32 [#allocation21], 4
      %s164 = int_to_ptr.vmem [resolvable:$true] %s163
      %166 = dma.hbm_to_vmem [thread:$0]  %s11, 16, %s164, [#allocation22]
    $region49: #{tpu_custom_call.1} parent=1 // pred_fallthru
      _
    // Predicated region
    $region50: #{tpu_custom_call.1} parent=1 // pred_check
      _
    $region51: #{tpu_custom_call.1} parent=1 // pred_check_branch
      %168 = sbr.rel (0) target = $region53
    $region52: #{tpu_custom_call.1} parent=1 // pred_region
      %s170 = ssub.s32 512, 512
      %171 = vsyncadd [#allocation22], %s170
      %s172 = sshll.u32 [#allocation23], 4
      %s173 = int_to_ptr.vmem [resolvable:$true] %s172
      %178 = dma.hbm_to_vmem [thread:$0]  %s12, 512, %s173, [#allocation22], 64, 64, 4
    $region53: #{tpu_custom_call.1} parent=1 // pred_fallthru
      _
    // Predicated region
    $region54: #{tpu_custom_call.1} parent=1 // pred_check
      _
    $region55: #{tpu_custom_call.1} parent=1 // pred_check_branch
      %180 = sbr.rel (0) target = $region57
    $region56: #{tpu_custom_call.1} parent=1 // pred_region
      %s182 = ssub.s32 16, 16
      %183 = vsyncadd [#allocation25], %s182
      %s185 = sshll.u32 [#allocation24], 4
      %s186 = int_to_ptr.vmem [resolvable:$true] %s185
      %188 = dma.hbm_to_vmem [thread:$0]  %s13, 16, %s186, [#allocation25]
    $region57: #{tpu_custom_call.1} parent=1 // pred_fallthru
      _
    // Predicated region
    $region58: #{tpu_custom_call.1} parent=1 // pred_check
      _
    $region59: #{tpu_custom_call.1} parent=1 // pred_check_branch
      %190 = sbr.rel (0) target = $region61
    $region60: #{tpu_custom_call.1} parent=1 // pred_region
      %s192 = ssub.s32 512, 512
      %193 = vsyncadd [#allocation25], %s192
      %s194 = sshll.u32 [#allocation26], 4
      %s195 = int_to_ptr.vmem [resolvable:$true] %s194
      %200 = dma.hbm_to_vmem [thread:$0]  %s14, 512, %s195, [#allocation25], 64, 64, 4
    $region61: #{tpu_custom_call.1} parent=1 // pred_fallthru
      _
    // Predicated region
    $region62: #{tpu_custom_call.1} parent=1 // pred_check
      _
    $region63: #{tpu_custom_call.1} parent=1 // pred_check_branch
      %202 = sbr.rel (0) target = $region65
    $region64: #{tpu_custom_call.1} parent=1 // pred_region
      %s204 = ssub.s32 16, 16
      %205 = vsyncadd [#allocation28], %s204
      %s207 = sshll.u32 [#allocation27], 4
      %s208 = int_to_ptr.vmem [resolvable:$true] %s207
      %210 = dma.hbm_to_vmem [thread:$0]  %s15, 16, %s208, [#allocation28]
    $region65: #{tpu_custom_call.1} parent=1 // pred_fallthru
      _
    // Predicated region
    $region66: #{tpu_custom_call.1} parent=1 // pred_check
      _
    $region67: #{tpu_custom_call.1} parent=1 // pred_check_branch
      %212 = sbr.rel (0) target = $region69
    $region68: #{tpu_custom_call.1} parent=1 // pred_region
      _
    $region69: #{tpu_custom_call.1} parent=1 // pred_fallthru
      _
    // Predicated region
    $region70: #{tpu_custom_call.1} parent=1 // pred_check
      _
    $region71: #{tpu_custom_call.1} parent=1 // pred_check_branch
      %214 = sbr.rel (0) target = $region73
    $region72: #{tpu_custom_call.1} parent=1 // pred_region
      _
    $region73: #{tpu_custom_call.1} parent=1 // pred_fallthru
      _
    // Predicated region
    $region74: #{tpu_custom_call.1} parent=1 // pred_check
      _
    $region75: #{tpu_custom_call.1} parent=1 // pred_check_branch
      %216 = sbr.rel (0) target = $region77
    $region76: #{tpu_custom_call.1} parent=1 // pred_region
      _
    $region77: #{tpu_custom_call.1} parent=1 // pred_fallthru
      _
    // Predicated region
    $region78: #{tpu_custom_call.1} parent=1 // pred_check
      _
    $region79: #{tpu_custom_call.1} parent=1 // pred_check_branch
      %218 = sbr.rel (0) target = $region81
    $region80: #{tpu_custom_call.1} parent=1 // pred_region
      _
    $region81: #{tpu_custom_call.1} parent=1 // pred_fallthru
      _
    // Predicated region
    $region82: #{tpu_custom_call.1} parent=1 // pred_check
      _
    $region83: #{tpu_custom_call.1} parent=1 // pred_check_branch
      %220 = sbr.rel (0) target = $region85
    $region84: #{tpu_custom_call.1} parent=1 // pred_region
      %221 = dma.done [#allocation4], 128
    $region85: #{tpu_custom_call.1} parent=1 // pred_fallthru
      _
    // Predicated region
    $region86: #{tpu_custom_call.1} parent=1 // pred_check
      _
    $region87: #{tpu_custom_call.1} parent=1 // pred_check_branch
      %223 = sbr.rel (0) target = $region89
    $region88: #{tpu_custom_call.1} parent=1 // pred_region
      %224 = dma.done [#allocation7], 128
    $region89: #{tpu_custom_call.1} parent=1 // pred_fallthru
      _
    // Predicated region
    $region90: #{tpu_custom_call.1} parent=1 // pred_check
      _
    $region91: #{tpu_custom_call.1} parent=1 // pred_check_branch
      %226 = sbr.rel (0) target = $region93
    $region92: #{tpu_custom_call.1} parent=1 // pred_region
      %227 = dma.done [#allocation7], 256
    $region93: #{tpu_custom_call.1} parent=1 // pred_fallthru
      _
    // Predicated region
    $region94: #{tpu_custom_call.1} parent=1 // pred_check
      _
    $region95: #{tpu_custom_call.1} parent=1 // pred_check_branch
      %229 = sbr.rel (0) target = $region97
    $region96: #{tpu_custom_call.1} parent=1 // pred_region
      %230 = dma.done [#allocation10], 16
    $region97: #{tpu_custom_call.1} parent=1 // pred_fallthru
      _
    // Predicated region
    $region98: #{tpu_custom_call.1} parent=1 // pred_check
      _
    $region99: #{tpu_custom_call.1} parent=1 // pred_check_branch
      %232 = sbr.rel (0) target = $region101
    $region100: #{tpu_custom_call.1} parent=1 // pred_region
      %233 = dma.done [#allocation10], 512
    $region101: #{tpu_custom_call.1} parent=1 // pred_fallthru
      _
    // Predicated region
    $region102: #{tpu_custom_call.1} parent=1 // pred_check
      _
    $region103: #{tpu_custom_call.1} parent=1 // pred_check_branch
      %235 = sbr.rel (0) target = $region105
    $region104: #{tpu_custom_call.1} parent=1 // pred_region
      %236 = dma.done [#allocation13], 16
    $region105: #{tpu_custom_call.1} parent=1 // pred_fallthru
      _
    // Predicated region
    $region106: #{tpu_custom_call.1} parent=1 // pred_check
      _
    $region107: #{tpu_custom_call.1} parent=1 // pred_check_branch
      %238 = sbr.rel (0) target = $region109
    $region108: #{tpu_custom_call.1} parent=1 // pred_region
      %239 = dma.done [#allocation13], 512
    $region109: #{tpu_custom_call.1} parent=1 // pred_fallthru
      _
    // Predicated region
    $region110: #{tpu_custom_call.1} parent=1 // pred_check
      _
    $region111: #{tpu_custom_call.1} parent=1 // pred_check_branch
      %241 = sbr.rel (0) target = $region113
    $region112: #{tpu_custom_call.1} parent=1 // pred_region
      %242 = dma.done [#allocation16], 16
    $region113: #{tpu_custom_call.1} parent=1 // pred_fallthru
      _
    // Predicated region
    $region114: #{tpu_custom_call.1} parent=1 // pred_check
      _
    $region115: #{tpu_custom_call.1} parent=1 // pred_check_branch
      %244 = sbr.rel (0) target = $region117
    $region116: #{tpu_custom_call.1} parent=1 // pred_region
      %245 = dma.done [#allocation16], 128
    $region117: #{tpu_custom_call.1} parent=1 // pred_fallthru
      _
    // Predicated region
    $region118: #{tpu_custom_call.1} parent=1 // pred_check
      _
    $region119: #{tpu_custom_call.1} parent=1 // pred_check_branch
      %247 = sbr.rel (0) target = $region121
    $region120: #{tpu_custom_call.1} parent=1 // pred_region
      %248 = dma.done [#allocation19], 128
    $region121: #{tpu_custom_call.1} parent=1 // pred_fallthru
      _
    // Predicated region
    $region122: #{tpu_custom_call.1} parent=1 // pred_check
      _
    $region123: #{tpu_custom_call.1} parent=1 // pred_check_branch
      %250 = sbr.rel (0) target = $region125
    $region124: #{tpu_custom_call.1} parent=1 // pred_region
      %251 = dma.done [#allocation19], 384
    $region125: #{tpu_custom_call.1} parent=1 // pred_fallthru
      _
    // Predicated region
    $region126: #{tpu_custom_call.1} parent=1 // pred_check
      _
    $region127: #{tpu_custom_call.1} parent=1 // pred_check_branch
      %253 = sbr.rel (0) target = $region129
    $region128: #{tpu_custom_call.1} parent=1 // pred_region
      %254 = dma.done [#allocation22], 16
    $region129: #{tpu_custom_call.1} parent=1 // pred_fallthru
      _
    // Predicated region
    $region130: #{tpu_custom_call.1} parent=1 // pred_check
      _
    $region131: #{tpu_custom_call.1} parent=1 // pred_check_branch
      %256 = sbr.rel (0) target = $region133
    $region132: #{tpu_custom_call.1} parent=1 // pred_region
      %257 = dma.done [#allocation22], 512
    $region133: #{tpu_custom_call.1} parent=1 // pred_fallthru
      _
    // Predicated region
    $region134: #{tpu_custom_call.1} parent=1 // pred_check
      _
    $region135: #{tpu_custom_call.1} parent=1 // pred_check_branch
      %259 = sbr.rel (0) target = $region137
    $region136: #{tpu_custom_call.1} parent=1 // pred_region
      %260 = dma.done [#allocation25], 16
    $region137: #{tpu_custom_call.1} parent=1 // pred_fallthru
      _
    // Predicated region
    $region138: #{tpu_custom_call.1} parent=1 // pred_check
      _
    $region139: #{tpu_custom_call.1} parent=1 // pred_check_branch
      %262 = sbr.rel (0) target = $region141
    $region140: #{tpu_custom_call.1} parent=1 // pred_region
      %263 = dma.done [#allocation25], 512
    $region141: #{tpu_custom_call.1} parent=1 // pred_fallthru
      _
    // Predicated region
    $region142: #{tpu_custom_call.1} parent=1 // pred_check
      _
    $region143: #{tpu_custom_call.1} parent=1 // pred_check_branch
      %265 = sbr.rel (0) target = $region145
    $region144: #{tpu_custom_call.1} parent=1 // pred_region
      %266 = dma.done [#allocation28], 16
    $region145: #{tpu_custom_call.1} parent=1 // pred_fallthru
      _
    %s268 = smul.u32 0, 8
    %v269 = vlaneseq
    %v270 = vshrl.u32 %v269, 7
    %v271 = vstv %s268
    %v272 = vadd.s32 %v271, %v270
    %vm273 = vcmp.lt.s32.totalorder %v272, 8
    %v274 = vld [vmem:[%s18] sm:$0x1]
    %v275 = vld [vmem:[#allocation2] sm:$0x1]
    %v276 = vld [vmem:[#allocation3] sm:$0xff]
    %vm277 = vcmask 261120
    %v278 = vsel %vm277, %v276, 0.0
    %279 = vadd.xlane.f32.xlu0 %v278
    %v280 = vpop.xlane.xlu0 %279
    %v281 = vrcp.pop 32.0
    %v282 = vmul.f32 %v280, %v281
    %v283 = vsub.f32 %v276, %v282
    %v284 = vmul.f32 %v283, %v283
    %v285 = vsel %vm277, %v284, 0.0
    %286 = vadd.xlane.f32.xlu0 %v285
    %v287 = vpop.xlane.xlu0 %286
    %v288 = vmul.f32 %v287, %v281
    %v289 = vadd.f32 %v288, 1e-05
    %v290 = vrsqrt.pop %v289
    %v291 = vmul.f32 %v283, %v290
    %v292 = vld [vmem:[#allocation8] sm:$0xf]
    %v293 = vld [vmem:[#allocation8 + $0x4] sm:$0xf]
    %v294 = vld [vmem:[#allocation8 + $0x8] sm:$0xf]
    %v295 = vld [vmem:[#allocation8 + $0xc] sm:$0xf]
    %v296 = vpack.c.bf16 %v291, %v291
    %v297 = vld [vmem:[#allocation9] sm:$0x1]
    %v299 = vlaneseq
    %v300 = vshrl.u32 %v299, 7
    %v301 = vsub.s32 0, %v300
    %v302 = vrot.slane %v297, %v301
    %v308 = vunpack.c.l.b16 %v292
    %v309 = vunpack.c.l.b16 %v293
    %v310 = vunpack.c.l.b16 %v294
    %v311 = vunpack.c.l.b16 %v295
    %v312 = vpack.c.b16 %v309, %v308
    %v313 = vpack.c.b16 %v311, %v310
    %v317 = vsel %vm277, %v296, 0
    %319 = vmatprep.subr.bf16.mxu0 0
    %320 = vmatpush1.bf16.msra.mxu0 %v312
    %321 = vmatprep.subr.bf16.mxu0 0
    %322 = vmatpush1.bf16.msra.mxu0 %v313
    %323 = vmatprep.subr.bf16.mxu0 0
    %324 = vmatpush1.bf16.msra.mxu0 0
    %325 = vmatprep.subr.bf16.mxu0 0
    %326 = vmatpush1.bf16.msra.mxu0 0
    %327 = vmatprep.subr.bf16.mxu0 0
    %328 = vmatpush1.bf16.msra.mxu0 0
    %329 = vmatprep.subr.bf16.mxu0 0
    %330 = vmatpush1.bf16.msra.mxu0 0
    %331 = vmatprep.subr.bf16.mxu0 0
    %332 = vmatpush1.bf16.msra.mxu0 0
    %333 = vmatprep.subr.bf16.mxu0 0
    %334 = vmatpush1.bf16.msra.mxu0 0
    %335 = vmatprep.subr.bf16.mxu0 0
    %336 = vmatpush1.bf16.msra.mxu0 0
    %337 = vmatprep.subr.bf16.mxu0 0
    %338 = vmatpush1.bf16.msra.mxu0 0
    %339 = vmatprep.subr.bf16.mxu0 0
    %340 = vmatpush1.bf16.msra.mxu0 0
    %341 = vmatprep.subr.bf16.mxu0 0
    %342 = vmatpush1.bf16.msra.mxu0 0
    %343 = vmatprep.subr.bf16.mxu0 0
    %344 = vmatpush1.bf16.msra.mxu0 0
    %345 = vmatprep.subr.bf16.mxu0 0
    %346 = vmatpush1.bf16.msra.mxu0 0
    %347 = vmatprep.subr.bf16.mxu0 0
    %348 = vmatpush1.bf16.msra.mxu0 0
    %349 = vmatprep.subr.bf16.mxu0 0
    %350 = vmatpush1.bf16.msra.mxu0 0
    %351 = vmatprep.mubr.bf16.mxu0 0
    %352 = vmatmul.mubr.bf16.gmra.mrb[0].mxu0 %v317
    %v353 = vpop.f32.mrb[0].mxu0
    %v354 = vadd.f32 %v302, %v353
    %v355 = vpop.f32.mrb[0].mxu0
    %v356 = vpop.f32.mrb[0].mxu0
    %v357 = vpop.f32.mrb[0].mxu0
    %358 = vdwg.mxu0
    %v359 = vxor.u32 %v354, 2147483648
    %v360 = vmul.f32 %v359, 1.442695
    %v361 = vpow.pop %v360
    %v362 = vadd.f32 %v361, 1.0
    %v363 = vrcp.pop %v362
    %v364 = vmul.f32 1.0, %v363
    %v365 = vmul.f32 %v354, %v364
    %vm366 = vcmask 523264
    %v367 = vsel %vm366, %v365, 0.0
    %368 = vadd.xlane.f32.xlu0 %v367
    %v369 = vpop.xlane.xlu0 %368
    %v370 = vrcp.pop 64.0
    %v371 = vmul.f32 %v369, %v370
    %v372 = vsub.f32 %v365, %v371
    %v373 = vmul.f32 %v372, %v372
    %v374 = vsel %vm366, %v373, 0.0
    %375 = vadd.xlane.f32.xlu0 %v374
    %v376 = vpop.xlane.xlu0 %375
    %v377 = vmul.f32 %v376, %v370
    %v378 = vadd.f32 %v377, 1e-05
    %v379 = vrsqrt.pop %v378
    %v380 = vmul.f32 %v372, %v379
    %v381 = vld [vmem:[#allocation11] sm:$0xf]
    %v382 = vld [vmem:[#allocation11 + $0x4] sm:$0xf]
    %v383 = vld [vmem:[#allocation11 + $0x8] sm:$0xf]
    %v384 = vld [vmem:[#allocation11 + $0xc] sm:$0xf]
    %v385 = vld [vmem:[#allocation11 + $0x10] sm:$0xf]
    %v386 = vld [vmem:[#allocation11 + $0x14] sm:$0xf]
    %v387 = vld [vmem:[#allocation11 + $0x18] sm:$0xf]
    %v388 = vld [vmem:[#allocation11 + $0x1c] sm:$0xf]
    %v389 = vpack.c.bf16 %v380, %v380
    %v390 = vld [vmem:[#allocation12] sm:$0x1]
    %v392 = vlaneseq
    %v393 = vshrl.u32 %v392, 7
    %v394 = vsub.s32 0, %v393
    %v395 = vrot.slane %v390, %v394
    %v405 = vunpack.c.l.b16 %v381
    %v406 = vunpack.c.l.b16 %v382
    %v407 = vunpack.c.l.b16 %v383
    %v408 = vunpack.c.l.b16 %v384
    %v409 = vunpack.c.l.b16 %v385
    %v410 = vunpack.c.l.b16 %v386
    %v411 = vunpack.c.l.b16 %v387
    %v412 = vunpack.c.l.b16 %v388
    %v413 = vpack.c.b16 %v406, %v405
    %v414 = vpack.c.b16 %v408, %v407
    %v415 = vpack.c.b16 %v410, %v409
    %v416 = vpack.c.b16 %v412, %v411
    %v422 = vsel %vm366, %v389, 0
    %424 = vmatprep.subr.bf16.mxu0 0
    %425 = vmatpush1.bf16.msra.mxu0 %v413
    %426 = vmatprep.subr.bf16.mxu0 0
    %427 = vmatpush1.bf16.msra.mxu0 %v414
    %428 = vmatprep.subr.bf16.mxu0 0
    %429 = vmatpush1.bf16.msra.mxu0 %v415
    %430 = vmatprep.subr.bf16.mxu0 0
    %431 = vmatpush1.bf16.msra.mxu0 %v416
    %432 = vmatprep.subr.bf16.mxu0 0
    %433 = vmatpush1.bf16.msra.mxu0 0
    %434 = vmatprep.subr.bf16.mxu0 0
    %435 = vmatpush1.bf16.msra.mxu0 0
    %436 = vmatprep.subr.bf16.mxu0 0
    %437 = vmatpush1.bf16.msra.mxu0 0
    %438 = vmatprep.subr.bf16.mxu0 0
    %439 = vmatpush1.bf16.msra.mxu0 0
    %440 = vmatprep.subr.bf16.mxu0 0
    %441 = vmatpush1.bf16.msra.mxu0 0
    %442 = vmatprep.subr.bf16.mxu0 0
    %443 = vmatpush1.bf16.msra.mxu0 0
    %444 = vmatprep.subr.bf16.mxu0 0
    %445 = vmatpush1.bf16.msra.mxu0 0
    %446 = vmatprep.subr.bf16.mxu0 0
    %447 = vmatpush1.bf16.msra.mxu0 0
    %448 = vmatprep.subr.bf16.mxu0 0
    %449 = vmatpush1.bf16.msra.mxu0 0
    %450 = vmatprep.subr.bf16.mxu0 0
    %451 = vmatpush1.bf16.msra.mxu0 0
    %452 = vmatprep.subr.bf16.mxu0 0
    %453 = vmatpush1.bf16.msra.mxu0 0
    %454 = vmatprep.subr.bf16.mxu0 0
    %455 = vmatpush1.bf16.msra.mxu0 0
    %456 = vmatprep.mubr.bf16.mxu0 0
    %457 = vmatmul.mubr.bf16.gmra.mrb[0].mxu0 %v422
    %v458 = vpop.f32.mrb[0].mxu0
    %v459 = vadd.f32 %v395, %v458
    %v460 = vpop.f32.mrb[0].mxu0
    %v461 = vpop.f32.mrb[0].mxu0
    %v462 = vpop.f32.mrb[0].mxu0
    %463 = vdwg.mxu0
    %v464 = vxor.u32 %v459, 2147483648
    %v465 = vmul.f32 %v464, 1.442695
    %v466 = vpow.pop %v465
    %v467 = vadd.f32 %v466, 1.0
    %v468 = vrcp.pop %v467
    %v469 = vmul.f32 1.0, %v468
    %v470 = vmul.f32 %v459, %v469
    %v471 = vadd.f32 %v365, %v470
    %v472 = vld [vmem:[#allocation14] sm:$0xf]
    %v473 = vld [vmem:[#allocation14 + $0x4] sm:$0xf]
    %v474 = vld [vmem:[#allocation14 + $0x8] sm:$0xf]
    %v475 = vld [vmem:[#allocation14 + $0xc] sm:$0xf]
    %v476 = vld [vmem:[#allocation14 + $0x10] sm:$0xf]
    %v477 = vld [vmem:[#allocation14 + $0x14] sm:$0xf]
    %v478 = vld [vmem:[#allocation14 + $0x18] sm:$0xf]
    %v479 = vld [vmem:[#allocation14 + $0x1c] sm:$0xf]
    %v480 = vpack.c.bf16 %v471, %v471
    %v481 = vld [vmem:[#allocation15] sm:$0x1]
    %v483 = vlaneseq
    %v484 = vshrl.u32 %v483, 7
    %v485 = vsub.s32 0, %v484
    %v486 = vrot.slane %v481, %v485
    %v496 = vunpack.c.l.b16 %v472
    %v497 = vunpack.c.l.b16 %v473
    %v498 = vunpack.c.l.b16 %v474
    %v499 = vunpack.c.l.b16 %v475
    %v500 = vunpack.c.l.b16 %v476
    %v501 = vunpack.c.l.b16 %v477
    %v502 = vunpack.c.l.b16 %v478
    %v503 = vunpack.c.l.b16 %v479
    %v504 = vpack.c.b16 %v497, %v496
    %v505 = vpack.c.b16 %v499, %v498
    %v506 = vpack.c.b16 %v501, %v500
    %v507 = vpack.c.b16 %v503, %v502
    %v513 = vsel %vm366, %v480, 0
    %515 = vmatprep.subr.bf16.mxu0 0
    %516 = vmatpush1.bf16.msra.mxu0 %v504
    %517 = vmatprep.subr.bf16.mxu0 0
    %518 = vmatpush1.bf16.msra.mxu0 %v505
    %519 = vmatprep.subr.bf16.mxu0 0
    %520 = vmatpush1.bf16.msra.mxu0 %v506
    %521 = vmatprep.subr.bf16.mxu0 0
    %522 = vmatpush1.bf16.msra.mxu0 %v507
    %523 = vmatprep.subr.bf16.mxu0 0
    %524 = vmatpush1.bf16.msra.mxu0 0
    %525 = vmatprep.subr.bf16.mxu0 0
    %526 = vmatpush1.bf16.msra.mxu0 0
    %527 = vmatprep.subr.bf16.mxu0 0
    %528 = vmatpush1.bf16.msra.mxu0 0
    %529 = vmatprep.subr.bf16.mxu0 0
    %530 = vmatpush1.bf16.msra.mxu0 0
    %531 = vmatprep.subr.bf16.mxu0 0
    %532 = vmatpush1.bf16.msra.mxu0 0
    %533 = vmatprep.subr.bf16.mxu0 0
    %534 = vmatpush1.bf16.msra.mxu0 0
    %535 = vmatprep.subr.bf16.mxu0 0
    %536 = vmatpush1.bf16.msra.mxu0 0
    %537 = vmatprep.subr.bf16.mxu0 0
    %538 = vmatpush1.bf16.msra.mxu0 0
    %539 = vmatprep.subr.bf16.mxu0 0
    %540 = vmatpush1.bf16.msra.mxu0 0
    %541 = vmatprep.subr.bf16.mxu0 0
    %542 = vmatpush1.bf16.msra.mxu0 0
    %543 = vmatprep.subr.bf16.mxu0 0
    %544 = vmatpush1.bf16.msra.mxu0 0
    %545 = vmatprep.subr.bf16.mxu0 0
    %546 = vmatpush1.bf16.msra.mxu0 0
    %547 = vmatprep.mubr.bf16.mxu0 0
    %548 = vmatmul.mubr.bf16.gmra.mrb[0].mxu0 %v513
    %v549 = vpop.f32.mrb[0].mxu0
    %v550 = vadd.f32 %v486, %v549
    %v551 = vpop.f32.mrb[0].mxu0
    %v552 = vpop.f32.mrb[0].mxu0
    %v553 = vpop.f32.mrb[0].mxu0
    %554 = vdwg.mxu0
    %555 = vrot.lane.b32.xlu0 %v550, 64
    %v556 = vpop.permute.xlu0 %555
    %v557 = vmul.f32 %v556, 1.442695
    %v558 = vpow.pop %v557
    %v559 = vmul.f32 %v556, 0.5
    %v560 = vmul.f32 %v559, 1.442695
    %v561 = vpow.pop %v560
    %v562 = vld [vmem:[#allocation6] sm:$0xff]
    %v563 = vmul.f32 %v562, %v561
    %v564 = vadd.f32 %v550, %v563
    %v565 = vadd.f32 %v556, 1.0
    %v566 = vmul.f32 %v550, %v550
    %v567 = vsub.f32 %v565, %v566
    %v568 = vsub.f32 %v567, %v558
    %v569 = vsel %vm366, %v568, 0.0
    %570 = vadd.xlane.f32.xlu0 %v569
    %v571 = vpop.xlane.xlu0 %570
    %v572 = vadd.f32 %v571, 0.0
    %v573 = vld [vmem:[%s16] sm:$0xf]
    %v574 = vld [vmem:[%s16 + $0x4] sm:$0xf]
    %v575 = vld [vmem:[%s16 + $0x8] sm:$0xf]
    %v576 = vld [vmem:[%s16 + $0xc] sm:$0xf]
    %v577 = vld [vmem:[%s16 + $0x10] sm:$0xf]
    %v578 = vld [vmem:[%s16 + $0x14] sm:$0xf]
    %v579 = vld [vmem:[%s16 + $0x18] sm:$0xf]
    %v580 = vld [vmem:[%s16 + $0x1c] sm:$0xf]
    %v581 = vpack.c.bf16 %v564, %v564
    %v582 = vld [vmem:[%s17] sm:$0x1]
    %v584 = vlaneseq
    %v585 = vshrl.u32 %v584, 7
    %v586 = vsub.s32 0, %v585
    %v587 = vrot.slane %v582, %v586
    %v597 = vunpack.c.l.b16 %v573
    %v598 = vunpack.c.l.b16 %v574
    %v599 = vunpack.c.l.b16 %v575
    %v600 = vunpack.c.l.b16 %v576
    %v601 = vunpack.c.l.b16 %v577
    %v602 = vunpack.c.l.b16 %v578
    %v603 = vunpack.c.l.b16 %v579
    %v604 = vunpack.c.l.b16 %v580
    %v605 = vpack.c.b16 %v598, %v597
    %v606 = vpack.c.b16 %v600, %v599
    %v607 = vpack.c.b16 %v602, %v601
    %v608 = vpack.c.b16 %v604, %v603
    %v614 = vsel %vm366, %v581, 0
    %616 = vmatprep.subr.bf16.mxu0 0
    %617 = vmatpush1.bf16.msra.mxu0 %v605
    %618 = vmatprep.subr.bf16.mxu0 0
    %619 = vmatpush1.bf16.msra.mxu0 %v606
    %620 = vmatprep.subr.bf16.mxu0 0
    %621 = vmatpush1.bf16.msra.mxu0 %v607
    %622 = vmatprep.subr.bf16.mxu0 0
    %623 = vmatpush1.bf16.msra.mxu0 %v608
    %624 = vmatprep.subr.bf16.mxu0 0
    %625 = vmatpush1.bf16.msra.mxu0 0
    %626 = vmatprep.subr.bf16.mxu0 0
    %627 = vmatpush1.bf16.msra.mxu0 0
    %628 = vmatprep.subr.bf16.mxu0 0
    %629 = vmatpush1.bf16.msra.mxu0 0
    %630 = vmatprep.subr.bf16.mxu0 0
    %631 = vmatpush1.bf16.msra.mxu0 0
    %632 = vmatprep.subr.bf16.mxu0 0
    %633 = vmatpush1.bf16.msra.mxu0 0
    %634 = vmatprep.subr.bf16.mxu0 0
    %635 = vmatpush1.bf16.msra.mxu0 0
    %636 = vmatprep.subr.bf16.mxu0 0
    %637 = vmatpush1.bf16.msra.mxu0 0
    %638 = vmatprep.subr.bf16.mxu0 0
    %639 = vmatpush1.bf16.msra.mxu0 0
    %640 = vmatprep.subr.bf16.mxu0 0
    %641 = vmatpush1.bf16.msra.mxu0 0
    %642 = vmatprep.subr.bf16.mxu0 0
    %643 = vmatpush1.bf16.msra.mxu0 0
    %644 = vmatprep.subr.bf16.mxu0 0
    %645 = vmatpush1.bf16.msra.mxu0 0
    %646 = vmatprep.subr.bf16.mxu0 0
    %647 = vmatpush1.bf16.msra.mxu0 0
    %648 = vmatprep.mubr.bf16.mxu0 0
    %649 = vmatmul.mubr.bf16.gmra.mrb[0].mxu0 %v614
    %v650 = vpop.f32.mrb[0].mxu0
    %v651 = vadd.f32 %v587, %v650
    %v652 = vpop.f32.mrb[0].mxu0
    %v653 = vpop.f32.mrb[0].mxu0
    %v654 = vpop.f32.mrb[0].mxu0
    %655 = vdwg.mxu0
    %v657 = vlaneseq
    %v658 = vshrl.u32 %v657, 7
    %v659 = vsub.s32 0, %v658
    %v660 = vrot.slane %v274, %v659
    %v662 = vmul.f32 %v651, %v660
    %663 = vadd.xlane.f32.xlu0 %v662
    %v664 = vpop.xlane.xlu0 %663
    %v666 = vlaneseq
    %v667 = vshrl.u32 %v666, 7
    %v668 = vsub.s32 0, %v667
    %v669 = vrot.slane %v275, %v668
    %v671 = vadd.f32 %v664, %v669
    %v672 = vld [vmem:[#allocation17] sm:$0xff]
    %vm673 = vcmask 392192
    %v674 = vsel %vm673, %v672, 0.0
    %675 = vadd.xlane.f32.xlu0 %v674
    %v676 = vpop.xlane.xlu0 %675
    %v677 = vrcp.pop 48.0
    %v678 = vmul.f32 %v676, %v677
    %v679 = vsub.f32 %v672, %v678
    %v680 = vmul.f32 %v679, %v679
    %v681 = vsel %vm673, %v680, 0.0
    %682 = vadd.xlane.f32.xlu0 %v681
    %v683 = vpop.xlane.xlu0 %682
    %v684 = vmul.f32 %v683, %v677
    %v685 = vadd.f32 %v684, 1e-05
    %v686 = vrsqrt.pop %v685
    %v687 = vmul.f32 %v679, %v686
    %v688 = vld [vmem:[#allocation20] sm:$0xf]
    %v689 = vld [vmem:[#allocation20 + $0x4] sm:$0xf]
    %v690 = vld [vmem:[#allocation20 + $0x8] sm:$0xf]
    %v691 = vld [vmem:[#allocation20 + $0xc] sm:$0xf]
    %v692 = vld [vmem:[#allocation20 + $0x10] sm:$0xf]
    %v693 = vld [vmem:[#allocation20 + $0x14] sm:$0xf]
    %v694 = vpack.c.bf16 %v687, %v687
    %v695 = vld [vmem:[#allocation21] sm:$0x1]
    %v697 = vlaneseq
    %v698 = vshrl.u32 %v697, 7
    %v699 = vsub.s32 0, %v698
    %v700 = vrot.slane %v695, %v699
    %v708 = vunpack.c.l.b16 %v688
    %v709 = vunpack.c.l.b16 %v689
    %v710 = vunpack.c.l.b16 %v690
    %v711 = vunpack.c.l.b16 %v691
    %v712 = vunpack.c.l.b16 %v692
    %v713 = vunpack.c.l.b16 %v693
    %v714 = vpack.c.b16 %v709, %v708
    %v715 = vpack.c.b16 %v711, %v710
    %v716 = vpack.c.b16 %v713, %v712
    %v721 = vsel %vm673, %v694, 0
    %723 = vmatprep.subr.bf16.mxu0 0
    %724 = vmatpush1.bf16.msra.mxu0 %v714
    %725 = vmatprep.subr.bf16.mxu0 0
    %726 = vmatpush1.bf16.msra.mxu0 %v715
    %727 = vmatprep.subr.bf16.mxu0 0
    %728 = vmatpush1.bf16.msra.mxu0 %v716
    %729 = vmatprep.subr.bf16.mxu0 0
    %730 = vmatpush1.bf16.msra.mxu0 0
    %731 = vmatprep.subr.bf16.mxu0 0
    %732 = vmatpush1.bf16.msra.mxu0 0
    %733 = vmatprep.subr.bf16.mxu0 0
    %734 = vmatpush1.bf16.msra.mxu0 0
    %735 = vmatprep.subr.bf16.mxu0 0
    %736 = vmatpush1.bf16.msra.mxu0 0
    %737 = vmatprep.subr.bf16.mxu0 0
    %738 = vmatpush1.bf16.msra.mxu0 0
    %739 = vmatprep.subr.bf16.mxu0 0
    %740 = vmatpush1.bf16.msra.mxu0 0
    %741 = vmatprep.subr.bf16.mxu0 0
    %742 = vmatpush1.bf16.msra.mxu0 0
    %743 = vmatprep.subr.bf16.mxu0 0
    %744 = vmatpush1.bf16.msra.mxu0 0
    %745 = vmatprep.subr.bf16.mxu0 0
    %746 = vmatpush1.bf16.msra.mxu0 0
    %747 = vmatprep.subr.bf16.mxu0 0
    %748 = vmatpush1.bf16.msra.mxu0 0
    %749 = vmatprep.subr.bf16.mxu0 0
    %750 = vmatpush1.bf16.msra.mxu0 0
    %751 = vmatprep.subr.bf16.mxu0 0
    %752 = vmatpush1.bf16.msra.mxu0 0
    %753 = vmatprep.subr.bf16.mxu0 0
    %754 = vmatpush1.bf16.msra.mxu0 0
    %755 = vmatprep.mubr.bf16.mxu0 0
    %756 = vmatmul.mubr.bf16.gmra.mrb[0].mxu0 %v721
    %v757 = vpop.f32.mrb[0].mxu0
    %v758 = vadd.f32 %v700, %v757
    %v759 = vpop.f32.mrb[0].mxu0
    %v760 = vpop.f32.mrb[0].mxu0
    %v761 = vpop.f32.mrb[0].mxu0
    %762 = vdwg.mxu0
    %v763 = vxor.u32 %v758, 2147483648
    %v764 = vmul.f32 %v763, 1.442695
    %v765 = vpow.pop %v764
    %v766 = vadd.f32 %v765, 1.0
    %v767 = vrcp.pop %v766
    %v768 = vmul.f32 1.0, %v767
    %v769 = vmul.f32 %v758, %v768
    %v770 = vsel %vm366, %v769, 0.0
    %771 = vadd.xlane.f32.xlu0 %v770
    %v772 = vpop.xlane.xlu0 %771
    %v773 = vmul.f32 %v772, %v370
    %v774 = vsub.f32 %v769, %v773
    %v775 = vmul.f32 %v774, %v774
    %v776 = vsel %vm366, %v775, 0.0
    %777 = vadd.xlane.f32.xlu0 %v776
    %v778 = vpop.xlane.xlu0 %777
    %v779 = vmul.f32 %v778, %v370
    %v780 = vadd.f32 %v779, 1e-05
    %v781 = vrsqrt.pop %v780
    %v782 = vmul.f32 %v774, %v781
    %v783 = vld [vmem:[#allocation23] sm:$0xf]
    %v784 = vld [vmem:[#allocation23 + $0x4] sm:$0xf]
    %v785 = vld [vmem:[#allocation23 + $0x8] sm:$0xf]
    %v786 = vld [vmem:[#allocation23 + $0xc] sm:$0xf]
    %v787 = vld [vmem:[#allocation23 + $0x10] sm:$0xf]
    %v788 = vld [vmem:[#allocation23 + $0x14] sm:$0xf]
    %v789 = vld [vmem:[#allocation23 + $0x18] sm:$0xf]
    %v790 = vld [vmem:[#allocation23 + $0x1c] sm:$0xf]
    %v791 = vpack.c.bf16 %v782, %v782
    %v792 = vld [vmem:[#allocation24] sm:$0x1]
    %v794 = vlaneseq
    %v795 = vshrl.u32 %v794, 7
    %v796 = vsub.s32 0, %v795
    %v797 = vrot.slane %v792, %v796
    %v807 = vunpack.c.l.b16 %v783
    %v808 = vunpack.c.l.b16 %v784
    %v809 = vunpack.c.l.b16 %v785
    %v810 = vunpack.c.l.b16 %v786
    %v811 = vunpack.c.l.b16 %v787
    %v812 = vunpack.c.l.b16 %v788
    %v813 = vunpack.c.l.b16 %v789
    %v814 = vunpack.c.l.b16 %v790
    %v815 = vpack.c.b16 %v808, %v807
    %v816 = vpack.c.b16 %v810, %v809
    %v817 = vpack.c.b16 %v812, %v811
    %v818 = vpack.c.b16 %v814, %v813
    %v824 = vsel %vm366, %v791, 0
    %826 = vmatprep.subr.bf16.mxu0 0
    %827 = vmatpush1.bf16.msra.mxu0 %v815
    %828 = vmatprep.subr.bf16.mxu0 0
    %829 = vmatpush1.bf16.msra.mxu0 %v816
    %830 = vmatprep.subr.bf16.mxu0 0
    %831 = vmatpush1.bf16.msra.mxu0 %v817
    %832 = vmatprep.subr.bf16.mxu0 0
    %833 = vmatpush1.bf16.msra.mxu0 %v818
    %834 = vmatprep.subr.bf16.mxu0 0
    %835 = vmatpush1.bf16.msra.mxu0 0
    %836 = vmatprep.subr.bf16.mxu0 0
    %837 = vmatpush1.bf16.msra.mxu0 0
    %838 = vmatprep.subr.bf16.mxu0 0
    %839 = vmatpush1.bf16.msra.mxu0 0
    %840 = vmatprep.subr.bf16.mxu0 0
    %841 = vmatpush1.bf16.msra.mxu0 0
    %842 = vmatprep.subr.bf16.mxu0 0
    %843 = vmatpush1.bf16.msra.mxu0 0
    %844 = vmatprep.subr.bf16.mxu0 0
    %845 = vmatpush1.bf16.msra.mxu0 0
    %846 = vmatprep.subr.bf16.mxu0 0
    %847 = vmatpush1.bf16.msra.mxu0 0
    %848 = vmatprep.subr.bf16.mxu0 0
    %849 = vmatpush1.bf16.msra.mxu0 0
    %850 = vmatprep.subr.bf16.mxu0 0
    %851 = vmatpush1.bf16.msra.mxu0 0
    %852 = vmatprep.subr.bf16.mxu0 0
    %853 = vmatpush1.bf16.msra.mxu0 0
    %854 = vmatprep.subr.bf16.mxu0 0
    %855 = vmatpush1.bf16.msra.mxu0 0
    %856 = vmatprep.subr.bf16.mxu0 0
    %857 = vmatpush1.bf16.msra.mxu0 0
    %858 = vmatprep.mubr.bf16.mxu0 0
    %859 = vmatmul.mubr.bf16.gmra.mrb[0].mxu0 %v824
    %v860 = vpop.f32.mrb[0].mxu0
    %v861 = vadd.f32 %v797, %v860
    %v862 = vpop.f32.mrb[0].mxu0
    %v863 = vpop.f32.mrb[0].mxu0
    %v864 = vpop.f32.mrb[0].mxu0
    %865 = vdwg.mxu0
    %v866 = vxor.u32 %v861, 2147483648
    %v867 = vmul.f32 %v866, 1.442695
    %v868 = vpow.pop %v867
    %v869 = vadd.f32 %v868, 1.0
    %v870 = vrcp.pop %v869
    %v871 = vmul.f32 1.0, %v870
    %v872 = vmul.f32 %v861, %v871
    %v873 = vadd.f32 %v769, %v872
    %v874 = vld [vmem:[#allocation26] sm:$0xf]
    %v875 = vld [vmem:[#allocation26 + $0x4] sm:$0xf]
    %v876 = vld [vmem:[#allocation26 + $0x8] sm:$0xf]
    %v877 = vld [vmem:[#allocation26 + $0xc] sm:$0xf]
    %v878 = vld [vmem:[#allocation26 + $0x10] sm:$0xf]
    %v879 = vld [vmem:[#allocation26 + $0x14] sm:$0xf]
    %v880 = vld [vmem:[#allocation26 + $0x18] sm:$0xf]
    %v881 = vld [vmem:[#allocation26 + $0x1c] sm:$0xf]
    %v882 = vpack.c.bf16 %v873, %v873
    %v883 = vld [vmem:[#allocation27] sm:$0x1]
    %v885 = vlaneseq
    %v886 = vshrl.u32 %v885, 7
    %v887 = vsub.s32 0, %v886
    %v888 = vrot.slane %v883, %v887
    %v898 = vunpack.c.l.b16 %v874
    %v899 = vunpack.c.l.b16 %v875
    %v900 = vunpack.c.l.b16 %v876
    %v901 = vunpack.c.l.b16 %v877
    %v902 = vunpack.c.l.b16 %v878
    %v903 = vunpack.c.l.b16 %v879
    %v904 = vunpack.c.l.b16 %v880
    %v905 = vunpack.c.l.b16 %v881
    %v906 = vpack.c.b16 %v899, %v898
    %v907 = vpack.c.b16 %v901, %v900
    %v908 = vpack.c.b16 %v903, %v902
    %v909 = vpack.c.b16 %v905, %v904
    %v915 = vsel %vm366, %v882, 0
    %917 = vmatprep.subr.bf16.mxu0 0
    %918 = vmatpush1.bf16.msra.mxu0 %v906
    %919 = vmatprep.subr.bf16.mxu0 0
    %920 = vmatpush1.bf16.msra.mxu0 %v907
    %921 = vmatprep.subr.bf16.mxu0 0
    %922 = vmatpush1.bf16.msra.mxu0 %v908
    %923 = vmatprep.subr.bf16.mxu0 0
    %924 = vmatpush1.bf16.msra.mxu0 %v909
    %925 = vmatprep.subr.bf16.mxu0 0
    %926 = vmatpush1.bf16.msra.mxu0 0
    %927 = vmatprep.subr.bf16.mxu0 0
    %928 = vmatpush1.bf16.msra.mxu0 0
    %929 = vmatprep.subr.bf16.mxu0 0
    %930 = vmatpush1.bf16.msra.mxu0 0
    %931 = vmatprep.subr.bf16.mxu0 0
    %932 = vmatpush1.bf16.msra.mxu0 0
    %933 = vmatprep.subr.bf16.mxu0 0
    %934 = vmatpush1.bf16.msra.mxu0 0
    %935 = vmatprep.subr.bf16.mxu0 0
    %936 = vmatpush1.bf16.msra.mxu0 0
    %937 = vmatprep.subr.bf16.mxu0 0
    %938 = vmatpush1.bf16.msra.mxu0 0
    %939 = vmatprep.subr.bf16.mxu0 0
    %940 = vmatpush1.bf16.msra.mxu0 0
    %941 = vmatprep.subr.bf16.mxu0 0
    %942 = vmatpush1.bf16.msra.mxu0 0
    %943 = vmatprep.subr.bf16.mxu0 0
    %944 = vmatpush1.bf16.msra.mxu0 0
    %945 = vmatprep.subr.bf16.mxu0 0
    %946 = vmatpush1.bf16.msra.mxu0 0
    %947 = vmatprep.subr.bf16.mxu0 0
    %948 = vmatpush1.bf16.msra.mxu0 0
    %949 = vmatprep.mubr.bf16.mxu0 0
    %950 = vmatmul.mubr.bf16.gmra.mrb[0].mxu0 %v915
    %v951 = vpop.f32.mrb[0].mxu0
    %v952 = vadd.f32 %v888, %v951
    %v953 = vpop.f32.mrb[0].mxu0
    %v954 = vpop.f32.mrb[0].mxu0
    %v955 = vpop.f32.mrb[0].mxu0
    %956 = vdwg.mxu0
    %957 = vrot.lane.b32.xlu0 %v952, 64
    %v958 = vpop.permute.xlu0 %957
    %v959 = vmul.f32 %v958, 1.442695
    %v960 = vpow.pop %v959
    %v961 = vmul.f32 %v958, 0.5
    %v962 = vmul.f32 %v961, 1.442695
    %v963 = vpow.pop %v962
    %v964 = vld [vmem:[#allocation18] sm:$0xff]
    %v965 = vmul.f32 %v964, %v963
    %v966 = vadd.f32 %v952, %v965
    %v967 = vadd.f32 %v958, 1.0
    %v968 = vmul.f32 %v952, %v952
    %v969 = vsub.f32 %v967, %v968
    %v970 = vsub.f32 %v969, %v960
    %v971 = vsel %vm366, %v970, 0.0
    %972 = vadd.xlane.f32.xlu0 %v971
    %v973 = vpop.xlane.xlu0 %972
    %v974 = vadd.f32 %v572, %v973
    %s975 = scalar_lea.vmem %s16, 32
    %v976 = vld [vmem:[%s975] sm:$0xf]
    %v977 = vld [vmem:[%s975 + $0x4] sm:$0xf]
    %v978 = vld [vmem:[%s975 + $0x8] sm:$0xf]
    %v979 = vld [vmem:[%s975 + $0xc] sm:$0xf]
    %v980 = vld [vmem:[%s975 + $0x10] sm:$0xf]
    %v981 = vld [vmem:[%s975 + $0x14] sm:$0xf]
    %v982 = vld [vmem:[%s975 + $0x18] sm:$0xf]
    %v983 = vld [vmem:[%s975 + $0x1c] sm:$0xf]
    %v984 = vpack.c.bf16 %v966, %v966
    %s985 = scalar_lea.vmem %s17, 1
    %v986 = vld [vmem:[%s985] sm:$0x1]
    %v988 = vlaneseq
    %v989 = vshrl.u32 %v988, 7
    %v990 = vsub.s32 0, %v989
    %v991 = vrot.slane %v986, %v990
    %v1001 = vunpack.c.l.b16 %v976
    %v1002 = vunpack.c.l.b16 %v977
    %v1003 = vunpack.c.l.b16 %v978
    %v1004 = vunpack.c.l.b16 %v979
    %v1005 = vunpack.c.l.b16 %v980
    %v1006 = vunpack.c.l.b16 %v981
    %v1007 = vunpack.c.l.b16 %v982
    %v1008 = vunpack.c.l.b16 %v983
    %v1009 = vpack.c.b16 %v1002, %v1001
    %v1010 = vpack.c.b16 %v1004, %v1003
    %v1011 = vpack.c.b16 %v1006, %v1005
    %v1012 = vpack.c.b16 %v1008, %v1007
    %v1018 = vsel %vm366, %v984, 0
    %1020 = vmatprep.subr.bf16.mxu0 0
    %1021 = vmatpush1.bf16.msra.mxu0 %v1009
    %1022 = vmatprep.subr.bf16.mxu0 0
    %1023 = vmatpush1.bf16.msra.mxu0 %v1010
    %1024 = vmatprep.subr.bf16.mxu0 0
    %1025 = vmatpush1.bf16.msra.mxu0 %v1011
    %1026 = vmatprep.subr.bf16.mxu0 0
    %1027 = vmatpush1.bf16.msra.mxu0 %v1012
    %1028 = vmatprep.subr.bf16.mxu0 0
    %1029 = vmatpush1.bf16.msra.mxu0 0
    %1030 = vmatprep.subr.bf16.mxu0 0
    %1031 = vmatpush1.bf16.msra.mxu0 0
    %1032 = vmatprep.subr.bf16.mxu0 0
    %1033 = vmatpush1.bf16.msra.mxu0 0
    %1034 = vmatprep.subr.bf16.mxu0 0
    %1035 = vmatpush1.bf16.msra.mxu0 0
    %1036 = vmatprep.subr.bf16.mxu0 0
    %1037 = vmatpush1.bf16.msra.mxu0 0
    %1038 = vmatprep.subr.bf16.mxu0 0
    %1039 = vmatpush1.bf16.msra.mxu0 0
    %1040 = vmatprep.subr.bf16.mxu0 0
    %1041 = vmatpush1.bf16.msra.mxu0 0
    %1042 = vmatprep.subr.bf16.mxu0 0
    %1043 = vmatpush1.bf16.msra.mxu0 0
    %1044 = vmatprep.subr.bf16.mxu0 0
    %1045 = vmatpush1.bf16.msra.mxu0 0
    %1046 = vmatprep.subr.bf16.mxu0 0
    %1047 = vmatpush1.bf16.msra.mxu0 0
    %1048 = vmatprep.subr.bf16.mxu0 0
    %1049 = vmatpush1.bf16.msra.mxu0 0
    %1050 = vmatprep.subr.bf16.mxu0 0
    %1051 = vmatpush1.bf16.msra.mxu0 0
    %1052 = vmatprep.mubr.bf16.mxu0 0
    %1053 = vmatmul.mubr.bf16.gmra.mrb[0].mxu0 %v1018
    %v1054 = vpop.f32.mrb[0].mxu0
    %v1055 = vadd.f32 %v991, %v1054
    %v1056 = vpop.f32.mrb[0].mxu0
    %v1057 = vpop.f32.mrb[0].mxu0
    %v1058 = vpop.f32.mrb[0].mxu0
    %1059 = vdwg.mxu0
    %v1060 = vmul.f32 %v1055, %v660
    %1061 = vadd.xlane.f32.xlu0 %v1060
    %v1062 = vpop.xlane.xlu0 %1061
    %v1063 = vadd.f32 %v1062, %v669
    %v1064 = vmax.f32 %v671, %v1063
    %v1065 = vsub.f32 %v671, %v1064
    %v1066 = vmul.f32 %v1065, 1.442695
    %v1067 = vpow.pop %v1066
    %v1068 = vsub.f32 %v1063, %v1064
    %v1069 = vmul.f32 %v1068, 1.442695
    %v1070 = vpow.pop %v1069
    %v1071 = vadd.f32 %v1067, %v1070
    %1073 = vset.pattern.permute.xlu0 0
    %1074 = vperm.xlu0 %1073, %v1067
    %v1075 = vpop.permute.xlu0 %1074
    %v1077 = vmul.f32 %v1075, %v651
    %1079 = vset.pattern.permute.xlu0 0
    %1080 = vperm.xlu0 %1079, %v1070
    %v1081 = vpop.permute.xlu0 %1080
    %v1083 = vmul.f32 %v1081, %v1055
    %v1084 = vadd.f32 %v1077, %v1083
    %v1085 = vrcp.pop %v1071
    %1087 = vset.pattern.permute.xlu0 0
    %1088 = vperm.xlu0 %1087, %v1085
    %v1089 = vpop.permute.xlu0 %1088
    %v1091 = vmul.f32 %v1084, %v1089
    %1092 = vst [vmem:[#allocation29] sm:$0xff] %v1091
    %v1093 = vmul.f32 %v1067, %v1085
    %v1094 = vmul.f32 %v1070, %v1085
    %v1095 = vmul.f32 %v974, -0.00390625
    %v1096 = vsel %vm273, %v1095, 0.0
    %1098 = vrot.lane.b32.xlu0 %v1094, 1
    %v1099 = vpop.permute.xlu0 %1098
    %vm1101 = vcmask 7168
    %v1102 = vsel %vm1101, %v1093, %v1099
    %vm1103 = vcmask 15360
    %v1104 = vsel %vm1103, %v1102, %v1096
    %vm1105 = vcmask 23552
    %1106 = vst.msk [vmem:[%s21] sm:$0xff] %vm1105, %v1104
    // Predicated region
    $region146: #{tpu_custom_call.1} parent=1 // pred_check
      _
    $region147: #{tpu_custom_call.1} parent=1 // pred_check_branch
      %1108 = sbr.rel (0) target = $region149
    $region148: #{tpu_custom_call.1} parent=1 // pred_region
      %s1110 = ssub.s32 128, 128
      %1111 = vsyncadd [#allocation5], %s1110
      %s1113 = sshll.u32 [#allocation29], 4
      %s1114 = int_to_ptr.vmem [resolvable:$true] %s1113
      %1116 = dma.vmem_to_hbm [thread:$0]  %s1114, 128, %s20, [#allocation5]
    $region149: #{tpu_custom_call.1} parent=1 // pred_fallthru
      _
    // Predicated region
    $region150: #{tpu_custom_call.1} parent=1 // pred_check
      _
    $region151: #{tpu_custom_call.1} parent=1 // pred_check_branch
      %1118 = sbr.rel (0) target = $region153
    $region152: #{tpu_custom_call.1} parent=1 // pred_region
      _
    $region153: #{tpu_custom_call.1} parent=1 // pred_fallthru
      _
    // Predicated region
    $region154: #{tpu_custom_call.1} parent=1 // pred_check
      _
    $region155: #{tpu_custom_call.1} parent=1 // pred_check_branch
      %1120 = sbr.rel (0) target = $region157
    $region156: #{tpu_custom_call.1} parent=1 // pred_region
      %1121 = dma.done [#allocation5], 128
    $region157: #{tpu_custom_call.1} parent=1 // pred_fallthru
      _
    // Predicated region
    $region158: #{tpu_custom_call.1} parent=1 // pred_check
      _
    $region159: #{tpu_custom_call.1} parent=1 // pred_check_branch
      %1123 = sbr.rel (0) target = $region161
    $region160: #{tpu_custom_call.1} parent=1 // pred_region
      _
    $region161: #{tpu_custom_call.1} parent=1 // pred_fallthru
      _
    %1124 = vsyncpa [#allocation4], 1
    %1125 = vsyncpa [#allocation7], 1
    %1126 = vsyncpa [#allocation10], 1
    %1127 = vsyncpa [#allocation13], 1
    %1128 = vsyncpa [#allocation16], 1
    %1129 = vsyncpa [#allocation19], 1
    %1130 = vsyncpa [#allocation22], 1
    %1131 = vsyncpa [#allocation25], 1
    %1132 = vsyncpa [#allocation28], 1
    %1133 = vsyncpa [#allocation5], 1

</llo_original>
